<compile_context>
chip_gen: v6e
topology: v6e:2x2x1
jax: 0.10.0
libtpu: 0.0.40
codegen_flags: <defaults>
</compile_context>

<pallas_src>
import math
import functools

import jax
import jax.numpy as jnp
from jax import lax
from jax.experimental import pallas as pl
from jax.experimental.pallas import tpu as pltpu

LN2 = math.log(2.0)

# ----------------------------- config (small, consistent with the module) ----
N_ATOMS = 8            # number of atoms
N_EDGES = 16           # number of directed edges
N_FEATURE = 32         # n_feature
EXT_ATOM_DIM = 8       # ext_atom_dim  (CST descriptor width)
F_EMB = N_FEATURE - EXT_ATOM_DIM   # embedding width of CSTShiftEmb.embedding_layer
EXPANSION_N = 16       # expansion_n (Gaussian RBF count)
EXPANSION_DIST = 10.0  # expansion_dist (cutoff)
N_OUTPUT = 1           # n_output
N_MODULE = 2           # n_module
N_ATOM_EMBEDDING = 95  # n_atom_embedding
N_EXT_ELEM = 8         # number of elements with CST statistics


def _ssp(x):
    """Shifted softplus, numerically stable."""
    return jnp.maximum(x, 0.0) + jnp.log(1.0 + jnp.exp(-jnp.abs(x))) - LN2


# ----------------------------- the single fused kernel -----------------------
def fused_forward_kernel(
    z_ref, src_ref, dst_ref, dst_row_ref, r_ref, centers_ref, widths_ref,
    elems_ref, z_tab_ref, ext_ref, ext_ms_ref,
    g_pack_ref, w01_all_ref, wr_all_ref, b_all_ref,
    out_wres_ref, out_bres_ref, out_wlast_ref,
    out_ref, vi_ref, *, cutoff, n_modules,
):
    """Entire CSTShiftEmb forward pass; all intermediates stay in VMEM.

    z:(N,1) src/dst:(E,1) dst_row:(1,E) int32   r:(N,3)
    centers/widths:(1,K)  elems:(1,8) int32
    z_tab:(95, f_emb + 2*n_out) packed [embedding | scale | shift]
    ext:(N,ext)  ext_ms:(8,2*ext) packed [mean|std]
    g_pack:(K, M*F) edge gates for ALL modules, packed along lanes
    w01_all:(M,F,2F) packed [Wj|Wi]
    wr_all:(M,5,F,F)=[Wr1,Wr2,Wv,Wa1,Wa2]  b_all:(M,8,F) (row 7 = gate u)
    out_wres:(2,F,F) out_bres:(2,F) out_wlast:(F,n_out)
    out:(N,n_out)   vi (scratch):(N,F)
    """
    N = z_ref.shape[0]
    E = src_ref.shape[0]
    F = vi_ref.shape[1]
    ext_dim = ext_ref.shape[1]
    n_emb = z_tab_ref.shape[0]
    n_out = out_ref.shape[1]
    f_emb = z_tab_ref.shape[1] - 2 * n_out

    z = z_ref[...]               # (N, 1) int32
    src = src_ref[...]           # (E, 1) int32
    dst = dst_ref[...]           # (E, 1) int32
    dst_row = dst_row_ref[...]   # (1, E) int32

    # One-hot matrices built in-kernel (iota compares on the VPU).
    src_oh = (lax.broadcasted_iota(jnp.int32, (E, N), 1) == src).astype(jnp.float32)
    dst_oh = (lax.broadcasted_iota(jnp.int32, (E, N), 1) == dst).astype(jnp.float32)
    dstT_oh = (lax.broadcasted_iota(jnp.int32, (N, E), 0) == dst_row).astype(jnp.float32)
    z_oh = (lax.broadcasted_iota(jnp.int32, (N, n_emb), 1) == z).astype(jnp.float32)
    elem_oh = (z == elems_ref[...]).astype(jnp.float32)          # (N, n_elem)

    # --- edge geometry: single packed one-hot gather (src - dst) @ r on the MXU ---
    r = r_ref[...]                                                            # (N, 3)
    diff = jnp.dot(src_oh - dst_oh, r, preferred_element_type=jnp.float32)    # (E, 3)
    d = jnp.sqrt(jnp.maximum(jnp.sum(diff * diff, axis=-1, keepdims=True), 1e-12))
    u = d / cutoff
    phi = 1.0 - 6.0 * u ** 5 + 15.0 * u ** 4 - 10.0 * u ** 3
    phi = jnp.where(d < cutoff, phi, 0.0)
    rbf = phi * jnp.exp(-widths_ref[...] * (jnp.exp(-d) - centers_ref[...]) ** 2)  # (E, K)

    # --- all-module RBF edge gates in ONE matmul (rbf-only, hoisted out of loop) ---
    g_edges = jnp.dot(rbf, g_pack_ref[...], preferred_element_type=jnp.float32)    # (E, M*F)

    # --- embedding lookup + output scale/shift in ONE z-one-hot matmul ---
    z_gath = jnp.dot(z_oh, z_tab_ref[...], preferred_element_type=jnp.float32)     # (N, f_emb+2*n_out)
    vemb = z_gath[:, :f_emb]
    ss_z = z_gath[:, f_emb:]                                                        # [scale | shift]

    # --- per-element CST feature normalization ---
    ms_z = jnp.dot(elem_oh, ext_ms_ref[...], preferred_element_type=jnp.float32)   # (N, 2*ext)
    mean_z = ms_z[:, :ext_dim]
    std_z = ms_z[:, ext_dim:]
    matched = jnp.sum(elem_oh, axis=-1, keepdims=True) > 0.5
    ext = ext_ref[...]
    ext_n = jnp.where(matched, (ext - mean_z) / jnp.where(matched, std_z, 1.0), ext)

    # build initial vi with two slice stores (instead of a lane concat), then carry value
    vi_ref[:, :f_emb] = vemb
    vi_ref[:, f_emb:] = ext_n
    vi = vi_ref[...]

    # --- PhysModules (statically unrolled; vi carried as a live value) ---
    w01_all = w01_all_ref[...]
    wr_all = wr_all_ref[...]
    b_all = b_all_ref[...]

    for m in range(n_modules):
        b = b_all[m]            # (8, F); each bias row broadcast exactly once below
        wr = wr_all[m]          # (5, F, F)

        xa = _ssp(vi)
        h = jnp.dot(xa, w01_all[m], preferred_element_type=jnp.float32)     # (N, 2F) packed
        mj = _ssp(h[:, :F] + b[0:1])                                        # message transform
        g = g_edges[:, m * F:(m + 1) * F]                                   # (E, F) edge gate
        msg = g * jnp.dot(src_oh, mj, preferred_element_type=jnp.float32)   # gather + gate
        agg = jnp.dot(dstT_oh, msg, preferred_element_type=jnp.float32)     # scatter-add (N, F)

        v = _ssp(h[:, F:] + b[1:2] + agg)
        # interaction residual block (n_phys_interaction_res = 1)
        v = v + jnp.dot(_ssp(jnp.dot(_ssp(v), wr[0], preferred_element_type=jnp.float32) + b[2:3]),
                        wr[1], preferred_element_type=jnp.float32) + b[3:4]
        # gated residual update
        v = b[7:8] * vi + jnp.dot(_ssp(v), wr[2], preferred_element_type=jnp.float32) + b[4:5]
        # atomic residual block (n_phys_atomic_res = 1)
        v = v + jnp.dot(_ssp(jnp.dot(_ssp(v), wr[3], preferred_element_type=jnp.float32) + b[5:6]),
                        wr[4], preferred_element_type=jnp.float32) + b[6:7]
        vi = v

    # --- output layer (residual block + last linear, bias=False) + scale/shift ---
    wres = out_wres_ref[...]
    bres = out_bres_ref[...]
    v = vi + jnp.dot(_ssp(jnp.dot(_ssp(vi), wres[0], preferred_element_type=jnp.float32) + bres[0:1]),
                     wres[1], preferred_element_type=jnp.float32) + bres[1:2]
    o = jnp.dot(_ssp(v), out_wlast_ref[...], preferred_element_type=jnp.float32)     # (N, n_out)
    out_ref[...] = ss_z[:, :n_out] * o + ss_z[:, n_out:]


# ----------------------------- parameter construction ------------------------
def init_params(key):
    k = jax.random.split(key, 20)
    ki = iter(k)

    def nrm(shape, scale=0.1):
        return scale * jax.random.normal(next(ki), shape, dtype=jnp.float32)

    # RBF expansion parameters (softplus(softplus_inverse(x)) == x)
    centers = jnp.linspace(1.0, math.exp(-EXPANSION_DIST), EXPANSION_N).astype(jnp.float32)
    width_val = (0.5 / ((1.0 - math.exp(-EXPANSION_DIST)) / EXPANSION_N)) ** 2
    widths = jnp.full((EXPANSION_N,), width_val, dtype=jnp.float32)

    # ext_atom_feat_mean_std (packed [mean | std])
    ext_mean = nrm((N_EXT_ELEM, EXT_ATOM_DIM), 0.5)
    ext_std = 1.0 + 0.1 * jnp.abs(nrm((N_EXT_ELEM, EXT_ATOM_DIM), 1.0))
    # normalize: scale ones, shift zeros (mean_atom / std_atom = None)
    scale = jnp.ones((N_ATOM_EMBEDDING, N_OUTPUT), jnp.float32)
    shift = jnp.zeros((N_ATOM_EMBEDDING, N_OUTPUT), jnp.float32)
    emb = nrm((N_ATOM_EMBEDDING, F_EMB), 1.0)

    # per-module weights, stacked and packed
    g_list, w01_list, wr_list, b_list = [], [], [], []
    for _ in range(N_MODULE):
        W = nrm((7, N_FEATURE, N_FEATURE))            # [Wj, Wi, Wr1, Wr2, Wv, Wa1, Wa2]
        b = nrm((8, N_FEATURE)).at[7].set(1.0)        # gate u initialized to ones
        g_list.append(nrm((EXPANSION_N, N_FEATURE)))
        w01_list.append(jnp.concatenate([W[0], W[1]], axis=-1))   # (F, 2F) packed
        wr_list.append(W[2:7])                                    # (5, F, F)
        b_list.append(b)

    params = {
        "cutoff": EXPANSION_DIST,
        "centers": centers.reshape(1, EXPANSION_N),
        "widths": widths.reshape(1, EXPANSION_N),
        # z-indexed tables packed into one gather matrix: [embedding | scale | shift]
        "z_tab": jnp.concatenate([emb, scale, shift], axis=-1),                     # (95, F_emb+2*n_out)
        "ext_elements": jnp.array([[1, 6, 7, 8, 9, 15, 16, 17]], dtype=jnp.int32),  # (1, 8)
        "ext_ms": jnp.concatenate([ext_mean, ext_std], axis=-1),                    # (8, 2*ext)
        # output layer
        "out_Wres": nrm((2, N_FEATURE, N_FEATURE)),
        "out_bres": nrm((2, N_FEATURE)),
        "out_Wlast": nrm((N_FEATURE, N_OUTPUT)),       # last_lin_bias=False
        # stacked PhysModule params
        "G_pack": jnp.concatenate(g_list, axis=-1),    # (K, M*F) all-module gates packed
        "W01_all": jnp.stack(w01_list),                # (M, F, 2F)
        "Wr_all": jnp.stack(wr_list),                  # (M, 5, F, F)
        "b_all": jnp.stack(b_list),                    # (M, 8, F)
    }
    return params


# ----------------------------- forward (CSTShiftEmb.forward) -----------------
def cst_shift_emb_forward(params, R, Z, edge_index, ext_feat):
    N = Z.shape[0]
    E = edge_index.shape[1]

    # tiny index reshapes; all heavy work happens inside the single fused kernel
    z_col = Z.reshape(N, 1).astype(jnp.int32)
    src_col = edge_index[0].reshape(E, 1).astype(jnp.int32)
    dst_col = edge_index[1].reshape(E, 1).astype(jnp.int32)
    dst_row = edge_index[1].reshape(1, E).astype(jnp.int32)

    kernel = functools.partial(
        fused_forward_kernel, cutoff=float(params["cutoff"]), n_modules=N_MODULE
    )
    vmem_spec = pl.BlockSpec(memory_space=pltpu.MemorySpace.VMEM)

    out = pl.pallas_call(
        kernel,
        out_shape=jax.ShapeDtypeStruct((N, N_OUTPUT), jnp.float32),
        in_specs=[vmem_spec] * 18,
        out_specs=vmem_spec,
        scratch_shapes=[pltpu.VMEM((N, N_FEATURE), jnp.float32)],   # initial vi concat buffer
    )(
        z_col, src_col, dst_col, dst_row, R,
        params["centers"], params["widths"],
        params["ext_elements"], params["z_tab"], ext_feat, params["ext_ms"],
        params["G_pack"], params["W01_all"], params["Wr_all"], params["b_all"],
        params["out_Wres"], params["out_bres"], params["out_Wlast"],
    )
    return {"atom_prop": out}


# ----------------------------- main -------------------------------------------
if __name__ == "__main__":
    key = jax.random.PRNGKey(0)
    k_r, k_e, k_f = jax.random.split(key, 3)

    R = 2.0 * jax.random.normal(k_r, (N_ATOMS, 3), dtype=jnp.float32)
    # atomic numbers; "5" is not in the CST element list -> exercises the unmatched branch
    Z = jnp.array([1, 6, 7, 8, 6, 17, 5, 9], dtype=jnp.int32)
    # random edges with self-loops excluded (canonical PhysNet message passing)
    src = jax.random.randint(k_e, (N_EDGES,), 0, N_ATOMS, dtype=jnp.int32)
    dst = (src + 1 + jax.random.randint(jax.random.fold_in(k_e, 1), (N_EDGES,), 0,
                                        N_ATOMS - 1, dtype=jnp.int32)) % N_ATOMS
    edge_index = jnp.stack([src, dst])
    ext_feat = jax.random.normal(k_f, (N_ATOMS, EXT_ATOM_DIM), dtype=jnp.float32)

    params = init_params(jax.random.PRNGKey(42))

    out = cst_shift_emb_forward(params, R, Z, edge_index, ext_feat)
    atom_prop = jax.block_until_ready(out["atom_prop"])

    assert atom_prop.shape == (N_ATOMS, N_OUTPUT)
    assert bool(jnp.all(jnp.isfinite(atom_prop)))
    print("KERNEL_OK")
</pallas_src>

<mosaic_0001>
module attributes {stable_mosaic.version = 11 : i64} {
  func.func @fused_forward_kernel(%arg0: memref<8x1xi32, #tpu.memory_space<vmem>>, %arg1: memref<16x1xi32, #tpu.memory_space<vmem>>, %arg2: memref<16x1xi32, #tpu.memory_space<vmem>>, %arg3: memref<1x16xi32, #tpu.memory_space<vmem>>, %arg4: memref<8x3xf32, #tpu.memory_space<vmem>>, %arg5: memref<1x16xf32, #tpu.memory_space<vmem>>, %arg6: memref<1x16xf32, #tpu.memory_space<vmem>>, %arg7: memref<1x8xi32, #tpu.memory_space<vmem>>, %arg8: memref<95x26xf32, #tpu.memory_space<vmem>>, %arg9: memref<8x8xf32, #tpu.memory_space<vmem>>, %arg10: memref<8x16xf32, #tpu.memory_space<vmem>>, %arg11: memref<16x64xf32, #tpu.memory_space<vmem>>, %arg12: memref<2x32x64xf32, #tpu.memory_space<vmem>>, %arg13: memref<2x5x32x32xf32, #tpu.memory_space<vmem>>, %arg14: memref<2x8x32xf32, #tpu.memory_space<vmem>>, %arg15: memref<2x32x32xf32, #tpu.memory_space<vmem>>, %arg16: memref<2x32xf32, #tpu.memory_space<vmem>>, %arg17: memref<32x1xf32, #tpu.memory_space<vmem>>, %arg18: memref<8x1xf32, #tpu.memory_space<vmem>>, %arg19: memref<8x32xf32, #tpu.memory_space<vmem>>) attributes {dimension_semantics = [], scalar_prefetch = 0 : i64, scratch_operands = 1 : i64, tpu.core_type = #tpu.core_type<tc>} {
    %c0 = arith.constant 0 : index
    %c0_0 = arith.constant 0 : index
    %0 = vector.load %arg0[%c0, %c0_0] : memref<8x1xi32, #tpu.memory_space<vmem>>, vector<8x1xi32>
    %c0_1 = arith.constant 0 : index
    %c0_2 = arith.constant 0 : index
    %1 = vector.load %arg1[%c0_1, %c0_2] : memref<16x1xi32, #tpu.memory_space<vmem>>, vector<16x1xi32>
    %c0_3 = arith.constant 0 : index
    %c0_4 = arith.constant 0 : index
    %2 = vector.load %arg2[%c0_3, %c0_4] : memref<16x1xi32, #tpu.memory_space<vmem>>, vector<16x1xi32>
    %c0_5 = arith.constant 0 : index
    %c0_6 = arith.constant 0 : index
    %3 = vector.load %arg3[%c0_5, %c0_6] : memref<1x16xi32, #tpu.memory_space<vmem>>, vector<1x16xi32>
    %4 = tpu.iota {dimensions = array<i32: 1>} : vector<16x8xi32>
    %5 = vector.broadcast %1 : vector<16x1xi32> to vector<16x8xi32>
    %6 = arith.cmpi eq, %4, %5 : vector<16x8xi32>
    %7 = arith.extui %6 : vector<16x8xi1> to vector<16x8xi32>
    %8 = arith.sitofp %7 : vector<16x8xi32> to vector<16x8xf32>
    %9 = tpu.iota {dimensions = array<i32: 1>} : vector<16x8xi32>
    %10 = vector.broadcast %2 : vector<16x1xi32> to vector<16x8xi32>
    %11 = arith.cmpi eq, %9, %10 : vector<16x8xi32>
    %12 = arith.extui %11 : vector<16x8xi1> to vector<16x8xi32>
    %13 = arith.sitofp %12 : vector<16x8xi32> to vector<16x8xf32>
    %14 = tpu.iota {dimensions = array<i32: 0>} : vector<8x16xi32>
    %15 = vector.broadcast %3 : vector<1x16xi32> to vector<8x16xi32>
    %16 = arith.cmpi eq, %14, %15 : vector<8x16xi32>
    %17 = arith.extui %16 : vector<8x16xi1> to vector<8x16xi32>
    %18 = arith.sitofp %17 : vector<8x16xi32> to vector<8x16xf32>
    %19 = tpu.iota {dimensions = array<i32: 1>} : vector<8x95xi32>
    %20 = vector.broadcast %0 : vector<8x1xi32> to vector<8x95xi32>
    %21 = arith.cmpi eq, %19, %20 : vector<8x95xi32>
    %22 = arith.extui %21 : vector<8x95xi1> to vector<8x95xi32>
    %23 = arith.sitofp %22 : vector<8x95xi32> to vector<8x95xf32>
    %c0_7 = arith.constant 0 : index
    %c0_8 = arith.constant 0 : index
    %24 = vector.load %arg7[%c0_7, %c0_8] : memref<1x8xi32, #tpu.memory_space<vmem>>, vector<1x8xi32>
    %25 = vector.broadcast %0 : vector<8x1xi32> to vector<8x8xi32>
    %26 = vector.broadcast %24 : vector<1x8xi32> to vector<8x8xi32>
    %27 = arith.cmpi eq, %25, %26 : vector<8x8xi32>
    %28 = arith.extui %27 : vector<8x8xi1> to vector<8x8xi32>
    %29 = arith.sitofp %28 : vector<8x8xi32> to vector<8x8xf32>
    %c0_9 = arith.constant 0 : index
    %c0_10 = arith.constant 0 : index
    %30 = vector.load %arg4[%c0_9, %c0_10] : memref<8x3xf32, #tpu.memory_space<vmem>>, vector<8x3xf32>
    %31 = arith.subf %8, %13 : vector<16x8xf32>
    %cst = arith.constant dense<0.000000e+00> : vector<16x3xf32>
    %32 = tpu.matmul %31, %30, %cst {dimension_numbers = #tpu.dot_dimension_numbers<[1], [0], [0], [1], [0, 0, 1, 1], [], []>} : vector<16x8xf32>, vector<8x3xf32>, vector<16x3xf32> -> vector<16x3xf32>
    %33 = arith.mulf %32, %32 : vector<16x3xf32>
    %cst_11 = arith.constant dense<0.000000e+00> : vector<16xf32>
    %34 = vector.multi_reduction <add>, %33, %cst_11 [1] : vector<16x3xf32> to vector<16xf32>
    %35 = vector.shape_cast %34 : vector<16xf32> to vector<16x1xf32>
    %cst_12 = arith.constant 9.99999996E-13 : f32
    %36 = vector.broadcast %cst_12 : f32 to vector<16x1xf32>
    %37 = arith.maximumf %35, %36 : vector<16x1xf32>
    %38 = math.sqrt %37 : vector<16x1xf32>
    %cst_13 = arith.constant 1.000000e+01 : f32
    %39 = vector.broadcast %cst_13 : f32 to vector<16x1xf32>
    %40 = arith.divf %38, %39 : vector<16x1xf32>
    %41 = arith.mulf %40, %40 : vector<16x1xf32>
    %42 = arith.mulf %41, %41 : vector<16x1xf32>
    %43 = arith.mulf %40, %42 : vector<16x1xf32>
    %cst_14 = arith.constant 6.000000e+00 : f32
    %44 = vector.broadcast %cst_14 : f32 to vector<16x1xf32>
    %45 = arith.mulf %44, %43 : vector<16x1xf32>
    %cst_15 = arith.constant 1.000000e+00 : f32
    %46 = vector.broadcast %cst_15 : f32 to vector<16x1xf32>
    %47 = arith.subf %46, %45 : vector<16x1xf32>
    %48 = arith.mulf %40, %40 : vector<16x1xf32>
    %49 = arith.mulf %48, %48 : vector<16x1xf32>
    %cst_16 = arith.constant 1.500000e+01 : f32
    %50 = vector.broadcast %cst_16 : f32 to vector<16x1xf32>
    %51 = arith.mulf %50, %49 : vector<16x1xf32>
    %52 = arith.addf %47, %51 : vector<16x1xf32>
    %53 = arith.mulf %40, %40 : vector<16x1xf32>
    %54 = arith.mulf %40, %53 : vector<16x1xf32>
    %cst_17 = arith.constant 1.000000e+01 : f32
    %55 = vector.broadcast %cst_17 : f32 to vector<16x1xf32>
    %56 = arith.mulf %55, %54 : vector<16x1xf32>
    %57 = arith.subf %52, %56 : vector<16x1xf32>
    %cst_18 = arith.constant 1.000000e+01 : f32
    %58 = vector.broadcast %cst_18 : f32 to vector<16x1xf32>
    %59 = arith.cmpf olt, %38, %58 : vector<16x1xf32>
    %cst_19 = arith.constant 0.000000e+00 : f32
    %60 = vector.broadcast %cst_19 : f32 to vector<16x1xf32>
    %61 = arith.select %59, %57, %60 : vector<16x1xi1>, vector<16x1xf32>
    %c0_20 = arith.constant 0 : index
    %c0_21 = arith.constant 0 : index
    %62 = vector.load %arg6[%c0_20, %c0_21] : memref<1x16xf32, #tpu.memory_space<vmem>>, vector<1x16xf32>
    %cst_22 = arith.constant 0.000000e+00 : f32
    %63 = vector.broadcast %cst_22 : f32 to vector<1x16xf32>
    %64 = arith.subf %63, %62 : vector<1x16xf32>
    %cst_23 = arith.constant 0.000000e+00 : f32
    %65 = vector.broadcast %cst_23 : f32 to vector<16x1xf32>
    %66 = arith.subf %65, %38 : vector<16x1xf32>
    %67 = math.exp %66 : vector<16x1xf32>
    %c0_24 = arith.constant 0 : index
    %c0_25 = arith.constant 0 : index
    %68 = vector.load %arg5[%c0_24, %c0_25] : memref<1x16xf32, #tpu.memory_space<vmem>>, vector<1x16xf32>
    %69 = vector.broadcast %67 : vector<16x1xf32> to vector<16x16xf32>
    %70 = vector.broadcast %68 : vector<1x16xf32> to vector<16x16xf32>
    %71 = arith.subf %69, %70 : vector<16x16xf32>
    %72 = arith.mulf %71, %71 : vector<16x16xf32>
    %73 = vector.broadcast %64 : vector<1x16xf32> to vector<16x16xf32>
    %74 = arith.mulf %73, %72 : vector<16x16xf32>
    %75 = math.exp %74 : vector<16x16xf32>
    %76 = vector.broadcast %61 : vector<16x1xf32> to vector<16x16xf32>
    %77 = arith.mulf %76, %75 : vector<16x16xf32>
    %c0_26 = arith.constant 0 : index
    %c0_27 = arith.constant 0 : index
    %78 = vector.load %arg11[%c0_26, %c0_27] : memref<16x64xf32, #tpu.memory_space<vmem>>, vector<16x64xf32>
    %cst_28 = arith.constant dense<0.000000e+00> : vector<16x64xf32>
    %79 = tpu.matmul %77, %78, %cst_28 {dimension_numbers = #tpu.dot_dimension_numbers<[1], [0], [0], [1], [0, 0, 1, 1], [], []>} : vector<16x16xf32>, vector<16x64xf32>, vector<16x64xf32> -> vector<16x64xf32>
    %c0_29 = arith.constant 0 : index
    %c0_30 = arith.constant 0 : index
    %80 = vector.load %arg8[%c0_29, %c0_30] : memref<95x26xf32, #tpu.memory_space<vmem>>, vector<95x26xf32>
    %cst_31 = arith.constant dense<0.000000e+00> : vector<8x26xf32>
    %81 = tpu.matmul %23, %80, %cst_31 {dimension_numbers = #tpu.dot_dimension_numbers<[1], [0], [0], [1], [0, 0, 1, 1], [], []>} : vector<8x95xf32>, vector<95x26xf32>, vector<8x26xf32> -> vector<8x26xf32>
    %82 = vector.extract_strided_slice %81 {offsets = [0, 0], sizes = [8, 24], strides = [1, 1]} : vector<8x26xf32> to vector<8x24xf32>
    %83 = vector.extract_strided_slice %81 {offsets = [0, 24], sizes = [8, 2], strides = [1, 1]} : vector<8x26xf32> to vector<8x2xf32>
    %c0_32 = arith.constant 0 : index
    %c0_33 = arith.constant 0 : index
    %84 = vector.load %arg10[%c0_32, %c0_33] : memref<8x16xf32, #tpu.memory_space<vmem>>, vector<8x16xf32>
    %cst_34 = arith.constant dense<0.000000e+00> : vector<8x16xf32>
    %85 = tpu.matmul %29, %84, %cst_34 {dimension_numbers = #tpu.dot_dimension_numbers<[1], [0], [0], [1], [0, 0, 1, 1], [], []>} : vector<8x8xf32>, vector<8x16xf32>, vector<8x16xf32> -> vector<8x16xf32>
    %86 = vector.extract_strided_slice %85 {offsets = [0, 0], sizes = [8, 8], strides = [1, 1]} : vector<8x16xf32> to vector<8x8xf32>
    %87 = vector.extract_strided_slice %85 {offsets = [0, 8], sizes = [8, 8], strides = [1, 1]} : vector<8x16xf32> to vector<8x8xf32>
    %cst_35 = arith.constant dense<0.000000e+00> : vector<8xf32>
    %88 = vector.multi_reduction <add>, %29, %cst_35 [1] : vector<8x8xf32> to vector<8xf32>
    %89 = vector.shape_cast %88 : vector<8xf32> to vector<8x1xf32>
    %cst_36 = arith.constant 5.000000e-01 : f32
    %90 = vector.broadcast %cst_36 : f32 to vector<8x1xf32>
    %91 = arith.cmpf ogt, %89, %90 : vector<8x1xf32>
    %c0_37 = arith.constant 0 : index
    %c0_38 = arith.constant 0 : index
    %92 = vector.load %arg9[%c0_37, %c0_38] : memref<8x8xf32, #tpu.memory_space<vmem>>, vector<8x8xf32>
    %93 = arith.subf %92, %86 : vector<8x8xf32>
    %cst_39 = arith.constant 1.000000e+00 : f32
    %94 = vector.shape_cast %91 : vector<8x1xi1> to vector<8x1xi1>
    %95 = vector.broadcast %94 : vector<8x1xi1> to vector<8x8xi1>
    %96 = vector.broadcast %cst_39 : f32 to vector<8x8xf32>
    %97 = arith.select %95, %87, %96 : vector<8x8xi1>, vector<8x8xf32>
    %98 = arith.divf %93, %97 : vector<8x8xf32>
    %99 = vector.shape_cast %91 : vector<8x1xi1> to vector<8x1xi1>
    %100 = vector.broadcast %99 : vector<8x1xi1> to vector<8x8xi1>
    %101 = arith.select %100, %98, %92 : vector<8x8xi1>, vector<8x8xf32>
    %c0_40 = arith.constant 0 : index
    %c0_41 = arith.constant 0 : index
    %102 = vector.load %arg19[%c0_40, %c0_41] : memref<8x32xf32, #tpu.memory_space<vmem>>, vector<8x24xf32>
    tpu.vector_store %arg19[%c0_40, %c0_41], %82 {strides = array<i32>} : memref<8x32xf32, #tpu.memory_space<vmem>>, vector<8x24xf32>,
    %c0_42 = arith.constant 0 : index
    %c24 = arith.constant 24 : index
    %103 = vector.load %arg19[%c0_42, %c24] : memref<8x32xf32, #tpu.memory_space<vmem>>, vector<8x8xf32>
    tpu.vector_store %arg19[%c0_42, %c24], %101 {strides = array<i32>} : memref<8x32xf32, #tpu.memory_space<vmem>>, vector<8x8xf32>,
    %c0_43 = arith.constant 0 : index
    %c0_44 = arith.constant 0 : index
    %104 = vector.load %arg19[%c0_43, %c0_44] : memref<8x32xf32, #tpu.memory_space<vmem>>, vector<8x32xf32>
    %c0_45 = arith.constant 0 : index
    %c0_46 = arith.constant 0 : index
    %c0_47 = arith.constant 0 : index
    %105 = vector.load %arg12[%c0_45, %c0_46, %c0_47] : memref<2x32x64xf32, #tpu.memory_space<vmem>>, vector<2x32x64xf32>
    %c0_48 = arith.constant 0 : index
    %c0_49 = arith.constant 0 : index
    %c0_50 = arith.constant 0 : index
    %c0_51 = arith.constant 0 : index
    %106 = vector.load %arg13[%c0_48, %c0_49, %c0_50, %c0_51] : memref<2x5x32x32xf32, #tpu.memory_space<vmem>>, vector<2x5x32x32xf32>
    %c0_52 = arith.constant 0 : index
    %c0_53 = arith.constant 0 : index
    %c0_54 = arith.constant 0 : index
    %107 = vector.load %arg14[%c0_52, %c0_53, %c0_54] : memref<2x8x32xf32, #tpu.memory_space<vmem>>, vector<2x8x32xf32>
    %108 = vector.extract_strided_slice %107 {offsets = [0, 0, 0], sizes = [1, 8, 32], strides = [1, 1, 1]} : vector<2x8x32xf32> to vector<1x8x32xf32>
    %109 = vector.shape_cast %108 : vector<1x8x32xf32> to vector<8x32xf32>
    %110 = vector.extract_strided_slice %106 {offsets = [0, 0, 0, 0], sizes = [1, 5, 32, 32], strides = [1, 1, 1, 1]} : vector<2x5x32x32xf32> to vector<1x5x32x32xf32>
    %111 = vector.shape_cast %110 : vector<1x5x32x32xf32> to vector<5x32x32xf32>
    %cst_55 = arith.constant 0.000000e+00 : f32
    %112 = vector.broadcast %cst_55 : f32 to vector<8x32xf32>
    %113 = arith.maximumf %104, %112 : vector<8x32xf32>
    %114 = math.absf %104 : vector<8x32xf32>
    %cst_56 = arith.constant 0.000000e+00 : f32
    %115 = vector.broadcast %cst_56 : f32 to vector<8x32xf32>
    %116 = arith.subf %115, %114 : vector<8x32xf32>
    %117 = math.exp %116 : vector<8x32xf32>
    %cst_57 = arith.constant 1.000000e+00 : f32
    %118 = vector.broadcast %cst_57 : f32 to vector<8x32xf32>
    %119 = arith.addf %118, %117 : vector<8x32xf32>
    %120 = math.log %119 : vector<8x32xf32>
    %121 = arith.addf %113, %120 : vector<8x32xf32>
    %cst_58 = arith.constant 0.693147182 : f32
    %122 = vector.broadcast %cst_58 : f32 to vector<8x32xf32>
    %123 = arith.subf %121, %122 : vector<8x32xf32>
    %124 = vector.extract_strided_slice %105 {offsets = [0, 0, 0], sizes = [1, 32, 64], strides = [1, 1, 1]} : vector<2x32x64xf32> to vector<1x32x64xf32>
    %125 = vector.shape_cast %124 : vector<1x32x64xf32> to vector<32x64xf32>
    %cst_59 = arith.constant dense<0.000000e+00> : vector<8x64xf32>
    %126 = tpu.matmul %123, %125, %cst_59 {dimension_numbers = #tpu.dot_dimension_numbers<[1], [0], [0], [1], [0, 0, 1, 1], [], []>} : vector<8x32xf32>, vector<32x64xf32>, vector<8x64xf32> -> vector<8x64xf32>
    %127 = vector.extract_strided_slice %126 {offsets = [0, 0], sizes = [8, 32], strides = [1, 1]} : vector<8x64xf32> to vector<8x32xf32>
    %128 = vector.extract_strided_slice %109 {offsets = [0, 0], sizes = [1, 32], strides = [1, 1]} : vector<8x32xf32> to vector<1x32xf32>
    %129 = vector.broadcast %128 : vector<1x32xf32> to vector<8x32xf32>
    %130 = arith.addf %127, %129 : vector<8x32xf32>
    %cst_60 = arith.constant 0.000000e+00 : f32
    %131 = vector.broadcast %cst_60 : f32 to vector<8x32xf32>
    %132 = arith.maximumf %130, %131 : vector<8x32xf32>
    %133 = math.absf %130 : vector<8x32xf32>
    %cst_61 = arith.constant 0.000000e+00 : f32
    %134 = vector.broadcast %cst_61 : f32 to vector<8x32xf32>
    %135 = arith.subf %134, %133 : vector<8x32xf32>
    %136 = math.exp %135 : vector<8x32xf32>
    %cst_62 = arith.constant 1.000000e+00 : f32
    %137 = vector.broadcast %cst_62 : f32 to vector<8x32xf32>
    %138 = arith.addf %137, %136 : vector<8x32xf32>
    %139 = math.log %138 : vector<8x32xf32>
    %140 = arith.addf %132, %139 : vector<8x32xf32>
    %cst_63 = arith.constant 0.693147182 : f32
    %141 = vector.broadcast %cst_63 : f32 to vector<8x32xf32>
    %142 = arith.subf %140, %141 : vector<8x32xf32>
    %143 = vector.extract_strided_slice %79 {offsets = [0, 0], sizes = [16, 32], strides = [1, 1]} : vector<16x64xf32> to vector<16x32xf32>
    %cst_64 = arith.constant dense<0.000000e+00> : vector<16x32xf32>
    %144 = tpu.matmul %8, %142, %cst_64 {dimension_numbers = #tpu.dot_dimension_numbers<[1], [0], [0], [1], [0, 0, 1, 1], [], []>} : vector<16x8xf32>, vector<8x32xf32>, vector<16x32xf32> -> vector<16x32xf32>
    %145 = arith.mulf %143, %144 : vector<16x32xf32>
    %cst_65 = arith.constant dense<0.000000e+00> : vector<8x32xf32>
    %146 = tpu.matmul %18, %145, %cst_65 {dimension_numbers = #tpu.dot_dimension_numbers<[1], [0], [0], [1], [0, 0, 1, 1], [], []>} : vector<8x16xf32>, vector<16x32xf32>, vector<8x32xf32> -> vector<8x32xf32>
    %147 = vector.extract_strided_slice %126 {offsets = [0, 32], sizes = [8, 32], strides = [1, 1]} : vector<8x64xf32> to vector<8x32xf32>
    %148 = vector.extract_strided_slice %109 {offsets = [1, 0], sizes = [1, 32], strides = [1, 1]} : vector<8x32xf32> to vector<1x32xf32>
    %149 = vector.broadcast %148 : vector<1x32xf32> to vector<8x32xf32>
    %150 = arith.addf %147, %149 : vector<8x32xf32>
    %151 = arith.addf %150, %146 : vector<8x32xf32>
    %cst_66 = arith.constant 0.000000e+00 : f32
    %152 = vector.broadcast %cst_66 : f32 to vector<8x32xf32>
    %153 = arith.maximumf %151, %152 : vector<8x32xf32>
    %154 = math.absf %151 : vector<8x32xf32>
    %cst_67 = arith.constant 0.000000e+00 : f32
    %155 = vector.broadcast %cst_67 : f32 to vector<8x32xf32>
    %156 = arith.subf %155, %154 : vector<8x32xf32>
    %157 = math.exp %156 : vector<8x32xf32>
    %cst_68 = arith.constant 1.000000e+00 : f32
    %158 = vector.broadcast %cst_68 : f32 to vector<8x32xf32>
    %159 = arith.addf %158, %157 : vector<8x32xf32>
    %160 = math.log %159 : vector<8x32xf32>
    %161 = arith.addf %153, %160 : vector<8x32xf32>
    %cst_69 = arith.constant 0.693147182 : f32
    %162 = vector.broadcast %cst_69 : f32 to vector<8x32xf32>
    %163 = arith.subf %161, %162 : vector<8x32xf32>
    %cst_70 = arith.constant 0.000000e+00 : f32
    %164 = vector.broadcast %cst_70 : f32 to vector<8x32xf32>
    %165 = arith.maximumf %163, %164 : vector<8x32xf32>
    %166 = math.absf %163 : vector<8x32xf32>
    %cst_71 = arith.constant 0.000000e+00 : f32
    %167 = vector.broadcast %cst_71 : f32 to vector<8x32xf32>
    %168 = arith.subf %167, %166 : vector<8x32xf32>
    %169 = math.exp %168 : vector<8x32xf32>
    %cst_72 = arith.constant 1.000000e+00 : f32
    %170 = vector.broadcast %cst_72 : f32 to vector<8x32xf32>
    %171 = arith.addf %170, %169 : vector<8x32xf32>
    %172 = math.log %171 : vector<8x32xf32>
    %173 = arith.addf %165, %172 : vector<8x32xf32>
    %cst_73 = arith.constant 0.693147182 : f32
    %174 = vector.broadcast %cst_73 : f32 to vector<8x32xf32>
    %175 = arith.subf %173, %174 : vector<8x32xf32>
    %176 = vector.extract_strided_slice %111 {offsets = [0, 0, 0], sizes = [1, 32, 32], strides = [1, 1, 1]} : vector<5x32x32xf32> to vector<1x32x32xf32>
    %177 = vector.shape_cast %176 : vector<1x32x32xf32> to vector<32x32xf32>
    %cst_74 = arith.constant dense<0.000000e+00> : vector<8x32xf32>
    %178 = tpu.matmul %175, %177, %cst_74 {dimension_numbers = #tpu.dot_dimension_numbers<[1], [0], [0], [1], [0, 0, 1, 1], [], []>} : vector<8x32xf32>, vector<32x32xf32>, vector<8x32xf32> -> vector<8x32xf32>
    %179 = vector.extract_strided_slice %109 {offsets = [2, 0], sizes = [1, 32], strides = [1, 1]} : vector<8x32xf32> to vector<1x32xf32>
    %180 = vector.broadcast %179 : vector<1x32xf32> to vector<8x32xf32>
    %181 = arith.addf %178, %180 : vector<8x32xf32>
    %cst_75 = arith.constant 0.000000e+00 : f32
    %182 = vector.broadcast %cst_75 : f32 to vector<8x32xf32>
    %183 = arith.maximumf %181, %182 : vector<8x32xf32>
    %184 = math.absf %181 : vector<8x32xf32>
    %cst_76 = arith.constant 0.000000e+00 : f32
    %185 = vector.broadcast %cst_76 : f32 to vector<8x32xf32>
    %186 = arith.subf %185, %184 : vector<8x32xf32>
    %187 = math.exp %186 : vector<8x32xf32>
    %cst_77 = arith.constant 1.000000e+00 : f32
    %188 = vector.broadcast %cst_77 : f32 to vector<8x32xf32>
    %189 = arith.addf %188, %187 : vector<8x32xf32>
    %190 = math.log %189 : vector<8x32xf32>
    %191 = arith.addf %183, %190 : vector<8x32xf32>
    %cst_78 = arith.constant 0.693147182 : f32
    %192 = vector.broadcast %cst_78 : f32 to vector<8x32xf32>
    %193 = arith.subf %191, %192 : vector<8x32xf32>
    %194 = vector.extract_strided_slice %111 {offsets = [1, 0, 0], sizes = [1, 32, 32], strides = [1, 1, 1]} : vector<5x32x32xf32> to vector<1x32x32xf32>
    %195 = vector.shape_cast %194 : vector<1x32x32xf32> to vector<32x32xf32>
    %cst_79 = arith.constant dense<0.000000e+00> : vector<8x32xf32>
    %196 = tpu.matmul %193, %195, %cst_79 {dimension_numbers = #tpu.dot_dimension_numbers<[1], [0], [0], [1], [0, 0, 1, 1], [], []>} : vector<8x32xf32>, vector<32x32xf32>, vector<8x32xf32> -> vector<8x32xf32>
    %197 = arith.addf %163, %196 : vector<8x32xf32>
    %198 = vector.extract_strided_slice %109 {offsets = [3, 0], sizes = [1, 32], strides = [1, 1]} : vector<8x32xf32> to vector<1x32xf32>
    %199 = vector.broadcast %198 : vector<1x32xf32> to vector<8x32xf32>
    %200 = arith.addf %197, %199 : vector<8x32xf32>
    %201 = vector.extract_strided_slice %109 {offsets = [7, 0], sizes = [1, 32], strides = [1, 1]} : vector<8x32xf32> to vector<1x32xf32>
    %202 = vector.broadcast %201 : vector<1x32xf32> to vector<8x32xf32>
    %203 = arith.mulf %202, %104 : vector<8x32xf32>
    %cst_80 = arith.constant 0.000000e+00 : f32
    %204 = vector.broadcast %cst_80 : f32 to vector<8x32xf32>
    %205 = arith.maximumf %200, %204 : vector<8x32xf32>
    %206 = math.absf %200 : vector<8x32xf32>
    %cst_81 = arith.constant 0.000000e+00 : f32
    %207 = vector.broadcast %cst_81 : f32 to vector<8x32xf32>
    %208 = arith.subf %207, %206 : vector<8x32xf32>
    %209 = math.exp %208 : vector<8x32xf32>
    %cst_82 = arith.constant 1.000000e+00 : f32
    %210 = vector.broadcast %cst_82 : f32 to vector<8x32xf32>
    %211 = arith.addf %210, %209 : vector<8x32xf32>
    %212 = math.log %211 : vector<8x32xf32>
    %213 = arith.addf %205, %212 : vector<8x32xf32>
    %cst_83 = arith.constant 0.693147182 : f32
    %214 = vector.broadcast %cst_83 : f32 to vector<8x32xf32>
    %215 = arith.subf %213, %214 : vector<8x32xf32>
    %216 = vector.extract_strided_slice %111 {offsets = [2, 0, 0], sizes = [1, 32, 32], strides = [1, 1, 1]} : vector<5x32x32xf32> to vector<1x32x32xf32>
    %217 = vector.shape_cast %216 : vector<1x32x32xf32> to vector<32x32xf32>
    %cst_84 = arith.constant dense<0.000000e+00> : vector<8x32xf32>
    %218 = tpu.matmul %215, %217, %cst_84 {dimension_numbers = #tpu.dot_dimension_numbers<[1], [0], [0], [1], [0, 0, 1, 1], [], []>} : vector<8x32xf32>, vector<32x32xf32>, vector<8x32xf32> -> vector<8x32xf32>
    %219 = arith.addf %203, %218 : vector<8x32xf32>
    %220 = vector.extract_strided_slice %109 {offsets = [4, 0], sizes = [1, 32], strides = [1, 1]} : vector<8x32xf32> to vector<1x32xf32>
    %221 = vector.broadcast %220 : vector<1x32xf32> to vector<8x32xf32>
    %222 = arith.addf %219, %221 : vector<8x32xf32>
    %cst_85 = arith.constant 0.000000e+00 : f32
    %223 = vector.broadcast %cst_85 : f32 to vector<8x32xf32>
    %224 = arith.maximumf %222, %223 : vector<8x32xf32>
    %225 = math.absf %222 : vector<8x32xf32>
    %cst_86 = arith.constant 0.000000e+00 : f32
    %226 = vector.broadcast %cst_86 : f32 to vector<8x32xf32>
    %227 = arith.subf %226, %225 : vector<8x32xf32>
    %228 = math.exp %227 : vector<8x32xf32>
    %cst_87 = arith.constant 1.000000e+00 : f32
    %229 = vector.broadcast %cst_87 : f32 to vector<8x32xf32>
    %230 = arith.addf %229, %228 : vector<8x32xf32>
    %231 = math.log %230 : vector<8x32xf32>
    %232 = arith.addf %224, %231 : vector<8x32xf32>
    %cst_88 = arith.constant 0.693147182 : f32
    %233 = vector.broadcast %cst_88 : f32 to vector<8x32xf32>
    %234 = arith.subf %232, %233 : vector<8x32xf32>
    %235 = vector.extract_strided_slice %111 {offsets = [3, 0, 0], sizes = [1, 32, 32], strides = [1, 1, 1]} : vector<5x32x32xf32> to vector<1x32x32xf32>
    %236 = vector.shape_cast %235 : vector<1x32x32xf32> to vector<32x32xf32>
    %cst_89 = arith.constant dense<0.000000e+00> : vector<8x32xf32>
    %237 = tpu.matmul %234, %236, %cst_89 {dimension_numbers = #tpu.dot_dimension_numbers<[1], [0], [0], [1], [0, 0, 1, 1], [], []>} : vector<8x32xf32>, vector<32x32xf32>, vector<8x32xf32> -> vector<8x32xf32>
    %238 = vector.extract_strided_slice %109 {offsets = [5, 0], sizes = [1, 32], strides = [1, 1]} : vector<8x32xf32> to vector<1x32xf32>
    %239 = vector.broadcast %238 : vector<1x32xf32> to vector<8x32xf32>
    %240 = arith.addf %237, %239 : vector<8x32xf32>
    %cst_90 = arith.constant 0.000000e+00 : f32
    %241 = vector.broadcast %cst_90 : f32 to vector<8x32xf32>
    %242 = arith.maximumf %240, %241 : vector<8x32xf32>
    %243 = math.absf %240 : vector<8x32xf32>
    %cst_91 = arith.constant 0.000000e+00 : f32
    %244 = vector.broadcast %cst_91 : f32 to vector<8x32xf32>
    %245 = arith.subf %244, %243 : vector<8x32xf32>
    %246 = math.exp %245 : vector<8x32xf32>
    %cst_92 = arith.constant 1.000000e+00 : f32
    %247 = vector.broadcast %cst_92 : f32 to vector<8x32xf32>
    %248 = arith.addf %247, %246 : vector<8x32xf32>
    %249 = math.log %248 : vector<8x32xf32>
    %250 = arith.addf %242, %249 : vector<8x32xf32>
    %cst_93 = arith.constant 0.693147182 : f32
    %251 = vector.broadcast %cst_93 : f32 to vector<8x32xf32>
    %252 = arith.subf %250, %251 : vector<8x32xf32>
    %253 = vector.extract_strided_slice %111 {offsets = [4, 0, 0], sizes = [1, 32, 32], strides = [1, 1, 1]} : vector<5x32x32xf32> to vector<1x32x32xf32>
    %254 = vector.shape_cast %253 : vector<1x32x32xf32> to vector<32x32xf32>
    %cst_94 = arith.constant dense<0.000000e+00> : vector<8x32xf32>
    %255 = tpu.matmul %252, %254, %cst_94 {dimension_numbers = #tpu.dot_dimension_numbers<[1], [0], [0], [1], [0, 0, 1, 1], [], []>} : vector<8x32xf32>, vector<32x32xf32>, vector<8x32xf32> -> vector<8x32xf32>
    %256 = arith.addf %222, %255 : vector<8x32xf32>
    %257 = vector.extract_strided_slice %109 {offsets = [6, 0], sizes = [1, 32], strides = [1, 1]} : vector<8x32xf32> to vector<1x32xf32>
    %258 = vector.broadcast %257 : vector<1x32xf32> to vector<8x32xf32>
    %259 = arith.addf %256, %258 : vector<8x32xf32>
    %260 = vector.extract_strided_slice %107 {offsets = [1, 0, 0], sizes = [1, 8, 32], strides = [1, 1, 1]} : vector<2x8x32xf32> to vector<1x8x32xf32>
    %261 = vector.shape_cast %260 : vector<1x8x32xf32> to vector<8x32xf32>
    %262 = vector.extract_strided_slice %106 {offsets = [1, 0, 0, 0], sizes = [1, 5, 32, 32], strides = [1, 1, 1, 1]} : vector<2x5x32x32xf32> to vector<1x5x32x32xf32>
    %263 = vector.shape_cast %262 : vector<1x5x32x32xf32> to vector<5x32x32xf32>
    %cst_95 = arith.constant 0.000000e+00 : f32
    %264 = vector.broadcast %cst_95 : f32 to vector<8x32xf32>
    %265 = arith.maximumf %259, %264 : vector<8x32xf32>
    %266 = math.absf %259 : vector<8x32xf32>
    %cst_96 = arith.constant 0.000000e+00 : f32
    %267 = vector.broadcast %cst_96 : f32 to vector<8x32xf32>
    %268 = arith.subf %267, %266 : vector<8x32xf32>
    %269 = math.exp %268 : vector<8x32xf32>
    %cst_97 = arith.constant 1.000000e+00 : f32
    %270 = vector.broadcast %cst_97 : f32 to vector<8x32xf32>
    %271 = arith.addf %270, %269 : vector<8x32xf32>
    %272 = math.log %271 : vector<8x32xf32>
    %273 = arith.addf %265, %272 : vector<8x32xf32>
    %cst_98 = arith.constant 0.693147182 : f32
    %274 = vector.broadcast %cst_98 : f32 to vector<8x32xf32>
    %275 = arith.subf %273, %274 : vector<8x32xf32>
    %276 = vector.extract_strided_slice %105 {offsets = [1, 0, 0], sizes = [1, 32, 64], strides = [1, 1, 1]} : vector<2x32x64xf32> to vector<1x32x64xf32>
    %277 = vector.shape_cast %276 : vector<1x32x64xf32> to vector<32x64xf32>
    %cst_99 = arith.constant dense<0.000000e+00> : vector<8x64xf32>
    %278 = tpu.matmul %275, %277, %cst_99 {dimension_numbers = #tpu.dot_dimension_numbers<[1], [0], [0], [1], [0, 0, 1, 1], [], []>} : vector<8x32xf32>, vector<32x64xf32>, vector<8x64xf32> -> vector<8x64xf32>
    %279 = vector.extract_strided_slice %278 {offsets = [0, 0], sizes = [8, 32], strides = [1, 1]} : vector<8x64xf32> to vector<8x32xf32>
    %280 = vector.extract_strided_slice %261 {offsets = [0, 0], sizes = [1, 32], strides = [1, 1]} : vector<8x32xf32> to vector<1x32xf32>
    %281 = vector.broadcast %280 : vector<1x32xf32> to vector<8x32xf32>
    %282 = arith.addf %279, %281 : vector<8x32xf32>
    %cst_100 = arith.constant 0.000000e+00 : f32
    %283 = vector.broadcast %cst_100 : f32 to vector<8x32xf32>
    %284 = arith.maximumf %282, %283 : vector<8x32xf32>
    %285 = math.absf %282 : vector<8x32xf32>
    %cst_101 = arith.constant 0.000000e+00 : f32
    %286 = vector.broadcast %cst_101 : f32 to vector<8x32xf32>
    %287 = arith.subf %286, %285 : vector<8x32xf32>
    %288 = math.exp %287 : vector<8x32xf32>
    %cst_102 = arith.constant 1.000000e+00 : f32
    %289 = vector.broadcast %cst_102 : f32 to vector<8x32xf32>
    %290 = arith.addf %289, %288 : vector<8x32xf32>
    %291 = math.log %290 : vector<8x32xf32>
    %292 = arith.addf %284, %291 : vector<8x32xf32>
    %cst_103 = arith.constant 0.693147182 : f32
    %293 = vector.broadcast %cst_103 : f32 to vector<8x32xf32>
    %294 = arith.subf %292, %293 : vector<8x32xf32>
    %295 = vector.extract_strided_slice %79 {offsets = [0, 32], sizes = [16, 32], strides = [1, 1]} : vector<16x64xf32> to vector<16x32xf32>
    %cst_104 = arith.constant dense<0.000000e+00> : vector<16x32xf32>
    %296 = tpu.matmul %8, %294, %cst_104 {dimension_numbers = #tpu.dot_dimension_numbers<[1], [0], [0], [1], [0, 0, 1, 1], [], []>} : vector<16x8xf32>, vector<8x32xf32>, vector<16x32xf32> -> vector<16x32xf32>
    %297 = arith.mulf %295, %296 : vector<16x32xf32>
    %cst_105 = arith.constant dense<0.000000e+00> : vector<8x32xf32>
    %298 = tpu.matmul %18, %297, %cst_105 {dimension_numbers = #tpu.dot_dimension_numbers<[1], [0], [0], [1], [0, 0, 1, 1], [], []>} : vector<8x16xf32>, vector<16x32xf32>, vector<8x32xf32> -> vector<8x32xf32>
    %299 = vector.extract_strided_slice %278 {offsets = [0, 32], sizes = [8, 32], strides = [1, 1]} : vector<8x64xf32> to vector<8x32xf32>
    %300 = vector.extract_strided_slice %261 {offsets = [1, 0], sizes = [1, 32], strides = [1, 1]} : vector<8x32xf32> to vector<1x32xf32>
    %301 = vector.broadcast %300 : vector<1x32xf32> to vector<8x32xf32>
    %302 = arith.addf %299, %301 : vector<8x32xf32>
    %303 = arith.addf %302, %298 : vector<8x32xf32>
    %cst_106 = arith.constant 0.000000e+00 : f32
    %304 = vector.broadcast %cst_106 : f32 to vector<8x32xf32>
    %305 = arith.maximumf %303, %304 : vector<8x32xf32>
    %306 = math.absf %303 : vector<8x32xf32>
    %cst_107 = arith.constant 0.000000e+00 : f32
    %307 = vector.broadcast %cst_107 : f32 to vector<8x32xf32>
    %308 = arith.subf %307, %306 : vector<8x32xf32>
    %309 = math.exp %308 : vector<8x32xf32>
    %cst_108 = arith.constant 1.000000e+00 : f32
    %310 = vector.broadcast %cst_108 : f32 to vector<8x32xf32>
    %311 = arith.addf %310, %309 : vector<8x32xf32>
    %312 = math.log %311 : vector<8x32xf32>
    %313 = arith.addf %305, %312 : vector<8x32xf32>
    %cst_109 = arith.constant 0.693147182 : f32
    %314 = vector.broadcast %cst_109 : f32 to vector<8x32xf32>
    %315 = arith.subf %313, %314 : vector<8x32xf32>
    %cst_110 = arith.constant 0.000000e+00 : f32
    %316 = vector.broadcast %cst_110 : f32 to vector<8x32xf32>
    %317 = arith.maximumf %315, %316 : vector<8x32xf32>
    %318 = math.absf %315 : vector<8x32xf32>
    %cst_111 = arith.constant 0.000000e+00 : f32
    %319 = vector.broadcast %cst_111 : f32 to vector<8x32xf32>
    %320 = arith.subf %319, %318 : vector<8x32xf32>
    %321 = math.exp %320 : vector<8x32xf32>
    %cst_112 = arith.constant 1.000000e+00 : f32
    %322 = vector.broadcast %cst_112 : f32 to vector<8x32xf32>
    %323 = arith.addf %322, %321 : vector<8x32xf32>
    %324 = math.log %323 : vector<8x32xf32>
    %325 = arith.addf %317, %324 : vector<8x32xf32>
    %cst_113 = arith.constant 0.693147182 : f32
    %326 = vector.broadcast %cst_113 : f32 to vector<8x32xf32>
    %327 = arith.subf %325, %326 : vector<8x32xf32>
    %328 = vector.extract_strided_slice %263 {offsets = [0, 0, 0], sizes = [1, 32, 32], strides = [1, 1, 1]} : vector<5x32x32xf32> to vector<1x32x32xf32>
    %329 = vector.shape_cast %328 : vector<1x32x32xf32> to vector<32x32xf32>
    %cst_114 = arith.constant dense<0.000000e+00> : vector<8x32xf32>
    %330 = tpu.matmul %327, %329, %cst_114 {dimension_numbers = #tpu.dot_dimension_numbers<[1], [0], [0], [1], [0, 0, 1, 1], [], []>} : vector<8x32xf32>, vector<32x32xf32>, vector<8x32xf32> -> vector<8x32xf32>
    %331 = vector.extract_strided_slice %261 {offsets = [2, 0], sizes = [1, 32], strides = [1, 1]} : vector<8x32xf32> to vector<1x32xf32>
    %332 = vector.broadcast %331 : vector<1x32xf32> to vector<8x32xf32>
    %333 = arith.addf %330, %332 : vector<8x32xf32>
    %cst_115 = arith.constant 0.000000e+00 : f32
    %334 = vector.broadcast %cst_115 : f32 to vector<8x32xf32>
    %335 = arith.maximumf %333, %334 : vector<8x32xf32>
    %336 = math.absf %333 : vector<8x32xf32>
    %cst_116 = arith.constant 0.000000e+00 : f32
    %337 = vector.broadcast %cst_116 : f32 to vector<8x32xf32>
    %338 = arith.subf %337, %336 : vector<8x32xf32>
    %339 = math.exp %338 : vector<8x32xf32>
    %cst_117 = arith.constant 1.000000e+00 : f32
    %340 = vector.broadcast %cst_117 : f32 to vector<8x32xf32>
    %341 = arith.addf %340, %339 : vector<8x32xf32>
    %342 = math.log %341 : vector<8x32xf32>
    %343 = arith.addf %335, %342 : vector<8x32xf32>
    %cst_118 = arith.constant 0.693147182 : f32
    %344 = vector.broadcast %cst_118 : f32 to vector<8x32xf32>
    %345 = arith.subf %343, %344 : vector<8x32xf32>
    %346 = vector.extract_strided_slice %263 {offsets = [1, 0, 0], sizes = [1, 32, 32], strides = [1, 1, 1]} : vector<5x32x32xf32> to vector<1x32x32xf32>
    %347 = vector.shape_cast %346 : vector<1x32x32xf32> to vector<32x32xf32>
    %cst_119 = arith.constant dense<0.000000e+00> : vector<8x32xf32>
    %348 = tpu.matmul %345, %347, %cst_119 {dimension_numbers = #tpu.dot_dimension_numbers<[1], [0], [0], [1], [0, 0, 1, 1], [], []>} : vector<8x32xf32>, vector<32x32xf32>, vector<8x32xf32> -> vector<8x32xf32>
    %349 = arith.addf %315, %348 : vector<8x32xf32>
    %350 = vector.extract_strided_slice %261 {offsets = [3, 0], sizes = [1, 32], strides = [1, 1]} : vector<8x32xf32> to vector<1x32xf32>
    %351 = vector.broadcast %350 : vector<1x32xf32> to vector<8x32xf32>
    %352 = arith.addf %349, %351 : vector<8x32xf32>
    %353 = vector.extract_strided_slice %261 {offsets = [7, 0], sizes = [1, 32], strides = [1, 1]} : vector<8x32xf32> to vector<1x32xf32>
    %354 = vector.broadcast %353 : vector<1x32xf32> to vector<8x32xf32>
    %355 = arith.mulf %354, %259 : vector<8x32xf32>
    %cst_120 = arith.constant 0.000000e+00 : f32
    %356 = vector.broadcast %cst_120 : f32 to vector<8x32xf32>
    %357 = arith.maximumf %352, %356 : vector<8x32xf32>
    %358 = math.absf %352 : vector<8x32xf32>
    %cst_121 = arith.constant 0.000000e+00 : f32
    %359 = vector.broadcast %cst_121 : f32 to vector<8x32xf32>
    %360 = arith.subf %359, %358 : vector<8x32xf32>
    %361 = math.exp %360 : vector<8x32xf32>
    %cst_122 = arith.constant 1.000000e+00 : f32
    %362 = vector.broadcast %cst_122 : f32 to vector<8x32xf32>
    %363 = arith.addf %362, %361 : vector<8x32xf32>
    %364 = math.log %363 : vector<8x32xf32>
    %365 = arith.addf %357, %364 : vector<8x32xf32>
    %cst_123 = arith.constant 0.693147182 : f32
    %366 = vector.broadcast %cst_123 : f32 to vector<8x32xf32>
    %367 = arith.subf %365, %366 : vector<8x32xf32>
    %368 = vector.extract_strided_slice %263 {offsets = [2, 0, 0], sizes = [1, 32, 32], strides = [1, 1, 1]} : vector<5x32x32xf32> to vector<1x32x32xf32>
    %369 = vector.shape_cast %368 : vector<1x32x32xf32> to vector<32x32xf32>
    %cst_124 = arith.constant dense<0.000000e+00> : vector<8x32xf32>
    %370 = tpu.matmul %367, %369, %cst_124 {dimension_numbers = #tpu.dot_dimension_numbers<[1], [0], [0], [1], [0, 0, 1, 1], [], []>} : vector<8x32xf32>, vector<32x32xf32>, vector<8x32xf32> -> vector<8x32xf32>
    %371 = arith.addf %355, %370 : vector<8x32xf32>
    %372 = vector.extract_strided_slice %261 {offsets = [4, 0], sizes = [1, 32], strides = [1, 1]} : vector<8x32xf32> to vector<1x32xf32>
    %373 = vector.broadcast %372 : vector<1x32xf32> to vector<8x32xf32>
    %374 = arith.addf %371, %373 : vector<8x32xf32>
    %cst_125 = arith.constant 0.000000e+00 : f32
    %375 = vector.broadcast %cst_125 : f32 to vector<8x32xf32>
    %376 = arith.maximumf %374, %375 : vector<8x32xf32>
    %377 = math.absf %374 : vector<8x32xf32>
    %cst_126 = arith.constant 0.000000e+00 : f32
    %378 = vector.broadcast %cst_126 : f32 to vector<8x32xf32>
    %379 = arith.subf %378, %377 : vector<8x32xf32>
    %380 = math.exp %379 : vector<8x32xf32>
    %cst_127 = arith.constant 1.000000e+00 : f32
    %381 = vector.broadcast %cst_127 : f32 to vector<8x32xf32>
    %382 = arith.addf %381, %380 : vector<8x32xf32>
    %383 = math.log %382 : vector<8x32xf32>
    %384 = arith.addf %376, %383 : vector<8x32xf32>
    %cst_128 = arith.constant 0.693147182 : f32
    %385 = vector.broadcast %cst_128 : f32 to vector<8x32xf32>
    %386 = arith.subf %384, %385 : vector<8x32xf32>
    %387 = vector.extract_strided_slice %263 {offsets = [3, 0, 0], sizes = [1, 32, 32], strides = [1, 1, 1]} : vector<5x32x32xf32> to vector<1x32x32xf32>
    %388 = vector.shape_cast %387 : vector<1x32x32xf32> to vector<32x32xf32>
    %cst_129 = arith.constant dense<0.000000e+00> : vector<8x32xf32>
    %389 = tpu.matmul %386, %388, %cst_129 {dimension_numbers = #tpu.dot_dimension_numbers<[1], [0], [0], [1], [0, 0, 1, 1], [], []>} : vector<8x32xf32>, vector<32x32xf32>, vector<8x32xf32> -> vector<8x32xf32>
    %390 = vector.extract_strided_slice %261 {offsets = [5, 0], sizes = [1, 32], strides = [1, 1]} : vector<8x32xf32> to vector<1x32xf32>
    %391 = vector.broadcast %390 : vector<1x32xf32> to vector<8x32xf32>
    %392 = arith.addf %389, %391 : vector<8x32xf32>
    %cst_130 = arith.constant 0.000000e+00 : f32
    %393 = vector.broadcast %cst_130 : f32 to vector<8x32xf32>
    %394 = arith.maximumf %392, %393 : vector<8x32xf32>
    %395 = math.absf %392 : vector<8x32xf32>
    %cst_131 = arith.constant 0.000000e+00 : f32
    %396 = vector.broadcast %cst_131 : f32 to vector<8x32xf32>
    %397 = arith.subf %396, %395 : vector<8x32xf32>
    %398 = math.exp %397 : vector<8x32xf32>
    %cst_132 = arith.constant 1.000000e+00 : f32
    %399 = vector.broadcast %cst_132 : f32 to vector<8x32xf32>
    %400 = arith.addf %399, %398 : vector<8x32xf32>
    %401 = math.log %400 : vector<8x32xf32>
    %402 = arith.addf %394, %401 : vector<8x32xf32>
    %cst_133 = arith.constant 0.693147182 : f32
    %403 = vector.broadcast %cst_133 : f32 to vector<8x32xf32>
    %404 = arith.subf %402, %403 : vector<8x32xf32>
    %405 = vector.extract_strided_slice %263 {offsets = [4, 0, 0], sizes = [1, 32, 32], strides = [1, 1, 1]} : vector<5x32x32xf32> to vector<1x32x32xf32>
    %406 = vector.shape_cast %405 : vector<1x32x32xf32> to vector<32x32xf32>
    %cst_134 = arith.constant dense<0.000000e+00> : vector<8x32xf32>
    %407 = tpu.matmul %404, %406, %cst_134 {dimension_numbers = #tpu.dot_dimension_numbers<[1], [0], [0], [1], [0, 0, 1, 1], [], []>} : vector<8x32xf32>, vector<32x32xf32>, vector<8x32xf32> -> vector<8x32xf32>
    %408 = arith.addf %374, %407 : vector<8x32xf32>
    %409 = vector.extract_strided_slice %261 {offsets = [6, 0], sizes = [1, 32], strides = [1, 1]} : vector<8x32xf32> to vector<1x32xf32>
    %410 = vector.broadcast %409 : vector<1x32xf32> to vector<8x32xf32>
    %411 = arith.addf %408, %410 : vector<8x32xf32>
    %c0_135 = arith.constant 0 : index
    %c0_136 = arith.constant 0 : index
    %c0_137 = arith.constant 0 : index
    %412 = vector.load %arg15[%c0_135, %c0_136, %c0_137] : memref<2x32x32xf32, #tpu.memory_space<vmem>>, vector<2x32x32xf32>
    %c0_138 = arith.constant 0 : index
    %c0_139 = arith.constant 0 : index
    %413 = vector.load %arg16[%c0_138, %c0_139] : memref<2x32xf32, #tpu.memory_space<vmem>>, vector<2x32xf32>
    %cst_140 = arith.constant 0.000000e+00 : f32
    %414 = vector.broadcast %cst_140 : f32 to vector<8x32xf32>
    %415 = arith.maximumf %411, %414 : vector<8x32xf32>
    %416 = math.absf %411 : vector<8x32xf32>
    %cst_141 = arith.constant 0.000000e+00 : f32
    %417 = vector.broadcast %cst_141 : f32 to vector<8x32xf32>
    %418 = arith.subf %417, %416 : vector<8x32xf32>
    %419 = math.exp %418 : vector<8x32xf32>
    %cst_142 = arith.constant 1.000000e+00 : f32
    %420 = vector.broadcast %cst_142 : f32 to vector<8x32xf32>
    %421 = arith.addf %420, %419 : vector<8x32xf32>
    %422 = math.log %421 : vector<8x32xf32>
    %423 = arith.addf %415, %422 : vector<8x32xf32>
    %cst_143 = arith.constant 0.693147182 : f32
    %424 = vector.broadcast %cst_143 : f32 to vector<8x32xf32>
    %425 = arith.subf %423, %424 : vector<8x32xf32>
    %426 = vector.extract_strided_slice %412 {offsets = [0, 0, 0], sizes = [1, 32, 32], strides = [1, 1, 1]} : vector<2x32x32xf32> to vector<1x32x32xf32>
    %427 = vector.shape_cast %426 : vector<1x32x32xf32> to vector<32x32xf32>
    %cst_144 = arith.constant dense<0.000000e+00> : vector<8x32xf32>
    %428 = tpu.matmul %425, %427, %cst_144 {dimension_numbers = #tpu.dot_dimension_numbers<[1], [0], [0], [1], [0, 0, 1, 1], [], []>} : vector<8x32xf32>, vector<32x32xf32>, vector<8x32xf32> -> vector<8x32xf32>
    %429 = vector.extract_strided_slice %413 {offsets = [0, 0], sizes = [1, 32], strides = [1, 1]} : vector<2x32xf32> to vector<1x32xf32>
    %430 = vector.broadcast %429 : vector<1x32xf32> to vector<8x32xf32>
    %431 = arith.addf %428, %430 : vector<8x32xf32>
    %cst_145 = arith.constant 0.000000e+00 : f32
    %432 = vector.broadcast %cst_145 : f32 to vector<8x32xf32>
    %433 = arith.maximumf %431, %432 : vector<8x32xf32>
    %434 = math.absf %431 : vector<8x32xf32>
    %cst_146 = arith.constant 0.000000e+00 : f32
    %435 = vector.broadcast %cst_146 : f32 to vector<8x32xf32>
    %436 = arith.subf %435, %434 : vector<8x32xf32>
    %437 = math.exp %436 : vector<8x32xf32>
    %cst_147 = arith.constant 1.000000e+00 : f32
    %438 = vector.broadcast %cst_147 : f32 to vector<8x32xf32>
    %439 = arith.addf %438, %437 : vector<8x32xf32>
    %440 = math.log %439 : vector<8x32xf32>
    %441 = arith.addf %433, %440 : vector<8x32xf32>
    %cst_148 = arith.constant 0.693147182 : f32
    %442 = vector.broadcast %cst_148 : f32 to vector<8x32xf32>
    %443 = arith.subf %441, %442 : vector<8x32xf32>
    %444 = vector.extract_strided_slice %412 {offsets = [1, 0, 0], sizes = [1, 32, 32], strides = [1, 1, 1]} : vector<2x32x32xf32> to vector<1x32x32xf32>
    %445 = vector.shape_cast %444 : vector<1x32x32xf32> to vector<32x32xf32>
    %cst_149 = arith.constant dense<0.000000e+00> : vector<8x32xf32>
    %446 = tpu.matmul %443, %445, %cst_149 {dimension_numbers = #tpu.dot_dimension_numbers<[1], [0], [0], [1], [0, 0, 1, 1], [], []>} : vector<8x32xf32>, vector<32x32xf32>, vector<8x32xf32> -> vector<8x32xf32>
    %447 = arith.addf %411, %446 : vector<8x32xf32>
    %448 = vector.extract_strided_slice %413 {offsets = [1, 0], sizes = [1, 32], strides = [1, 1]} : vector<2x32xf32> to vector<1x32xf32>
    %449 = vector.broadcast %448 : vector<1x32xf32> to vector<8x32xf32>
    %450 = arith.addf %447, %449 : vector<8x32xf32>
    %cst_150 = arith.constant 0.000000e+00 : f32
    %451 = vector.broadcast %cst_150 : f32 to vector<8x32xf32>
    %452 = arith.maximumf %450, %451 : vector<8x32xf32>
    %453 = math.absf %450 : vector<8x32xf32>
    %cst_151 = arith.constant 0.000000e+00 : f32
    %454 = vector.broadcast %cst_151 : f32 to vector<8x32xf32>
    %455 = arith.subf %454, %453 : vector<8x32xf32>
    %456 = math.exp %455 : vector<8x32xf32>
    %cst_152 = arith.constant 1.000000e+00 : f32
    %457 = vector.broadcast %cst_152 : f32 to vector<8x32xf32>
    %458 = arith.addf %457, %456 : vector<8x32xf32>
    %459 = math.log %458 : vector<8x32xf32>
    %460 = arith.addf %452, %459 : vector<8x32xf32>
    %cst_153 = arith.constant 0.693147182 : f32
    %461 = vector.broadcast %cst_153 : f32 to vector<8x32xf32>
    %462 = arith.subf %460, %461 : vector<8x32xf32>
    %c0_154 = arith.constant 0 : index
    %c0_155 = arith.constant 0 : index
    %463 = vector.load %arg17[%c0_154, %c0_155] : memref<32x1xf32, #tpu.memory_space<vmem>>, vector<32x1xf32>
    %cst_156 = arith.constant dense<0.000000e+00> : vector<8x1xf32>
    %464 = tpu.matmul %462, %463, %cst_156 {dimension_numbers = #tpu.dot_dimension_numbers<[1], [0], [0], [1], [0, 0, 1, 1], [], []>} : vector<8x32xf32>, vector<32x1xf32>, vector<8x1xf32> -> vector<8x1xf32>
    %465 = vector.extract_strided_slice %83 {offsets = [0, 0], sizes = [8, 1], strides = [1, 1]} : vector<8x2xf32> to vector<8x1xf32>
    %466 = arith.mulf %465, %464 : vector<8x1xf32>
    %467 = vector.extract_strided_slice %83 {offsets = [0, 1], sizes = [8, 1], strides = [1, 1]} : vector<8x2xf32> to vector<8x1xf32>
    %468 = arith.addf %466, %467 : vector<8x1xf32>
    %c0_157 = arith.constant 0 : index
    %c0_158 = arith.constant 0 : index
    %469 = vector.load %arg18[%c0_157, %c0_158] : memref<8x1xf32, #tpu.memory_space<vmem>>, vector<8x1xf32>
    tpu.vector_store %arg18[%c0_157, %c0_158], %468 {strides = array<i32>} : memref<8x1xf32, #tpu.memory_space<vmem>>, vector<8x1xf32>,
    return
  }
}

</mosaic_0001>

<llo_original>
// kernel: tpu_custom_call.1
$region0: #{tpu_custom_call.1}
  #allocation0 [shape = 'u32[]', space=smem, size = 0x4, offset = 0x4, fixed_abs, tag = 'smem constant byte address 0x4 - core index']
  #allocation1 [shape = 'u32[144,128]{1,0:T(1,128)}', space=vmem, size = 0x12000, scoped, tag = 'internal scratch']
  #allocation2 [shape = 'f32[8,32]{1,0:T(8,128)}', space=vmem, size = 0x1000, scoped, tag = 'scratch operand']
  %s0 = inlined_call_operand.vmem [shape: s32[8,1], index: 0, kind: input, shape index: {}]
  %s1 = inlined_call_operand.vmem [shape: s32[16,1], index: 1, kind: input, shape index: {}]
  %s2 = inlined_call_operand.vmem [shape: s32[16,1], index: 2, kind: input, shape index: {}]
  %s3 = inlined_call_operand.vmem [shape: s32[1,16], index: 3, kind: input, shape index: {}]
  %s4 = inlined_call_operand.vmem [shape: f32[8,3], index: 4, kind: input, shape index: {}]
  %s5 = inlined_call_operand.vmem [shape: f32[1,16], index: 5, kind: input, shape index: {}]
  %s6 = inlined_call_operand.vmem [shape: f32[1,16], index: 6, kind: input, shape index: {}]
  %s7 = inlined_call_operand.vmem [shape: s32[1,8], index: 7, kind: input, shape index: {}]
  %s8 = inlined_call_operand.vmem [shape: f32[95,26], index: 8, kind: input, shape index: {}]
  %s9 = inlined_call_operand.vmem [shape: f32[8,8], index: 9, kind: input, shape index: {}]
  %s10 = inlined_call_operand.vmem [shape: f32[8,16], index: 10, kind: input, shape index: {}]
  %s11 = inlined_call_operand.vmem [shape: f32[16,64], index: 11, kind: input, shape index: {}]
  %s12 = inlined_call_operand.vmem [shape: f32[2,32,64], index: 12, kind: input, shape index: {}]
  %s13 = inlined_call_operand.hbm [shape: f32[2,5,32,32], index: 13, kind: input, shape index: {}]
  %s14 = inlined_call_operand.vmem [shape: f32[2,8,32], index: 14, kind: input, shape index: {}]
  %s15 = inlined_call_operand.vmem [shape: f32[2,32,32], index: 15, kind: input, shape index: {}]
  %s16 = inlined_call_operand.vmem [shape: f32[2,32], index: 16, kind: input, shape index: {}]
  %s17 = inlined_call_operand.vmem [shape: f32[32,1], index: 17, kind: input, shape index: {}]
  %s18 = inlined_call_operand.vmem [shape: f32[8,1], index: 18, kind: output, shape index: {}]
  %s19 = sld [smem:[#allocation0]]
  $region86: #{tpu_custom_call.1} parent=0
    _
  %s21 = ssub.s32 1, %s19
  %s22 = scalar_select 0, %s21, %s19
  $region1: #{tpu_custom_call.1} parent=0
    #allocation3 [shape = 'u8[163840]{0}', space=vmem, size = 0x28000, scoped, tag = 'input window, operand 13, single buffered']
    #allocation4 [shape = 's32[1]{0}', space=sflag, size = 0x4, scoped, tag = 'scoped memory for tpu_custom_call.1']
    %23 = vsyncpa [#allocation4], 0
    // Predicated region
    $region2: #{tpu_custom_call.1} parent=1 // pred_check
      _
    $region3: #{tpu_custom_call.1} parent=1 // pred_check_branch
      %25 = sbr.rel (0) target = $region5
    $region4: #{tpu_custom_call.1} parent=1 // pred_region
      _
    $region5: #{tpu_custom_call.1} parent=1 // pred_fallthru
      _
    // Predicated region
    $region6: #{tpu_custom_call.1} parent=1 // pred_check
      _
    $region7: #{tpu_custom_call.1} parent=1 // pred_check_branch
      %27 = sbr.rel (0) target = $region9
    $region8: #{tpu_custom_call.1} parent=1 // pred_region
      _
    $region9: #{tpu_custom_call.1} parent=1 // pred_fallthru
      _
    // Predicated region
    $region10: #{tpu_custom_call.1} parent=1 // pred_check
      _
    $region11: #{tpu_custom_call.1} parent=1 // pred_check_branch
      %29 = sbr.rel (0) target = $region13
    $region12: #{tpu_custom_call.1} parent=1 // pred_region
      _
    $region13: #{tpu_custom_call.1} parent=1 // pred_fallthru
      _
    // Predicated region
    $region14: #{tpu_custom_call.1} parent=1 // pred_check
      _
    $region15: #{tpu_custom_call.1} parent=1 // pred_check_branch
      %31 = sbr.rel (0) target = $region17
    $region16: #{tpu_custom_call.1} parent=1 // pred_region
      _
    $region17: #{tpu_custom_call.1} parent=1 // pred_fallthru
      _
    // Predicated region
    $region18: #{tpu_custom_call.1} parent=1 // pred_check
      _
    $region19: #{tpu_custom_call.1} parent=1 // pred_check_branch
      %33 = sbr.rel (0) target = $region21
    $region20: #{tpu_custom_call.1} parent=1 // pred_region
      _
    $region21: #{tpu_custom_call.1} parent=1 // pred_fallthru
      _
    // Predicated region
    $region22: #{tpu_custom_call.1} parent=1 // pred_check
      _
    $region23: #{tpu_custom_call.1} parent=1 // pred_check_branch
      %35 = sbr.rel (0) target = $region25
    $region24: #{tpu_custom_call.1} parent=1 // pred_region
      _
    $region25: #{tpu_custom_call.1} parent=1 // pred_fallthru
      _
    // Predicated region
    $region26: #{tpu_custom_call.1} parent=1 // pred_check
      _
    $region27: #{tpu_custom_call.1} parent=1 // pred_check_branch
      %37 = sbr.rel (0) target = $region29
    $region28: #{tpu_custom_call.1} parent=1 // pred_region
      _
    $region29: #{tpu_custom_call.1} parent=1 // pred_fallthru
      _
    // Predicated region
    $region30: #{tpu_custom_call.1} parent=1 // pred_check
      _
    $region31: #{tpu_custom_call.1} parent=1 // pred_check_branch
      %39 = sbr.rel (0) target = $region33
    $region32: #{tpu_custom_call.1} parent=1 // pred_region
      _
    $region33: #{tpu_custom_call.1} parent=1 // pred_fallthru
      _
    // Predicated region
    $region34: #{tpu_custom_call.1} parent=1 // pred_check
      _
    $region35: #{tpu_custom_call.1} parent=1 // pred_check_branch
      %41 = sbr.rel (0) target = $region37
    $region36: #{tpu_custom_call.1} parent=1 // pred_region
      _
    $region37: #{tpu_custom_call.1} parent=1 // pred_fallthru
      _
    // Predicated region
    $region38: #{tpu_custom_call.1} parent=1 // pred_check
      _
    $region39: #{tpu_custom_call.1} parent=1 // pred_check_branch
      %43 = sbr.rel (0) target = $region41
    $region40: #{tpu_custom_call.1} parent=1 // pred_region
      _
    $region41: #{tpu_custom_call.1} parent=1 // pred_fallthru
      _
    // Predicated region
    $region42: #{tpu_custom_call.1} parent=1 // pred_check
      _
    $region43: #{tpu_custom_call.1} parent=1 // pred_check_branch
      %45 = sbr.rel (0) target = $region45
    $region44: #{tpu_custom_call.1} parent=1 // pred_region
      _
    $region45: #{tpu_custom_call.1} parent=1 // pred_fallthru
      _
    // Predicated region
    $region46: #{tpu_custom_call.1} parent=1 // pred_check
      _
    $region47: #{tpu_custom_call.1} parent=1 // pred_check_branch
      %47 = sbr.rel (0) target = $region49
    $region48: #{tpu_custom_call.1} parent=1 // pred_region
      _
    $region49: #{tpu_custom_call.1} parent=1 // pred_fallthru
      _
    // Predicated region
    $region50: #{tpu_custom_call.1} parent=1 // pred_check
      _
    $region51: #{tpu_custom_call.1} parent=1 // pred_check_branch
      %49 = sbr.rel (0) target = $region53
    $region52: #{tpu_custom_call.1} parent=1 // pred_region
      _
    $region53: #{tpu_custom_call.1} parent=1 // pred_fallthru
      _
    // Predicated region
    $region54: #{tpu_custom_call.1} parent=1 // pred_check
      _
    $region55: #{tpu_custom_call.1} parent=1 // pred_check_branch
      %51 = sbr.rel (0) target = $region57
    $region56: #{tpu_custom_call.1} parent=1 // pred_region
      %s53 = ssub.s32 5120, 5120
      %54 = vsyncadd [#allocation4], %s53
      %s55 = sshll.u32 [#allocation3], 4
      %s56 = int_to_ptr.vmem [resolvable:$true] %s55
      %61 = dma.hbm_to_vmem [thread:$0]  %s13, 5120, %s56, [#allocation4], 128, 128, 8
    $region57: #{tpu_custom_call.1} parent=1 // pred_fallthru
      _
    // Predicated region
    $region58: #{tpu_custom_call.1} parent=1 // pred_check
      _
    $region59: #{tpu_custom_call.1} parent=1 // pred_check_branch
      %63 = sbr.rel (0) target = $region61
    $region60: #{tpu_custom_call.1} parent=1 // pred_region
      _
    $region61: #{tpu_custom_call.1} parent=1 // pred_fallthru
      _
    // Predicated region
    $region62: #{tpu_custom_call.1} parent=1 // pred_check
      _
    $region63: #{tpu_custom_call.1} parent=1 // pred_check_branch
      %65 = sbr.rel (0) target = $region65
    $region64: #{tpu_custom_call.1} parent=1 // pred_region
      _
    $region65: #{tpu_custom_call.1} parent=1 // pred_fallthru
      _
    // Predicated region
    $region66: #{tpu_custom_call.1} parent=1 // pred_check
      _
    $region67: #{tpu_custom_call.1} parent=1 // pred_check_branch
      %67 = sbr.rel (0) target = $region69
    $region68: #{tpu_custom_call.1} parent=1 // pred_region
      _
    $region69: #{tpu_custom_call.1} parent=1 // pred_fallthru
      _
    // Predicated region
    $region70: #{tpu_custom_call.1} parent=1 // pred_check
      _
    $region71: #{tpu_custom_call.1} parent=1 // pred_check_branch
      %69 = sbr.rel (0) target = $region73
    $region72: #{tpu_custom_call.1} parent=1 // pred_region
      _
    $region73: #{tpu_custom_call.1} parent=1 // pred_fallthru
      _
    // Predicated region
    $region74: #{tpu_custom_call.1} parent=1 // pred_check
      _
    $region75: #{tpu_custom_call.1} parent=1 // pred_check_branch
      %71 = sbr.rel (0) target = $region77
    $region76: #{tpu_custom_call.1} parent=1 // pred_region
      %72 = dma.done [#allocation4], 5120
    $region77: #{tpu_custom_call.1} parent=1 // pred_fallthru
      _
    %v73 = vld [vmem:[%s0] sm:$0xff]
    %v74 = vld [vmem:[%s1] sm:$0xff]
    %v75 = vld [vmem:[%s1 + $0x8] sm:$0xff]
    %v76 = vld [vmem:[%s2] sm:$0xff]
    %v77 = vld [vmem:[%s2 + $0x8] sm:$0xff]
    %v78 = vld [vmem:[%s3] sm:$0x1]
    %v79 = vlaneseq
    %v80 = vand.u32 %v79, 127
    %81 = vset.pattern.permute.xlu0 0
    %82 = vperm.xlu0 %81, %v74
    %v83 = vpop.permute.xlu0 %82
    %84 = vset.pattern.permute.xlu0 0
    %85 = vperm.xlu0 %84, %v75
    %v86 = vpop.permute.xlu0 %85
    %vm87 = vcmp.eq.s32.totalorder %v80, %v83
    %vm88 = vcmp.eq.s32.totalorder %v80, %v86
    %v89 = vsel %vm87, 1, 0
    %v90 = vsel %vm88, 1, 0
    %v91 = vcvt.s32.f32 %v89
    %v92 = vcvt.s32.f32 %v90
    %93 = vset.pattern.permute.xlu0 0
    %94 = vperm.xlu0 %93, %v76
    %v95 = vpop.permute.xlu0 %94
    %96 = vset.pattern.permute.xlu0 0
    %97 = vperm.xlu0 %96, %v77
    %v98 = vpop.permute.xlu0 %97
    %vm99 = vcmp.eq.s32.totalorder %v80, %v95
    %vm100 = vcmp.eq.s32.totalorder %v80, %v98
    %v101 = vsel %vm99, 1, 0
    %v102 = vsel %vm100, 1, 0
    %v103 = vcvt.s32.f32 %v101
    %v104 = vcvt.s32.f32 %v102
    %v105 = vlaneseq
    %v106 = vshrl.u32 %v105, 7
    %v107 = vlaneseq
    %v108 = vshrl.u32 %v107, 7
    %v109 = vsub.s32 0, %v108
    %v110 = vrot.slane %v78, %v109
    %vm111 = vcmp.eq.s32.totalorder %v106, %v110
    %v112 = vsel %vm111, 1, 0
    %v113 = vcvt.s32.f32 %v112
    %114 = vset.pattern.permute.xlu0 0
    %115 = vperm.xlu0 %114, %v73
    %v116 = vpop.permute.xlu0 %115
    %vm117 = vcmp.eq.s32.totalorder %v80, %v116
    %v118 = vsel %vm117, 1, 0
    %v119 = vcvt.s32.f32 %v118
    %v120 = vld [vmem:[%s7] sm:$0x1]
    %v121 = vlaneseq
    %v122 = vshrl.u32 %v121, 7
    %v123 = vsub.s32 0, %v122
    %v124 = vrot.slane %v120, %v123
    %vm125 = vcmp.eq.s32.totalorder %v116, %v124
    %v126 = vsel %vm125, 1, 0
    %v127 = vcvt.s32.f32 %v126
    %v128 = vld [vmem:[%s4] sm:$0xff]
    %v129 = vsub.f32 %v91, %v103
    %v130 = vsub.f32 %v92, %v104
    %vm131 = vcmask 64512
    %v133 = vsel %vm131, %v129, 0
    %v136 = vsel %vm131, %v130, 0
    %138 = vmatprep.subr.mxu0 0.0
    %139 = vmatpush1.msra.mxu0 0.0
    %140 = vmatprep.subr.mxu0 0.0
    %141 = vmatpush1.msra.mxu0 0.0
    %142 = vmatprep.subr.mxu0 0.0
    %143 = vmatpush1.msra.mxu0 0.0
    %144 = vmatprep.subr.mxu0 0.0
    %145 = vmatpush1.msra.mxu0 0.0
    %146 = vmatprep.subr.mxu0 0.0
    %147 = vmatpush1.msra.mxu0 0.0
    %148 = vmatprep.subr.mxu0 0.0
    %149 = vmatpush1.msra.mxu0 0.0
    %150 = vmatprep.subr.mxu0 0.0
    %151 = vmatpush1.msra.mxu0 0.0
    %152 = vmatprep.subr.mxu0 0.0
    %153 = vmatpush1.msra.mxu0 0.0
    %154 = vmatprep.subr.mxu0 0.0
    %155 = vmatpush1.msra.mxu0 0.0
    %156 = vmatprep.subr.mxu0 0.0
    %157 = vmatpush1.msra.mxu0 0.0
    %158 = vmatprep.subr.mxu0 0.0
    %159 = vmatpush1.msra.mxu0 0.0
    %160 = vmatprep.subr.mxu0 0.0
    %161 = vmatpush1.msra.mxu0 0.0
    %162 = vmatprep.subr.mxu0 0.0
    %163 = vmatpush1.msra.mxu0 0.0
    %164 = vmatprep.subr.mxu0 0.0
    %165 = vmatpush1.msra.mxu0 0.0
    %166 = vmatprep.subr.mxu0 0.0
    %167 = vmatpush1.msra.mxu0 0.0
    %168 = vmatprep.subr.mxu0 0.0
    %169 = vmatpush1.msra.mxu0 %v128
    %170 = vmatprep.subr.mxu0 0.0
    %171 = vmatpush2.msra.mxu0 0.0
    %172 = vmatprep.subr.mxu0 0.0
    %173 = vmatpush2.msra.mxu0 0.0
    %174 = vmatprep.subr.mxu0 0.0
    %175 = vmatpush2.msra.mxu0 0.0
    %176 = vmatprep.subr.mxu0 0.0
    %177 = vmatpush2.msra.mxu0 0.0
    %178 = vmatprep.subr.mxu0 0.0
    %179 = vmatpush2.msra.mxu0 0.0
    %180 = vmatprep.subr.mxu0 0.0
    %181 = vmatpush2.msra.mxu0 0.0
    %182 = vmatprep.subr.mxu0 0.0
    %183 = vmatpush2.msra.mxu0 0.0
    %184 = vmatprep.subr.mxu0 0.0
    %185 = vmatpush2.msra.mxu0 0.0
    %186 = vmatprep.subr.mxu0 0.0
    %187 = vmatpush2.msra.mxu0 0.0
    %188 = vmatprep.subr.mxu0 0.0
    %189 = vmatpush2.msra.mxu0 0.0
    %190 = vmatprep.subr.mxu0 0.0
    %191 = vmatpush2.msra.mxu0 0.0
    %192 = vmatprep.subr.mxu0 0.0
    %193 = vmatpush2.msra.mxu0 0.0
    %194 = vmatprep.subr.mxu0 0.0
    %195 = vmatpush2.msra.mxu0 0.0
    %196 = vmatprep.subr.mxu0 0.0
    %197 = vmatpush2.msra.mxu0 0.0
    %198 = vmatprep.subr.mxu0 0.0
    %199 = vmatpush2.msra.mxu0 0.0
    %200 = vmatprep.subr.mxu0 0.0
    %201 = vmatpush2.msra.mxu0 0.0
    %202 = vmatprep.mubr.f32.mxu0 0.0
    %203 = vmatmul.mubr.f32.gmra.mxu0 %v133
    %v204 = vpop.f32.mrf.mxu0
    %v205 = vadd.f32 0.0, %v204
    %v206 = vpop.f32.mrf.mxu0
    %207 = vmatprep.mubr.f32.mxu0 0.0
    %208 = vmatmul.mubr.f32.gmra.mxu0 %v136
    %v209 = vpop.f32.mrf.mxu0
    %v210 = vadd.f32 0.0, %v209
    %v211 = vpop.f32.mrf.mxu0
    %212 = vdwg.mxu0
    %v213 = vmul.f32 %v205, %v205
    %v214 = vmul.f32 %v210, %v210
    %vm215 = vcmask 23552
    %v216 = vsel %vm215, %v213, 0.0
    %217 = vadd.xlane.f32.xlu0 %v216
    %v218 = vpop.xlane.xlu0 %217
    %v219 = vsel %vm215, %v214, 0.0
    %220 = vadd.xlane.f32.xlu0 %v219
    %v221 = vpop.xlane.xlu0 %220
    %v222 = vmax.f32 %v218, 1e-12
    %v223 = vmax.f32 %v221, 1e-12
    %v224 = vrsqrt.pop %v222
    %v225 = vmul.f32 %v222, %v224
    %vm226 = vcmp.eq.f32.partialorder %v222, inf
    %v227 = vsel %vm226, %v222, %v225
    %vm228 = vcmp.eq.f32.partialorder %v222, 0.0
    %v229 = vand.u32 %v222, 2147483648
    %v230 = vsel %vm228, %v229, %v227
    %v231 = vrsqrt.pop %v223
    %v232 = vmul.f32 %v223, %v231
    %vm233 = vcmp.eq.f32.partialorder %v223, inf
    %v234 = vsel %vm233, %v223, %v232
    %vm235 = vcmp.eq.f32.partialorder %v223, 0.0
    %v236 = vand.u32 %v223, 2147483648
    %v237 = vsel %vm235, %v236, %v234
    %v238 = vrcp.pop 10.0
    %v239 = vmul.f32 %v230, %v238
    %v240 = vmul.f32 %v237, %v238
    %v241 = vmul.f32 %v239, %v239
    %v242 = vmul.f32 %v240, %v240
    %v243 = vmul.f32 %v241, %v241
    %v244 = vmul.f32 %v242, %v242
    %v245 = vmul.f32 %v239, %v243
    %v246 = vmul.f32 %v240, %v244
    %v247 = vmul.f32 %v245, 6.0
    %v248 = vmul.f32 %v246, 6.0
    %v249 = vsub.f32 1.0, %v247
    %v250 = vsub.f32 1.0, %v248
    %v251 = vmul.f32 %v243, 15.0
    %v252 = vmul.f32 %v244, 15.0
    %v253 = vadd.f32 %v249, %v251
    %v254 = vadd.f32 %v250, %v252
    %v255 = vmul.f32 %v239, %v241
    %v256 = vmul.f32 %v240, %v242
    %v257 = vmul.f32 %v255, 10.0
    %v258 = vmul.f32 %v256, 10.0
    %v259 = vsub.f32 %v253, %v257
    %v260 = vsub.f32 %v254, %v258
    %vm261 = vcmp.lt.f32.partialorder %v230, 10.0
    %vm262 = vcmp.lt.f32.partialorder %v237, 10.0
    %v263 = vsel %vm261, %v259, 0.0
    %v264 = vsel %vm262, %v260, 0.0
    %v265 = vld [vmem:[%s6] sm:$0x1]
    %v266 = vsub.f32 0.0, %v265
    %v267 = vsub.f32 0.0, %v230
    %v268 = vsub.f32 0.0, %v237
    %v269 = vmul.f32 %v267, 1.442695
    %v270 = vpow.pop %v269
    %v271 = vmul.f32 %v268, 1.442695
    %v272 = vpow.pop %v271
    %v273 = vld [vmem:[%s5] sm:$0x1]
    %v275 = vlaneseq
    %v276 = vshrl.u32 %v275, 7
    %v277 = vsub.s32 0, %v276
    %v278 = vrot.slane %v273, %v277
    %v280 = vsub.f32 %v270, %v278
    %v281 = vsub.f32 %v272, %v278
    %v282 = vmul.f32 %v280, %v280
    %v283 = vmul.f32 %v281, %v281
    %v285 = vlaneseq
    %v286 = vshrl.u32 %v285, 7
    %v287 = vsub.s32 0, %v286
    %v288 = vrot.slane %v266, %v287
    %v290 = vmul.f32 %v288, %v282
    %v291 = vmul.f32 %v288, %v283
    %v292 = vmul.f32 %v290, 1.442695
    %v293 = vpow.pop %v292
    %v294 = vmul.f32 %v291, 1.442695
    %v295 = vpow.pop %v294
    %v296 = vmul.f32 %v263, %v293
    %v297 = vmul.f32 %v264, %v295
    %v298 = vld [vmem:[%s11] sm:$0xff]
    %v299 = vld [vmem:[%s11 + $0x8] sm:$0xff]
    %vm300 = vcmask 130048
    %v302 = vsel %vm300, %v296, 0
    %v305 = vsel %vm300, %v297, 0
    %307 = vmatprep.subr.mxu0 0.0
    %308 = vmatpush1.msra.mxu0 0.0
    %309 = vmatprep.subr.mxu0 0.0
    %310 = vmatpush1.msra.mxu0 0.0
    %311 = vmatprep.subr.mxu0 0.0
    %312 = vmatpush1.msra.mxu0 0.0
    %313 = vmatprep.subr.mxu0 0.0
    %314 = vmatpush1.msra.mxu0 0.0
    %315 = vmatprep.subr.mxu0 0.0
    %316 = vmatpush1.msra.mxu0 0.0
    %317 = vmatprep.subr.mxu0 0.0
    %318 = vmatpush1.msra.mxu0 0.0
    %319 = vmatprep.subr.mxu0 0.0
    %320 = vmatpush1.msra.mxu0 0.0
    %321 = vmatprep.subr.mxu0 0.0
    %322 = vmatpush1.msra.mxu0 0.0
    %323 = vmatprep.subr.mxu0 0.0
    %324 = vmatpush1.msra.mxu0 0.0
    %325 = vmatprep.subr.mxu0 0.0
    %326 = vmatpush1.msra.mxu0 0.0
    %327 = vmatprep.subr.mxu0 0.0
    %328 = vmatpush1.msra.mxu0 0.0
    %329 = vmatprep.subr.mxu0 0.0
    %330 = vmatpush1.msra.mxu0 0.0
    %331 = vmatprep.subr.mxu0 0.0
    %332 = vmatpush1.msra.mxu0 0.0
    %333 = vmatprep.subr.mxu0 0.0
    %334 = vmatpush1.msra.mxu0 0.0
    %335 = vmatprep.subr.mxu0 0.0
    %336 = vmatpush1.msra.mxu0 %v299
    %337 = vmatprep.subr.mxu0 0.0
    %338 = vmatpush1.msra.mxu0 %v298
    %339 = vmatprep.subr.mxu0 0.0
    %340 = vmatpush2.msra.mxu0 0.0
    %341 = vmatprep.subr.mxu0 0.0
    %342 = vmatpush2.msra.mxu0 0.0
    %343 = vmatprep.subr.mxu0 0.0
    %344 = vmatpush2.msra.mxu0 0.0
    %345 = vmatprep.subr.mxu0 0.0
    %346 = vmatpush2.msra.mxu0 0.0
    %347 = vmatprep.subr.mxu0 0.0
    %348 = vmatpush2.msra.mxu0 0.0
    %349 = vmatprep.subr.mxu0 0.0
    %350 = vmatpush2.msra.mxu0 0.0
    %351 = vmatprep.subr.mxu0 0.0
    %352 = vmatpush2.msra.mxu0 0.0
    %353 = vmatprep.subr.mxu0 0.0
    %354 = vmatpush2.msra.mxu0 0.0
    %355 = vmatprep.subr.mxu0 0.0
    %356 = vmatpush2.msra.mxu0 0.0
    %357 = vmatprep.subr.mxu0 0.0
    %358 = vmatpush2.msra.mxu0 0.0
    %359 = vmatprep.subr.mxu0 0.0
    %360 = vmatpush2.msra.mxu0 0.0
    %361 = vmatprep.subr.mxu0 0.0
    %362 = vmatpush2.msra.mxu0 0.0
    %363 = vmatprep.subr.mxu0 0.0
    %364 = vmatpush2.msra.mxu0 0.0
    %365 = vmatprep.subr.mxu0 0.0
    %366 = vmatpush2.msra.mxu0 0.0
    %367 = vmatprep.subr.mxu0 0.0
    %368 = vmatpush2.msra.mxu0 0.0
    %369 = vmatprep.subr.mxu0 0.0
    %370 = vmatpush2.msra.mxu0 0.0
    %371 = vmatprep.mubr.f32.mxu0 0.0
    %372 = vmatmul.mubr.f32.gmra.mxu0 %v302
    %v373 = vpop.f32.mrf.mxu0
    %v374 = vadd.f32 0.0, %v373
    %v375 = vpop.f32.mrf.mxu0
    %376 = vmatprep.mubr.f32.mxu0 0.0
    %377 = vmatmul.mubr.f32.gmra.mxu0 %v305
    %v378 = vpop.f32.mrf.mxu0
    %v379 = vadd.f32 0.0, %v378
    %v380 = vpop.f32.mrf.mxu0
    %381 = vdwg.mxu0
    %v382 = vld [vmem:[%s8] sm:$0xff]
    %v383 = vld [vmem:[%s8 + $0x8] sm:$0xff]
    %v384 = vld [vmem:[%s8 + $0x10] sm:$0xff]
    %v385 = vld [vmem:[%s8 + $0x18] sm:$0xff]
    %v386 = vld [vmem:[%s8 + $0x20] sm:$0xff]
    %v387 = vld [vmem:[%s8 + $0x28] sm:$0xff]
    %v388 = vld [vmem:[%s8 + $0x30] sm:$0xff]
    %v389 = vld [vmem:[%s8 + $0x38] sm:$0xff]
    %v390 = vld [vmem:[%s8 + $0x40] sm:$0xff]
    %v391 = vld [vmem:[%s8 + $0x48] sm:$0xff]
    %v392 = vld [vmem:[%s8 + $0x50] sm:$0xff]
    %v393 = vld [vmem:[%s8 + $0x58] sm:$0x7f]
    %vm394 = vcmask 777216
    %v396 = vsel %vm394, %v119, 0
    %vm398 = vcmask 1046528
    %v400 = vsel %vm398, %v393, 0
    %402 = vmatprep.subr.mxu0 0.0
    %403 = vmatpush1.msra.mxu0 0.0
    %404 = vmatprep.subr.mxu0 0.0
    %405 = vmatpush1.msra.mxu0 0.0
    %406 = vmatprep.subr.mxu0 0.0
    %407 = vmatpush1.msra.mxu0 0.0
    %408 = vmatprep.subr.mxu0 0.0
    %409 = vmatpush1.msra.mxu0 0.0
    %410 = vmatprep.subr.mxu0 0.0
    %411 = vmatpush1.msra.mxu0 %v400
    %412 = vmatprep.subr.mxu0 0.0
    %413 = vmatpush1.msra.mxu0 %v392
    %414 = vmatprep.subr.mxu0 0.0
    %415 = vmatpush1.msra.mxu0 %v391
    %416 = vmatprep.subr.mxu0 0.0
    %417 = vmatpush1.msra.mxu0 %v390
    %418 = vmatprep.subr.mxu0 0.0
    %419 = vmatpush1.msra.mxu0 %v389
    %420 = vmatprep.subr.mxu0 0.0
    %421 = vmatpush1.msra.mxu0 %v388
    %422 = vmatprep.subr.mxu0 0.0
    %423 = vmatpush1.msra.mxu0 %v387
    %424 = vmatprep.subr.mxu0 0.0
    %425 = vmatpush1.msra.mxu0 %v386
    %426 = vmatprep.subr.mxu0 0.0
    %427 = vmatpush1.msra.mxu0 %v385
    %428 = vmatprep.subr.mxu0 0.0
    %429 = vmatpush1.msra.mxu0 %v384
    %430 = vmatprep.subr.mxu0 0.0
    %431 = vmatpush1.msra.mxu0 %v383
    %432 = vmatprep.subr.mxu0 0.0
    %433 = vmatpush1.msra.mxu0 %v382
    %434 = vmatprep.subr.mxu0 0.0
    %435 = vmatpush2.msra.mxu0 0.0
    %436 = vmatprep.subr.mxu0 0.0
    %437 = vmatpush2.msra.mxu0 0.0
    %438 = vmatprep.subr.mxu0 0.0
    %439 = vmatpush2.msra.mxu0 0.0
    %440 = vmatprep.subr.mxu0 0.0
    %441 = vmatpush2.msra.mxu0 0.0
    %442 = vmatprep.subr.mxu0 0.0
    %443 = vmatpush2.msra.mxu0 0.0
    %444 = vmatprep.subr.mxu0 0.0
    %445 = vmatpush2.msra.mxu0 0.0
    %446 = vmatprep.subr.mxu0 0.0
    %447 = vmatpush2.msra.mxu0 0.0
    %448 = vmatprep.subr.mxu0 0.0
    %449 = vmatpush2.msra.mxu0 0.0
    %450 = vmatprep.subr.mxu0 0.0
    %451 = vmatpush2.msra.mxu0 0.0
    %452 = vmatprep.subr.mxu0 0.0
    %453 = vmatpush2.msra.mxu0 0.0
    %454 = vmatprep.subr.mxu0 0.0
    %455 = vmatpush2.msra.mxu0 0.0
    %456 = vmatprep.subr.mxu0 0.0
    %457 = vmatpush2.msra.mxu0 0.0
    %458 = vmatprep.subr.mxu0 0.0
    %459 = vmatpush2.msra.mxu0 0.0
    %460 = vmatprep.subr.mxu0 0.0
    %461 = vmatpush2.msra.mxu0 0.0
    %462 = vmatprep.subr.mxu0 0.0
    %463 = vmatpush2.msra.mxu0 0.0
    %464 = vmatprep.subr.mxu0 0.0
    %465 = vmatpush2.msra.mxu0 0.0
    %466 = vmatprep.mubr.f32.mxu0 0.0
    %467 = vmatmul.mubr.f32.gmra.mxu0 %v396
    %v468 = vpop.f32.mrf.mxu0
    %v469 = vadd.f32 0.0, %v468
    %v470 = vpop.f32.mrf.mxu0
    %471 = vdwg.mxu0
    %v472 = vld [vmem:[%s10] sm:$0xff]
    %v474 = vsel %vm131, %v127, 0
    %476 = vmatprep.subr.mxu0 0.0
    %477 = vmatpush1.msra.mxu0 0.0
    %478 = vmatprep.subr.mxu0 0.0
    %479 = vmatpush1.msra.mxu0 0.0
    %480 = vmatprep.subr.mxu0 0.0
    %481 = vmatpush1.msra.mxu0 0.0
    %482 = vmatprep.subr.mxu0 0.0
    %483 = vmatpush1.msra.mxu0 0.0
    %484 = vmatprep.subr.mxu0 0.0
    %485 = vmatpush1.msra.mxu0 0.0
    %486 = vmatprep.subr.mxu0 0.0
    %487 = vmatpush1.msra.mxu0 0.0
    %488 = vmatprep.subr.mxu0 0.0
    %489 = vmatpush1.msra.mxu0 0.0
    %490 = vmatprep.subr.mxu0 0.0
    %491 = vmatpush1.msra.mxu0 0.0
    %492 = vmatprep.subr.mxu0 0.0
    %493 = vmatpush1.msra.mxu0 0.0
    %494 = vmatprep.subr.mxu0 0.0
    %495 = vmatpush1.msra.mxu0 0.0
    %496 = vmatprep.subr.mxu0 0.0
    %497 = vmatpush1.msra.mxu0 0.0
    %498 = vmatprep.subr.mxu0 0.0
    %499 = vmatpush1.msra.mxu0 0.0
    %500 = vmatprep.subr.mxu0 0.0
    %501 = vmatpush1.msra.mxu0 0.0
    %502 = vmatprep.subr.mxu0 0.0
    %503 = vmatpush1.msra.mxu0 0.0
    %504 = vmatprep.subr.mxu0 0.0
    %505 = vmatpush1.msra.mxu0 0.0
    %506 = vmatprep.subr.mxu0 0.0
    %507 = vmatpush1.msra.mxu0 %v472
    %508 = vmatprep.subr.mxu0 0.0
    %509 = vmatpush2.msra.mxu0 0.0
    %510 = vmatprep.subr.mxu0 0.0
    %511 = vmatpush2.msra.mxu0 0.0
    %512 = vmatprep.subr.mxu0 0.0
    %513 = vmatpush2.msra.mxu0 0.0
    %514 = vmatprep.subr.mxu0 0.0
    %515 = vmatpush2.msra.mxu0 0.0
    %516 = vmatprep.subr.mxu0 0.0
    %517 = vmatpush2.msra.mxu0 0.0
    %518 = vmatprep.subr.mxu0 0.0
    %519 = vmatpush2.msra.mxu0 0.0
    %520 = vmatprep.subr.mxu0 0.0
    %521 = vmatpush2.msra.mxu0 0.0
    %522 = vmatprep.subr.mxu0 0.0
    %523 = vmatpush2.msra.mxu0 0.0
    %524 = vmatprep.subr.mxu0 0.0
    %525 = vmatpush2.msra.mxu0 0.0
    %526 = vmatprep.subr.mxu0 0.0
    %527 = vmatpush2.msra.mxu0 0.0
    %528 = vmatprep.subr.mxu0 0.0
    %529 = vmatpush2.msra.mxu0 0.0
    %530 = vmatprep.subr.mxu0 0.0
    %531 = vmatpush2.msra.mxu0 0.0
    %532 = vmatprep.subr.mxu0 0.0
    %533 = vmatpush2.msra.mxu0 0.0
    %534 = vmatprep.subr.mxu0 0.0
    %535 = vmatpush2.msra.mxu0 0.0
    %536 = vmatprep.subr.mxu0 0.0
    %537 = vmatpush2.msra.mxu0 0.0
    %538 = vmatprep.subr.mxu0 0.0
    %539 = vmatpush2.msra.mxu0 0.0
    %540 = vmatprep.mubr.f32.mxu0 0.0
    %541 = vmatmul.mubr.f32.gmra.mxu0 %v474
    %v542 = vpop.f32.mrf.mxu0
    %v543 = vadd.f32 0.0, %v542
    %v544 = vpop.f32.mrf.mxu0
    %545 = vdwg.mxu0
    %v546 = vsel %vm131, %v127, 0.0
    %547 = vadd.xlane.f32.xlu0 %v546
    %v548 = vpop.xlane.xlu0 %547
    %vm549 = vcmp.gt.f32.partialorder %v548, 0.5
    %v550 = vld [vmem:[%s9] sm:$0xff]
    %v551 = vsub.f32 %v550, %v543
    %v552 = vsel %vm549, 1, 0
    %vm553 = vcmp.eq.s32.totalorder %v552, 1
    %v554 = vsel %vm553, %v543, 1.0
    %556 = vrot.lane.b32.xlu0 %v554, 120
    %v557 = vpop.permute.xlu0 %556
    %v559 = vrcp.pop %v557
    %v560 = vmul.f32 %v551, %v559
    %v561 = vsel %vm553, %v560, %v550
    %vm562 = vcmask 195584
    %563 = vst.msk [vmem:[#allocation2] sm:$0xff] %vm562, %v469
    %565 = vrot.lane.b32.xlu0 %v561, 24
    %v566 = vpop.permute.xlu0 %565
    %vm568 = vcmask 261312
    %569 = vst.msk [vmem:[#allocation2] sm:$0xff] %vm568, %v566
    %v570 = vld [vmem:[#allocation2] sm:$0xff]
    %v571 = vld [vmem:[%s12] sm:$0xff]
    %v572 = vld [vmem:[%s12 + $0x8] sm:$0xff]
    %v573 = vld [vmem:[%s12 + $0x10] sm:$0xff]
    %v574 = vld [vmem:[%s12 + $0x18] sm:$0xff]
    %v575 = vld [vmem:[%s12 + $0x20] sm:$0xff]
    %v576 = vld [vmem:[%s12 + $0x28] sm:$0xff]
    %v577 = vld [vmem:[%s12 + $0x30] sm:$0xff]
    %v578 = vld [vmem:[%s12 + $0x38] sm:$0xff]
    %v579 = vld [vmem:[#allocation3] sm:$0xff]
    %v580 = vld [vmem:[#allocation3 + $0x8] sm:$0xff]
    %v581 = vld [vmem:[#allocation3 + $0x10] sm:$0xff]
    %v582 = vld [vmem:[#allocation3 + $0x18] sm:$0xff]
    %v583 = vld [vmem:[#allocation3 + $0x20] sm:$0xff]
    %v584 = vld [vmem:[#allocation3 + $0x28] sm:$0xff]
    %v585 = vld [vmem:[#allocation3 + $0x30] sm:$0xff]
    %v586 = vld [vmem:[#allocation3 + $0x38] sm:$0xff]
    %v587 = vld [vmem:[#allocation3 + $0x40] sm:$0xff]
    %v588 = vld [vmem:[#allocation3 + $0x48] sm:$0xff]
    %v589 = vld [vmem:[#allocation3 + $0x50] sm:$0xff]
    %v590 = vld [vmem:[#allocation3 + $0x58] sm:$0xff]
    %v591 = vld [vmem:[#allocation3 + $0x60] sm:$0xff]
    %v592 = vld [vmem:[#allocation3 + $0x68] sm:$0xff]
    %v593 = vld [vmem:[#allocation3 + $0x70] sm:$0xff]
    %v594 = vld [vmem:[#allocation3 + $0x78] sm:$0xff]
    %v595 = vld [vmem:[#allocation3 + $0x80] sm:$0xff]
    %v596 = vld [vmem:[#allocation3 + $0x88] sm:$0xff]
    %v597 = vld [vmem:[#allocation3 + $0x90] sm:$0xff]
    %v598 = vld [vmem:[#allocation3 + $0x98] sm:$0xff]
    %v599 = vld [vmem:[#allocation3 + $0xa0] sm:$0xff]
    %v600 = vld [vmem:[#allocation3 + $0xa8] sm:$0xff]
    %v601 = vld [vmem:[#allocation3 + $0xb0] sm:$0xff]
    %v602 = vld [vmem:[#allocation3 + $0xb8] sm:$0xff]
    %v603 = vld [vmem:[#allocation3 + $0xc0] sm:$0xff]
    %v604 = vld [vmem:[#allocation3 + $0xc8] sm:$0xff]
    %v605 = vld [vmem:[#allocation3 + $0xd0] sm:$0xff]
    %v606 = vld [vmem:[#allocation3 + $0xd8] sm:$0xff]
    %v607 = vld [vmem:[#allocation3 + $0xe0] sm:$0xff]
    %v608 = vld [vmem:[#allocation3 + $0xe8] sm:$0xff]
    %v609 = vld [vmem:[#allocation3 + $0xf0] sm:$0xff]
    %v610 = vld [vmem:[#allocation3 + $0xf8] sm:$0xff]
    %v611 = vld [vmem:[#allocation3 + $0x100] sm:$0xff]
    %v612 = vld [vmem:[#allocation3 + $0x108] sm:$0xff]
    %v613 = vld [vmem:[#allocation3 + $0x110] sm:$0xff]
    %v614 = vld [vmem:[#allocation3 + $0x118] sm:$0xff]
    %v615 = vld [vmem:[#allocation3 + $0x120] sm:$0xff]
    %v616 = vld [vmem:[#allocation3 + $0x128] sm:$0xff]
    %v617 = vld [vmem:[#allocation3 + $0x130] sm:$0xff]
    %v618 = vld [vmem:[#allocation3 + $0x138] sm:$0xff]
    %v619 = vld [vmem:[%s14] sm:$0xff]
    %v620 = vld [vmem:[%s14 + $0x8] sm:$0xff]
    %v621 = vmax.f32 %v570, 0.0
    %v622 = vand.u32 2147483647, %v570
    %v623 = vsub.f32 0.0, %v622
    %v624 = vmul.f32 %v623, 1.442695
    %v625 = vpow.pop %v624
    %v626 = vadd.f32 %v625, 1.0
    %v627 = vlog2.pop %v626
    %v628 = vmul.f32 %v627, 0.6931472
    %v629 = vadd.f32 %v621, %v628
    %v630 = vsub.f32 %v629, 0.6931472
    %vm631 = vcmask 261120
    %v633 = vsel %vm631, %v630, 0
    %635 = vmatprep.subr.mxu0 0.0
    %636 = vmatpush1.msra.mxu0 0.0
    %637 = vmatprep.subr.mxu0 0.0
    %638 = vmatpush1.msra.mxu0 0.0
    %639 = vmatprep.subr.mxu0 0.0
    %640 = vmatpush1.msra.mxu0 0.0
    %641 = vmatprep.subr.mxu0 0.0
    %642 = vmatpush1.msra.mxu0 0.0
    %643 = vmatprep.subr.mxu0 0.0
    %644 = vmatpush1.msra.mxu0 0.0
    %645 = vmatprep.subr.mxu0 0.0
    %646 = vmatpush1.msra.mxu0 0.0
    %647 = vmatprep.subr.mxu0 0.0
    %648 = vmatpush1.msra.mxu0 0.0
    %649 = vmatprep.subr.mxu0 0.0
    %650 = vmatpush1.msra.mxu0 0.0
    %651 = vmatprep.subr.mxu0 0.0
    %652 = vmatpush1.msra.mxu0 0.0
    %653 = vmatprep.subr.mxu0 0.0
    %654 = vmatpush1.msra.mxu0 0.0
    %655 = vmatprep.subr.mxu0 0.0
    %656 = vmatpush1.msra.mxu0 0.0
    %657 = vmatprep.subr.mxu0 0.0
    %658 = vmatpush1.msra.mxu0 0.0
    %659 = vmatprep.subr.mxu0 0.0
    %660 = vmatpush1.msra.mxu0 %v574
    %661 = vmatprep.subr.mxu0 0.0
    %662 = vmatpush1.msra.mxu0 %v573
    %663 = vmatprep.subr.mxu0 0.0
    %664 = vmatpush1.msra.mxu0 %v572
    %665 = vmatprep.subr.mxu0 0.0
    %666 = vmatpush1.msra.mxu0 %v571
    %667 = vmatprep.subr.mxu0 0.0
    %668 = vmatpush2.msra.mxu0 0.0
    %669 = vmatprep.subr.mxu0 0.0
    %670 = vmatpush2.msra.mxu0 0.0
    %671 = vmatprep.subr.mxu0 0.0
    %672 = vmatpush2.msra.mxu0 0.0
    %673 = vmatprep.subr.mxu0 0.0
    %674 = vmatpush2.msra.mxu0 0.0
    %675 = vmatprep.subr.mxu0 0.0
    %676 = vmatpush2.msra.mxu0 0.0
    %677 = vmatprep.subr.mxu0 0.0
    %678 = vmatpush2.msra.mxu0 0.0
    %679 = vmatprep.subr.mxu0 0.0
    %680 = vmatpush2.msra.mxu0 0.0
    %681 = vmatprep.subr.mxu0 0.0
    %682 = vmatpush2.msra.mxu0 0.0
    %683 = vmatprep.subr.mxu0 0.0
    %684 = vmatpush2.msra.mxu0 0.0
    %685 = vmatprep.subr.mxu0 0.0
    %686 = vmatpush2.msra.mxu0 0.0
    %687 = vmatprep.subr.mxu0 0.0
    %688 = vmatpush2.msra.mxu0 0.0
    %689 = vmatprep.subr.mxu0 0.0
    %690 = vmatpush2.msra.mxu0 0.0
    %691 = vmatprep.subr.mxu0 0.0
    %692 = vmatpush2.msra.mxu0 0.0
    %693 = vmatprep.subr.mxu0 0.0
    %694 = vmatpush2.msra.mxu0 0.0
    %695 = vmatprep.subr.mxu0 0.0
    %696 = vmatpush2.msra.mxu0 0.0
    %697 = vmatprep.subr.mxu0 0.0
    %698 = vmatpush2.msra.mxu0 0.0
    %699 = vmatprep.mubr.f32.mxu0 0.0
    %700 = vmatmul.mubr.f32.gmra.mxu0 %v633
    %v701 = vpop.f32.mrf.mxu0
    %v702 = vadd.f32 0.0, %v701
    %v703 = vpop.f32.mrf.mxu0
    %704 = vdwg.mxu0
    %v705 = vlaneseq
    %v706 = vshrl.u32 %v705, 7
    %v707 = vsub.s32 0, %v706
    %v708 = vrot.slane %v619, %v707
    %v709 = vadd.f32 %v702, %v708
    %v710 = vmax.f32 %v709, 0.0
    %v711 = vand.u32 2147483647, %v709
    %v712 = vsub.f32 0.0, %v711
    %v713 = vmul.f32 %v712, 1.442695
    %v714 = vpow.pop %v713
    %v715 = vadd.f32 %v714, 1.0
    %v716 = vlog2.pop %v715
    %v717 = vmul.f32 %v716, 0.6931472
    %v718 = vadd.f32 %v710, %v717
    %v719 = vsub.f32 %v718, 0.6931472
    %v721 = vsel %vm131, %v91, 0
    %v724 = vsel %vm131, %v92, 0
    %726 = vmatprep.subr.mxu0 0.0
    %727 = vmatpush1.msra.mxu0 0.0
    %728 = vmatprep.subr.mxu0 0.0
    %729 = vmatpush1.msra.mxu0 0.0
    %730 = vmatprep.subr.mxu0 0.0
    %731 = vmatpush1.msra.mxu0 0.0
    %732 = vmatprep.subr.mxu0 0.0
    %733 = vmatpush1.msra.mxu0 0.0
    %734 = vmatprep.subr.mxu0 0.0
    %735 = vmatpush1.msra.mxu0 0.0
    %736 = vmatprep.subr.mxu0 0.0
    %737 = vmatpush1.msra.mxu0 0.0
    %738 = vmatprep.subr.mxu0 0.0
    %739 = vmatpush1.msra.mxu0 0.0
    %740 = vmatprep.subr.mxu0 0.0
    %741 = vmatpush1.msra.mxu0 0.0
    %742 = vmatprep.subr.mxu0 0.0
    %743 = vmatpush1.msra.mxu0 0.0
    %744 = vmatprep.subr.mxu0 0.0
    %745 = vmatpush1.msra.mxu0 0.0
    %746 = vmatprep.subr.mxu0 0.0
    %747 = vmatpush1.msra.mxu0 0.0
    %748 = vmatprep.subr.mxu0 0.0
    %749 = vmatpush1.msra.mxu0 0.0
    %750 = vmatprep.subr.mxu0 0.0
    %751 = vmatpush1.msra.mxu0 0.0
    %752 = vmatprep.subr.mxu0 0.0
    %753 = vmatpush1.msra.mxu0 0.0
    %754 = vmatprep.subr.mxu0 0.0
    %755 = vmatpush1.msra.mxu0 0.0
    %756 = vmatprep.subr.mxu0 0.0
    %757 = vmatpush1.msra.mxu0 %v719
    %758 = vmatprep.subr.mxu0 0.0
    %759 = vmatpush2.msra.mxu0 0.0
    %760 = vmatprep.subr.mxu0 0.0
    %761 = vmatpush2.msra.mxu0 0.0
    %762 = vmatprep.subr.mxu0 0.0
    %763 = vmatpush2.msra.mxu0 0.0
    %764 = vmatprep.subr.mxu0 0.0
    %765 = vmatpush2.msra.mxu0 0.0
    %766 = vmatprep.subr.mxu0 0.0
    %767 = vmatpush2.msra.mxu0 0.0
    %768 = vmatprep.subr.mxu0 0.0
    %769 = vmatpush2.msra.mxu0 0.0
    %770 = vmatprep.subr.mxu0 0.0
    %771 = vmatpush2.msra.mxu0 0.0
    %772 = vmatprep.subr.mxu0 0.0
    %773 = vmatpush2.msra.mxu0 0.0
    %774 = vmatprep.subr.mxu0 0.0
    %775 = vmatpush2.msra.mxu0 0.0
    %776 = vmatprep.subr.mxu0 0.0
    %777 = vmatpush2.msra.mxu0 0.0
    %778 = vmatprep.subr.mxu0 0.0
    %779 = vmatpush2.msra.mxu0 0.0
    %780 = vmatprep.subr.mxu0 0.0
    %781 = vmatpush2.msra.mxu0 0.0
    %782 = vmatprep.subr.mxu0 0.0
    %783 = vmatpush2.msra.mxu0 0.0
    %784 = vmatprep.subr.mxu0 0.0
    %785 = vmatpush2.msra.mxu0 0.0
    %786 = vmatprep.subr.mxu0 0.0
    %787 = vmatpush2.msra.mxu0 0.0
    %788 = vmatprep.subr.mxu0 0.0
    %789 = vmatpush2.msra.mxu0 0.0
    %790 = vmatprep.mubr.f32.mxu0 0.0
    %791 = vmatmul.mubr.f32.gmra.mxu0 %v721
    %v792 = vpop.f32.mrf.mxu0
    %v793 = vadd.f32 0.0, %v792
    %v794 = vpop.f32.mrf.mxu0
    %795 = vmatprep.mubr.f32.mxu0 0.0
    %796 = vmatmul.mubr.f32.gmra.mxu0 %v724
    %v797 = vpop.f32.mrf.mxu0
    %v798 = vadd.f32 0.0, %v797
    %v799 = vpop.f32.mrf.mxu0
    %800 = vdwg.mxu0
    %v801 = vmul.f32 %v374, %v793
    %v802 = vmul.f32 %v379, %v798
    %v804 = vsel %vm300, %v113, 0
    %806 = vmatprep.subr.mxu0 0.0
    %807 = vmatpush1.msra.mxu0 0.0
    %808 = vmatprep.subr.mxu0 0.0
    %809 = vmatpush1.msra.mxu0 0.0
    %810 = vmatprep.subr.mxu0 0.0
    %811 = vmatpush1.msra.mxu0 0.0
    %812 = vmatprep.subr.mxu0 0.0
    %813 = vmatpush1.msra.mxu0 0.0
    %814 = vmatprep.subr.mxu0 0.0
    %815 = vmatpush1.msra.mxu0 0.0
    %816 = vmatprep.subr.mxu0 0.0
    %817 = vmatpush1.msra.mxu0 0.0
    %818 = vmatprep.subr.mxu0 0.0
    %819 = vmatpush1.msra.mxu0 0.0
    %820 = vmatprep.subr.mxu0 0.0
    %821 = vmatpush1.msra.mxu0 0.0
    %822 = vmatprep.subr.mxu0 0.0
    %823 = vmatpush1.msra.mxu0 0.0
    %824 = vmatprep.subr.mxu0 0.0
    %825 = vmatpush1.msra.mxu0 0.0
    %826 = vmatprep.subr.mxu0 0.0
    %827 = vmatpush1.msra.mxu0 0.0
    %828 = vmatprep.subr.mxu0 0.0
    %829 = vmatpush1.msra.mxu0 0.0
    %830 = vmatprep.subr.mxu0 0.0
    %831 = vmatpush1.msra.mxu0 0.0
    %832 = vmatprep.subr.mxu0 0.0
    %833 = vmatpush1.msra.mxu0 0.0
    %834 = vmatprep.subr.mxu0 0.0
    %835 = vmatpush1.msra.mxu0 %v802
    %836 = vmatprep.subr.mxu0 0.0
    %837 = vmatpush1.msra.mxu0 %v801
    %838 = vmatprep.subr.mxu0 0.0
    %839 = vmatpush2.msra.mxu0 0.0
    %840 = vmatprep.subr.mxu0 0.0
    %841 = vmatpush2.msra.mxu0 0.0
    %842 = vmatprep.subr.mxu0 0.0
    %843 = vmatpush2.msra.mxu0 0.0
    %844 = vmatprep.subr.mxu0 0.0
    %845 = vmatpush2.msra.mxu0 0.0
    %846 = vmatprep.subr.mxu0 0.0
    %847 = vmatpush2.msra.mxu0 0.0
    %848 = vmatprep.subr.mxu0 0.0
    %849 = vmatpush2.msra.mxu0 0.0
    %850 = vmatprep.subr.mxu0 0.0
    %851 = vmatpush2.msra.mxu0 0.0
    %852 = vmatprep.subr.mxu0 0.0
    %853 = vmatpush2.msra.mxu0 0.0
    %854 = vmatprep.subr.mxu0 0.0
    %855 = vmatpush2.msra.mxu0 0.0
    %856 = vmatprep.subr.mxu0 0.0
    %857 = vmatpush2.msra.mxu0 0.0
    %858 = vmatprep.subr.mxu0 0.0
    %859 = vmatpush2.msra.mxu0 0.0
    %860 = vmatprep.subr.mxu0 0.0
    %861 = vmatpush2.msra.mxu0 0.0
    %862 = vmatprep.subr.mxu0 0.0
    %863 = vmatpush2.msra.mxu0 0.0
    %864 = vmatprep.subr.mxu0 0.0
    %865 = vmatpush2.msra.mxu0 0.0
    %866 = vmatprep.subr.mxu0 0.0
    %867 = vmatpush2.msra.mxu0 0.0
    %868 = vmatprep.subr.mxu0 0.0
    %869 = vmatpush2.msra.mxu0 0.0
    %870 = vmatprep.mubr.f32.mxu0 0.0
    %871 = vmatmul.mubr.f32.gmra.mxu0 %v804
    %v872 = vpop.f32.mrf.mxu0
    %v873 = vadd.f32 0.0, %v872
    %v874 = vpop.f32.mrf.mxu0
    %875 = vdwg.mxu0
    %v876 = vlaneseq
    %v877 = vshrl.u32 %v876, 7
    %v878 = vsub.s32 1, %v877
    %v879 = vrot.slane %v619, %v878
    %881 = vrot.lane.b32.xlu0 %v879, 32
    %v882 = vpop.permute.xlu0 %881
    %v884 = vadd.f32 %v702, %v882
    %886 = vrot.lane.b32.xlu0 %v873, 32
    %v887 = vpop.permute.xlu0 %886
    %v889 = vadd.f32 %v884, %v887
    %v890 = vmax.f32 %v889, 0.0
    %v891 = vand.u32 2147483647, %v889
    %v892 = vsub.f32 0.0, %v891
    %v893 = vmul.f32 %v892, 1.442695
    %v894 = vpow.pop %v893
    %v895 = vadd.f32 %v894, 1.0
    %v896 = vlog2.pop %v895
    %v897 = vmul.f32 %v896, 0.6931472
    %v898 = vadd.f32 %v890, %v897
    %v899 = vsub.f32 %v898, 0.6931472
    %v900 = vmax.f32 %v899, 0.0
    %v901 = vand.u32 2147483647, %v899
    %v902 = vsub.f32 0.0, %v901
    %v903 = vmul.f32 %v902, 1.442695
    %v904 = vpow.pop %v903
    %v905 = vadd.f32 %v904, 1.0
    %v906 = vlog2.pop %v905
    %v907 = vmul.f32 %v906, 0.6931472
    %v908 = vadd.f32 %v900, %v907
    %v909 = vsub.f32 %v908, 0.6931472
    %v910 = vlaneseq
    %v911 = vshrl.u32 %v910, 7
    %v912 = vsub.s32 2, %v911
    %v913 = vrot.slane %v619, %v912
    %915 = vrot.lane.b32.xlu0 %v909, 96
    %v916 = vpop.permute.xlu0 %915
    %v917 = vsel %vm631, %v916, 0
    %919 = vmatprep.subr.mxu0 0.0
    %920 = vmatpush1.msra.mxu0 0.0
    %921 = vmatprep.subr.mxu0 0.0
    %922 = vmatpush1.msra.mxu0 0.0
    %923 = vmatprep.subr.mxu0 0.0
    %924 = vmatpush1.msra.mxu0 0.0
    %925 = vmatprep.subr.mxu0 0.0
    %926 = vmatpush1.msra.mxu0 0.0
    %927 = vmatprep.subr.mxu0 0.0
    %928 = vmatpush1.msra.mxu0 0.0
    %929 = vmatprep.subr.mxu0 0.0
    %930 = vmatpush1.msra.mxu0 0.0
    %931 = vmatprep.subr.mxu0 0.0
    %932 = vmatpush1.msra.mxu0 0.0
    %933 = vmatprep.subr.mxu0 0.0
    %934 = vmatpush1.msra.mxu0 0.0
    %935 = vmatprep.subr.mxu0 0.0
    %936 = vmatpush1.msra.mxu0 0.0
    %937 = vmatprep.subr.mxu0 0.0
    %938 = vmatpush1.msra.mxu0 0.0
    %939 = vmatprep.subr.mxu0 0.0
    %940 = vmatpush1.msra.mxu0 0.0
    %941 = vmatprep.subr.mxu0 0.0
    %942 = vmatpush1.msra.mxu0 0.0
    %943 = vmatprep.subr.mxu0 0.0
    %944 = vmatpush1.msra.mxu0 %v582
    %945 = vmatprep.subr.mxu0 0.0
    %946 = vmatpush1.msra.mxu0 %v581
    %947 = vmatprep.subr.mxu0 0.0
    %948 = vmatpush1.msra.mxu0 %v580
    %949 = vmatprep.subr.mxu0 0.0
    %950 = vmatpush1.msra.mxu0 %v579
    %951 = vmatprep.subr.mxu0 0.0
    %952 = vmatpush2.msra.mxu0 0.0
    %953 = vmatprep.subr.mxu0 0.0
    %954 = vmatpush2.msra.mxu0 0.0
    %955 = vmatprep.subr.mxu0 0.0
    %956 = vmatpush2.msra.mxu0 0.0
    %957 = vmatprep.subr.mxu0 0.0
    %958 = vmatpush2.msra.mxu0 0.0
    %959 = vmatprep.subr.mxu0 0.0
    %960 = vmatpush2.msra.mxu0 0.0
    %961 = vmatprep.subr.mxu0 0.0
    %962 = vmatpush2.msra.mxu0 0.0
    %963 = vmatprep.subr.mxu0 0.0
    %964 = vmatpush2.msra.mxu0 0.0
    %965 = vmatprep.subr.mxu0 0.0
    %966 = vmatpush2.msra.mxu0 0.0
    %967 = vmatprep.subr.mxu0 0.0
    %968 = vmatpush2.msra.mxu0 0.0
    %969 = vmatprep.subr.mxu0 0.0
    %970 = vmatpush2.msra.mxu0 0.0
    %971 = vmatprep.subr.mxu0 0.0
    %972 = vmatpush2.msra.mxu0 0.0
    %973 = vmatprep.subr.mxu0 0.0
    %974 = vmatpush2.msra.mxu0 0.0
    %975 = vmatprep.subr.mxu0 0.0
    %976 = vmatpush2.msra.mxu0 0.0
    %977 = vmatprep.subr.mxu0 0.0
    %978 = vmatpush2.msra.mxu0 0.0
    %979 = vmatprep.subr.mxu0 0.0
    %980 = vmatpush2.msra.mxu0 0.0
    %981 = vmatprep.subr.mxu0 0.0
    %982 = vmatpush2.msra.mxu0 0.0
    %983 = vmatprep.mubr.f32.mxu0 0.0
    %984 = vmatmul.mubr.f32.gmra.mxu0 %v917
    %v985 = vpop.f32.mrf.mxu0
    %v986 = vadd.f32 %v913, %v985
    %v987 = vpop.f32.mrf.mxu0
    %988 = vdwg.mxu0
    %v989 = vmax.f32 %v986, 0.0
    %v990 = vand.u32 2147483647, %v986
    %v991 = vsub.f32 0.0, %v990
    %v992 = vmul.f32 %v991, 1.442695
    %v993 = vpow.pop %v992
    %v994 = vadd.f32 %v993, 1.0
    %v995 = vlog2.pop %v994
    %v996 = vmul.f32 %v995, 0.6931472
    %v997 = vadd.f32 %v989, %v996
    %v998 = vsub.f32 %v997, 0.6931472
    %v1000 = vsel %vm631, %v998, 0
    %1002 = vmatprep.subr.mxu0 0.0
    %1003 = vmatpush1.msra.mxu0 0.0
    %1004 = vmatprep.subr.mxu0 0.0
    %1005 = vmatpush1.msra.mxu0 0.0
    %1006 = vmatprep.subr.mxu0 0.0
    %1007 = vmatpush1.msra.mxu0 0.0
    %1008 = vmatprep.subr.mxu0 0.0
    %1009 = vmatpush1.msra.mxu0 0.0
    %1010 = vmatprep.subr.mxu0 0.0
    %1011 = vmatpush1.msra.mxu0 0.0
    %1012 = vmatprep.subr.mxu0 0.0
    %1013 = vmatpush1.msra.mxu0 0.0
    %1014 = vmatprep.subr.mxu0 0.0
    %1015 = vmatpush1.msra.mxu0 0.0
    %1016 = vmatprep.subr.mxu0 0.0
    %1017 = vmatpush1.msra.mxu0 0.0
    %1018 = vmatprep.subr.mxu0 0.0
    %1019 = vmatpush1.msra.mxu0 0.0
    %1020 = vmatprep.subr.mxu0 0.0
    %1021 = vmatpush1.msra.mxu0 0.0
    %1022 = vmatprep.subr.mxu0 0.0
    %1023 = vmatpush1.msra.mxu0 0.0
    %1024 = vmatprep.subr.mxu0 0.0
    %1025 = vmatpush1.msra.mxu0 0.0
    %1026 = vmatprep.subr.mxu0 0.0
    %1027 = vmatpush1.msra.mxu0 %v586
    %1028 = vmatprep.subr.mxu0 0.0
    %1029 = vmatpush1.msra.mxu0 %v585
    %1030 = vmatprep.subr.mxu0 0.0
    %1031 = vmatpush1.msra.mxu0 %v584
    %1032 = vmatprep.subr.mxu0 0.0
    %1033 = vmatpush1.msra.mxu0 %v583
    %1034 = vmatprep.subr.mxu0 0.0
    %1035 = vmatpush2.msra.mxu0 0.0
    %1036 = vmatprep.subr.mxu0 0.0
    %1037 = vmatpush2.msra.mxu0 0.0
    %1038 = vmatprep.subr.mxu0 0.0
    %1039 = vmatpush2.msra.mxu0 0.0
    %1040 = vmatprep.subr.mxu0 0.0
    %1041 = vmatpush2.msra.mxu0 0.0
    %1042 = vmatprep.subr.mxu0 0.0
    %1043 = vmatpush2.msra.mxu0 0.0
    %1044 = vmatprep.subr.mxu0 0.0
    %1045 = vmatpush2.msra.mxu0 0.0
    %1046 = vmatprep.subr.mxu0 0.0
    %1047 = vmatpush2.msra.mxu0 0.0
    %1048 = vmatprep.subr.mxu0 0.0
    %1049 = vmatpush2.msra.mxu0 0.0
    %1050 = vmatprep.subr.mxu0 0.0
    %1051 = vmatpush2.msra.mxu0 0.0
    %1052 = vmatprep.subr.mxu0 0.0
    %1053 = vmatpush2.msra.mxu0 0.0
    %1054 = vmatprep.subr.mxu0 0.0
    %1055 = vmatpush2.msra.mxu0 0.0
    %1056 = vmatprep.subr.mxu0 0.0
    %1057 = vmatpush2.msra.mxu0 0.0
    %1058 = vmatprep.subr.mxu0 0.0
    %1059 = vmatpush2.msra.mxu0 0.0
    %1060 = vmatprep.subr.mxu0 0.0
    %1061 = vmatpush2.msra.mxu0 0.0
    %1062 = vmatprep.subr.mxu0 0.0
    %1063 = vmatpush2.msra.mxu0 0.0
    %1064 = vmatprep.subr.mxu0 0.0
    %1065 = vmatpush2.msra.mxu0 0.0
    %1066 = vmatprep.mubr.f32.mxu0 0.0
    %1067 = vmatmul.mubr.f32.gmra.mxu0 %v1000
    %v1068 = vpop.f32.mrf.mxu0
    %v1069 = vadd.f32 0.0, %v1068
    %v1070 = vpop.f32.mrf.mxu0
    %1071 = vdwg.mxu0
    %1073 = vrot.lane.b32.xlu0 %v1069, 32
    %v1074 = vpop.permute.xlu0 %1073
    %v1076 = vadd.f32 %v899, %v1074
    %v1077 = vlaneseq
    %v1078 = vshrl.u32 %v1077, 7
    %v1079 = vsub.s32 3, %v1078
    %v1080 = vrot.slane %v619, %v1079
    %1082 = vrot.lane.b32.xlu0 %v1080, 32
    %v1083 = vpop.permute.xlu0 %1082
    %v1085 = vadd.f32 %v1076, %v1083
    %v1086 = vlaneseq
    %v1087 = vshrl.u32 %v1086, 7
    %v1088 = vsub.s32 7, %v1087
    %v1089 = vrot.slane %v619, %v1088
    %v1090 = vmul.f32 %v1089, %v570
    %v1091 = vmax.f32 %v1085, 0.0
    %v1092 = vand.u32 2147483647, %v1085
    %v1093 = vsub.f32 0.0, %v1092
    %v1094 = vmul.f32 %v1093, 1.442695
    %v1095 = vpow.pop %v1094
    %v1096 = vadd.f32 %v1095, 1.0
    %v1097 = vlog2.pop %v1096
    %v1098 = vmul.f32 %v1097, 0.6931472
    %v1099 = vadd.f32 %v1091, %v1098
    %v1100 = vsub.f32 %v1099, 0.6931472
    %1102 = vrot.lane.b32.xlu0 %v1100, 96
    %v1103 = vpop.permute.xlu0 %1102
    %v1104 = vsel %vm631, %v1103, 0
    %1106 = vmatprep.subr.mxu0 0.0
    %1107 = vmatpush1.msra.mxu0 0.0
    %1108 = vmatprep.subr.mxu0 0.0
    %1109 = vmatpush1.msra.mxu0 0.0
    %1110 = vmatprep.subr.mxu0 0.0
    %1111 = vmatpush1.msra.mxu0 0.0
    %1112 = vmatprep.subr.mxu0 0.0
    %1113 = vmatpush1.msra.mxu0 0.0
    %1114 = vmatprep.subr.mxu0 0.0
    %1115 = vmatpush1.msra.mxu0 0.0
    %1116 = vmatprep.subr.mxu0 0.0
    %1117 = vmatpush1.msra.mxu0 0.0
    %1118 = vmatprep.subr.mxu0 0.0
    %1119 = vmatpush1.msra.mxu0 0.0
    %1120 = vmatprep.subr.mxu0 0.0
    %1121 = vmatpush1.msra.mxu0 0.0
    %1122 = vmatprep.subr.mxu0 0.0
    %1123 = vmatpush1.msra.mxu0 0.0
    %1124 = vmatprep.subr.mxu0 0.0
    %1125 = vmatpush1.msra.mxu0 0.0
    %1126 = vmatprep.subr.mxu0 0.0
    %1127 = vmatpush1.msra.mxu0 0.0
    %1128 = vmatprep.subr.mxu0 0.0
    %1129 = vmatpush1.msra.mxu0 0.0
    %1130 = vmatprep.subr.mxu0 0.0
    %1131 = vmatpush1.msra.mxu0 %v590
    %1132 = vmatprep.subr.mxu0 0.0
    %1133 = vmatpush1.msra.mxu0 %v589
    %1134 = vmatprep.subr.mxu0 0.0
    %1135 = vmatpush1.msra.mxu0 %v588
    %1136 = vmatprep.subr.mxu0 0.0
    %1137 = vmatpush1.msra.mxu0 %v587
    %1138 = vmatprep.subr.mxu0 0.0
    %1139 = vmatpush2.msra.mxu0 0.0
    %1140 = vmatprep.subr.mxu0 0.0
    %1141 = vmatpush2.msra.mxu0 0.0
    %1142 = vmatprep.subr.mxu0 0.0
    %1143 = vmatpush2.msra.mxu0 0.0
    %1144 = vmatprep.subr.mxu0 0.0
    %1145 = vmatpush2.msra.mxu0 0.0
    %1146 = vmatprep.subr.mxu0 0.0
    %1147 = vmatpush2.msra.mxu0 0.0
    %1148 = vmatprep.subr.mxu0 0.0
    %1149 = vmatpush2.msra.mxu0 0.0
    %1150 = vmatprep.subr.mxu0 0.0
    %1151 = vmatpush2.msra.mxu0 0.0
    %1152 = vmatprep.subr.mxu0 0.0
    %1153 = vmatpush2.msra.mxu0 0.0
    %1154 = vmatprep.subr.mxu0 0.0
    %1155 = vmatpush2.msra.mxu0 0.0
    %1156 = vmatprep.subr.mxu0 0.0
    %1157 = vmatpush2.msra.mxu0 0.0
    %1158 = vmatprep.subr.mxu0 0.0
    %1159 = vmatpush2.msra.mxu0 0.0
    %1160 = vmatprep.subr.mxu0 0.0
    %1161 = vmatpush2.msra.mxu0 0.0
    %1162 = vmatprep.subr.mxu0 0.0
    %1163 = vmatpush2.msra.mxu0 0.0
    %1164 = vmatprep.subr.mxu0 0.0
    %1165 = vmatpush2.msra.mxu0 0.0
    %1166 = vmatprep.subr.mxu0 0.0
    %1167 = vmatpush2.msra.mxu0 0.0
    %1168 = vmatprep.subr.mxu0 0.0
    %1169 = vmatpush2.msra.mxu0 0.0
    %1170 = vmatprep.mubr.f32.mxu0 0.0
    %1171 = vmatmul.mubr.f32.gmra.mxu0 %v1104
    %v1172 = vpop.f32.mrf.mxu0
    %v1173 = vadd.f32 0.0, %v1172
    %v1174 = vpop.f32.mrf.mxu0
    %1175 = vdwg.mxu0
    %v1176 = vadd.f32 %v1090, %v1173
    %v1177 = vlaneseq
    %v1178 = vshrl.u32 %v1177, 7
    %v1179 = vsub.s32 4, %v1178
    %v1180 = vrot.slane %v619, %v1179
    %v1181 = vadd.f32 %v1176, %v1180
    %v1182 = vmax.f32 %v1181, 0.0
    %v1183 = vand.u32 2147483647, %v1181
    %v1184 = vsub.f32 0.0, %v1183
    %v1185 = vmul.f32 %v1184, 1.442695
    %v1186 = vpow.pop %v1185
    %v1187 = vadd.f32 %v1186, 1.0
    %v1188 = vlog2.pop %v1187
    %v1189 = vmul.f32 %v1188, 0.6931472
    %v1190 = vadd.f32 %v1182, %v1189
    %v1191 = vsub.f32 %v1190, 0.6931472
    %v1192 = vlaneseq
    %v1193 = vshrl.u32 %v1192, 7
    %v1194 = vsub.s32 5, %v1193
    %v1195 = vrot.slane %v619, %v1194
    %v1197 = vsel %vm631, %v1191, 0
    %1199 = vmatprep.subr.mxu0 0.0
    %1200 = vmatpush1.msra.mxu0 0.0
    %1201 = vmatprep.subr.mxu0 0.0
    %1202 = vmatpush1.msra.mxu0 0.0
    %1203 = vmatprep.subr.mxu0 0.0
    %1204 = vmatpush1.msra.mxu0 0.0
    %1205 = vmatprep.subr.mxu0 0.0
    %1206 = vmatpush1.msra.mxu0 0.0
    %1207 = vmatprep.subr.mxu0 0.0
    %1208 = vmatpush1.msra.mxu0 0.0
    %1209 = vmatprep.subr.mxu0 0.0
    %1210 = vmatpush1.msra.mxu0 0.0
    %1211 = vmatprep.subr.mxu0 0.0
    %1212 = vmatpush1.msra.mxu0 0.0
    %1213 = vmatprep.subr.mxu0 0.0
    %1214 = vmatpush1.msra.mxu0 0.0
    %1215 = vmatprep.subr.mxu0 0.0
    %1216 = vmatpush1.msra.mxu0 0.0
    %1217 = vmatprep.subr.mxu0 0.0
    %1218 = vmatpush1.msra.mxu0 0.0
    %1219 = vmatprep.subr.mxu0 0.0
    %1220 = vmatpush1.msra.mxu0 0.0
    %1221 = vmatprep.subr.mxu0 0.0
    %1222 = vmatpush1.msra.mxu0 0.0
    %1223 = vmatprep.subr.mxu0 0.0
    %1224 = vmatpush1.msra.mxu0 %v594
    %1225 = vmatprep.subr.mxu0 0.0
    %1226 = vmatpush1.msra.mxu0 %v593
    %1227 = vmatprep.subr.mxu0 0.0
    %1228 = vmatpush1.msra.mxu0 %v592
    %1229 = vmatprep.subr.mxu0 0.0
    %1230 = vmatpush1.msra.mxu0 %v591
    %1231 = vmatprep.subr.mxu0 0.0
    %1232 = vmatpush2.msra.mxu0 0.0
    %1233 = vmatprep.subr.mxu0 0.0
    %1234 = vmatpush2.msra.mxu0 0.0
    %1235 = vmatprep.subr.mxu0 0.0
    %1236 = vmatpush2.msra.mxu0 0.0
    %1237 = vmatprep.subr.mxu0 0.0
    %1238 = vmatpush2.msra.mxu0 0.0
    %1239 = vmatprep.subr.mxu0 0.0
    %1240 = vmatpush2.msra.mxu0 0.0
    %1241 = vmatprep.subr.mxu0 0.0
    %1242 = vmatpush2.msra.mxu0 0.0
    %1243 = vmatprep.subr.mxu0 0.0
    %1244 = vmatpush2.msra.mxu0 0.0
    %1245 = vmatprep.subr.mxu0 0.0
    %1246 = vmatpush2.msra.mxu0 0.0
    %1247 = vmatprep.subr.mxu0 0.0
    %1248 = vmatpush2.msra.mxu0 0.0
    %1249 = vmatprep.subr.mxu0 0.0
    %1250 = vmatpush2.msra.mxu0 0.0
    %1251 = vmatprep.subr.mxu0 0.0
    %1252 = vmatpush2.msra.mxu0 0.0
    %1253 = vmatprep.subr.mxu0 0.0
    %1254 = vmatpush2.msra.mxu0 0.0
    %1255 = vmatprep.subr.mxu0 0.0
    %1256 = vmatpush2.msra.mxu0 0.0
    %1257 = vmatprep.subr.mxu0 0.0
    %1258 = vmatpush2.msra.mxu0 0.0
    %1259 = vmatprep.subr.mxu0 0.0
    %1260 = vmatpush2.msra.mxu0 0.0
    %1261 = vmatprep.subr.mxu0 0.0
    %1262 = vmatpush2.msra.mxu0 0.0
    %1263 = vmatprep.mubr.f32.mxu0 0.0
    %1264 = vmatmul.mubr.f32.gmra.mxu0 %v1197
    %v1265 = vpop.f32.mrf.mxu0
    %v1266 = vadd.f32 %v1195, %v1265
    %v1267 = vpop.f32.mrf.mxu0
    %1268 = vdwg.mxu0
    %v1269 = vmax.f32 %v1266, 0.0
    %v1270 = vand.u32 2147483647, %v1266
    %v1271 = vsub.f32 0.0, %v1270
    %v1272 = vmul.f32 %v1271, 1.442695
    %v1273 = vpow.pop %v1272
    %v1274 = vadd.f32 %v1273, 1.0
    %v1275 = vlog2.pop %v1274
    %v1276 = vmul.f32 %v1275, 0.6931472
    %v1277 = vadd.f32 %v1269, %v1276
    %v1278 = vsub.f32 %v1277, 0.6931472
    %v1280 = vsel %vm631, %v1278, 0
    %1282 = vmatprep.subr.mxu0 0.0
    %1283 = vmatpush1.msra.mxu0 0.0
    %1284 = vmatprep.subr.mxu0 0.0
    %1285 = vmatpush1.msra.mxu0 0.0
    %1286 = vmatprep.subr.mxu0 0.0
    %1287 = vmatpush1.msra.mxu0 0.0
    %1288 = vmatprep.subr.mxu0 0.0
    %1289 = vmatpush1.msra.mxu0 0.0
    %1290 = vmatprep.subr.mxu0 0.0
    %1291 = vmatpush1.msra.mxu0 0.0
    %1292 = vmatprep.subr.mxu0 0.0
    %1293 = vmatpush1.msra.mxu0 0.0
    %1294 = vmatprep.subr.mxu0 0.0
    %1295 = vmatpush1.msra.mxu0 0.0
    %1296 = vmatprep.subr.mxu0 0.0
    %1297 = vmatpush1.msra.mxu0 0.0
    %1298 = vmatprep.subr.mxu0 0.0
    %1299 = vmatpush1.msra.mxu0 0.0
    %1300 = vmatprep.subr.mxu0 0.0
    %1301 = vmatpush1.msra.mxu0 0.0
    %1302 = vmatprep.subr.mxu0 0.0
    %1303 = vmatpush1.msra.mxu0 0.0
    %1304 = vmatprep.subr.mxu0 0.0
    %1305 = vmatpush1.msra.mxu0 0.0
    %1306 = vmatprep.subr.mxu0 0.0
    %1307 = vmatpush1.msra.mxu0 %v598
    %1308 = vmatprep.subr.mxu0 0.0
    %1309 = vmatpush1.msra.mxu0 %v597
    %1310 = vmatprep.subr.mxu0 0.0
    %1311 = vmatpush1.msra.mxu0 %v596
    %1312 = vmatprep.subr.mxu0 0.0
    %1313 = vmatpush1.msra.mxu0 %v595
    %1314 = vmatprep.subr.mxu0 0.0
    %1315 = vmatpush2.msra.mxu0 0.0
    %1316 = vmatprep.subr.mxu0 0.0
    %1317 = vmatpush2.msra.mxu0 0.0
    %1318 = vmatprep.subr.mxu0 0.0
    %1319 = vmatpush2.msra.mxu0 0.0
    %1320 = vmatprep.subr.mxu0 0.0
    %1321 = vmatpush2.msra.mxu0 0.0
    %1322 = vmatprep.subr.mxu0 0.0
    %1323 = vmatpush2.msra.mxu0 0.0
    %1324 = vmatprep.subr.mxu0 0.0
    %1325 = vmatpush2.msra.mxu0 0.0
    %1326 = vmatprep.subr.mxu0 0.0
    %1327 = vmatpush2.msra.mxu0 0.0
    %1328 = vmatprep.subr.mxu0 0.0
    %1329 = vmatpush2.msra.mxu0 0.0
    %1330 = vmatprep.subr.mxu0 0.0
    %1331 = vmatpush2.msra.mxu0 0.0
    %1332 = vmatprep.subr.mxu0 0.0
    %1333 = vmatpush2.msra.mxu0 0.0
    %1334 = vmatprep.subr.mxu0 0.0
    %1335 = vmatpush2.msra.mxu0 0.0
    %1336 = vmatprep.subr.mxu0 0.0
    %1337 = vmatpush2.msra.mxu0 0.0
    %1338 = vmatprep.subr.mxu0 0.0
    %1339 = vmatpush2.msra.mxu0 0.0
    %1340 = vmatprep.subr.mxu0 0.0
    %1341 = vmatpush2.msra.mxu0 0.0
    %1342 = vmatprep.subr.mxu0 0.0
    %1343 = vmatpush2.msra.mxu0 0.0
    %1344 = vmatprep.subr.mxu0 0.0
    %1345 = vmatpush2.msra.mxu0 0.0
    %1346 = vmatprep.mubr.f32.mxu0 0.0
    %1347 = vmatmul.mubr.f32.gmra.mxu0 %v1280
    %v1348 = vpop.f32.mrf.mxu0
    %v1349 = vadd.f32 0.0, %v1348
    %v1350 = vpop.f32.mrf.mxu0
    %1351 = vdwg.mxu0
    %v1352 = vadd.f32 %v1181, %v1349
    %v1353 = vlaneseq
    %v1354 = vshrl.u32 %v1353, 7
    %v1355 = vsub.s32 6, %v1354
    %v1356 = vrot.slane %v619, %v1355
    %v1357 = vadd.f32 %v1352, %v1356
    %v1358 = vmax.f32 %v1357, 0.0
    %v1359 = vand.u32 2147483647, %v1357
    %v1360 = vsub.f32 0.0, %v1359
    %v1361 = vmul.f32 %v1360, 1.442695
    %v1362 = vpow.pop %v1361
    %v1363 = vadd.f32 %v1362, 1.0
    %v1364 = vlog2.pop %v1363
    %v1365 = vmul.f32 %v1364, 0.6931472
    %v1366 = vadd.f32 %v1358, %v1365
    %v1367 = vsub.f32 %v1366, 0.6931472
    %v1369 = vsel %vm631, %v1367, 0
    %1371 = vmatprep.subr.mxu0 0.0
    %1372 = vmatpush1.msra.mxu0 0.0
    %1373 = vmatprep.subr.mxu0 0.0
    %1374 = vmatpush1.msra.mxu0 0.0
    %1375 = vmatprep.subr.mxu0 0.0
    %1376 = vmatpush1.msra.mxu0 0.0
    %1377 = vmatprep.subr.mxu0 0.0
    %1378 = vmatpush1.msra.mxu0 0.0
    %1379 = vmatprep.subr.mxu0 0.0
    %1380 = vmatpush1.msra.mxu0 0.0
    %1381 = vmatprep.subr.mxu0 0.0
    %1382 = vmatpush1.msra.mxu0 0.0
    %1383 = vmatprep.subr.mxu0 0.0
    %1384 = vmatpush1.msra.mxu0 0.0
    %1385 = vmatprep.subr.mxu0 0.0
    %1386 = vmatpush1.msra.mxu0 0.0
    %1387 = vmatprep.subr.mxu0 0.0
    %1388 = vmatpush1.msra.mxu0 0.0
    %1389 = vmatprep.subr.mxu0 0.0
    %1390 = vmatpush1.msra.mxu0 0.0
    %1391 = vmatprep.subr.mxu0 0.0
    %1392 = vmatpush1.msra.mxu0 0.0
    %1393 = vmatprep.subr.mxu0 0.0
    %1394 = vmatpush1.msra.mxu0 0.0
    %1395 = vmatprep.subr.mxu0 0.0
    %1396 = vmatpush1.msra.mxu0 %v578
    %1397 = vmatprep.subr.mxu0 0.0
    %1398 = vmatpush1.msra.mxu0 %v577
    %1399 = vmatprep.subr.mxu0 0.0
    %1400 = vmatpush1.msra.mxu0 %v576
    %1401 = vmatprep.subr.mxu0 0.0
    %1402 = vmatpush1.msra.mxu0 %v575
    %1403 = vmatprep.subr.mxu0 0.0
    %1404 = vmatpush2.msra.mxu0 0.0
    %1405 = vmatprep.subr.mxu0 0.0
    %1406 = vmatpush2.msra.mxu0 0.0
    %1407 = vmatprep.subr.mxu0 0.0
    %1408 = vmatpush2.msra.mxu0 0.0
    %1409 = vmatprep.subr.mxu0 0.0
    %1410 = vmatpush2.msra.mxu0 0.0
    %1411 = vmatprep.subr.mxu0 0.0
    %1412 = vmatpush2.msra.mxu0 0.0
    %1413 = vmatprep.subr.mxu0 0.0
    %1414 = vmatpush2.msra.mxu0 0.0
    %1415 = vmatprep.subr.mxu0 0.0
    %1416 = vmatpush2.msra.mxu0 0.0
    %1417 = vmatprep.subr.mxu0 0.0
    %1418 = vmatpush2.msra.mxu0 0.0
    %1419 = vmatprep.subr.mxu0 0.0
    %1420 = vmatpush2.msra.mxu0 0.0
    %1421 = vmatprep.subr.mxu0 0.0
    %1422 = vmatpush2.msra.mxu0 0.0
    %1423 = vmatprep.subr.mxu0 0.0
    %1424 = vmatpush2.msra.mxu0 0.0
    %1425 = vmatprep.subr.mxu0 0.0
    %1426 = vmatpush2.msra.mxu0 0.0
    %1427 = vmatprep.subr.mxu0 0.0
    %1428 = vmatpush2.msra.mxu0 0.0
    %1429 = vmatprep.subr.mxu0 0.0
    %1430 = vmatpush2.msra.mxu0 0.0
    %1431 = vmatprep.subr.mxu0 0.0
    %1432 = vmatpush2.msra.mxu0 0.0
    %1433 = vmatprep.subr.mxu0 0.0
    %1434 = vmatpush2.msra.mxu0 0.0
    %1435 = vmatprep.mubr.f32.mxu0 0.0
    %1436 = vmatmul.mubr.f32.gmra.mxu0 %v1369
    %v1437 = vpop.f32.mrf.mxu0
    %v1438 = vadd.f32 0.0, %v1437
    %v1439 = vpop.f32.mrf.mxu0
    %1440 = vdwg.mxu0
    %v1441 = vlaneseq
    %v1442 = vshrl.u32 %v1441, 7
    %v1443 = vsub.s32 0, %v1442
    %v1444 = vrot.slane %v620, %v1443
    %v1445 = vadd.f32 %v1438, %v1444
    %v1446 = vmax.f32 %v1445, 0.0
    %v1447 = vand.u32 2147483647, %v1445
    %v1448 = vsub.f32 0.0, %v1447
    %v1449 = vmul.f32 %v1448, 1.442695
    %v1450 = vpow.pop %v1449
    %v1451 = vadd.f32 %v1450, 1.0
    %v1452 = vlog2.pop %v1451
    %v1453 = vmul.f32 %v1452, 0.6931472
    %v1454 = vadd.f32 %v1446, %v1453
    %v1455 = vsub.f32 %v1454, 0.6931472
    %1456 = vmatprep.subr.mxu0 0.0
    %1457 = vmatpush1.msra.mxu0 0.0
    %1458 = vmatprep.subr.mxu0 0.0
    %1459 = vmatpush1.msra.mxu0 0.0
    %1460 = vmatprep.subr.mxu0 0.0
    %1461 = vmatpush1.msra.mxu0 0.0
    %1462 = vmatprep.subr.mxu0 0.0
    %1463 = vmatpush1.msra.mxu0 0.0
    %1464 = vmatprep.subr.mxu0 0.0
    %1465 = vmatpush1.msra.mxu0 0.0
    %1466 = vmatprep.subr.mxu0 0.0
    %1467 = vmatpush1.msra.mxu0 0.0
    %1468 = vmatprep.subr.mxu0 0.0
    %1469 = vmatpush1.msra.mxu0 0.0
    %1470 = vmatprep.subr.mxu0 0.0
    %1471 = vmatpush1.msra.mxu0 0.0
    %1472 = vmatprep.subr.mxu0 0.0
    %1473 = vmatpush1.msra.mxu0 0.0
    %1474 = vmatprep.subr.mxu0 0.0
    %1475 = vmatpush1.msra.mxu0 0.0
    %1476 = vmatprep.subr.mxu0 0.0
    %1477 = vmatpush1.msra.mxu0 0.0
    %1478 = vmatprep.subr.mxu0 0.0
    %1479 = vmatpush1.msra.mxu0 0.0
    %1480 = vmatprep.subr.mxu0 0.0
    %1481 = vmatpush1.msra.mxu0 0.0
    %1482 = vmatprep.subr.mxu0 0.0
    %1483 = vmatpush1.msra.mxu0 0.0
    %1484 = vmatprep.subr.mxu0 0.0
    %1485 = vmatpush1.msra.mxu0 0.0
    %1486 = vmatprep.subr.mxu0 0.0
    %1487 = vmatpush1.msra.mxu0 %v1455
    %1488 = vmatprep.subr.mxu0 0.0
    %1489 = vmatpush2.msra.mxu0 0.0
    %1490 = vmatprep.subr.mxu0 0.0
    %1491 = vmatpush2.msra.mxu0 0.0
    %1492 = vmatprep.subr.mxu0 0.0
    %1493 = vmatpush2.msra.mxu0 0.0
    %1494 = vmatprep.subr.mxu0 0.0
    %1495 = vmatpush2.msra.mxu0 0.0
    %1496 = vmatprep.subr.mxu0 0.0
    %1497 = vmatpush2.msra.mxu0 0.0
    %1498 = vmatprep.subr.mxu0 0.0
    %1499 = vmatpush2.msra.mxu0 0.0
    %1500 = vmatprep.subr.mxu0 0.0
    %1501 = vmatpush2.msra.mxu0 0.0
    %1502 = vmatprep.subr.mxu0 0.0
    %1503 = vmatpush2.msra.mxu0 0.0
    %1504 = vmatprep.subr.mxu0 0.0
    %1505 = vmatpush2.msra.mxu0 0.0
    %1506 = vmatprep.subr.mxu0 0.0
    %1507 = vmatpush2.msra.mxu0 0.0
    %1508 = vmatprep.subr.mxu0 0.0
    %1509 = vmatpush2.msra.mxu0 0.0
    %1510 = vmatprep.subr.mxu0 0.0
    %1511 = vmatpush2.msra.mxu0 0.0
    %1512 = vmatprep.subr.mxu0 0.0
    %1513 = vmatpush2.msra.mxu0 0.0
    %1514 = vmatprep.subr.mxu0 0.0
    %1515 = vmatpush2.msra.mxu0 0.0
    %1516 = vmatprep.subr.mxu0 0.0
    %1517 = vmatpush2.msra.mxu0 0.0
    %1518 = vmatprep.subr.mxu0 0.0
    %1519 = vmatpush2.msra.mxu0 0.0
    %1520 = vmatprep.mubr.f32.mxu0 0.0
    %1521 = vmatmul.mubr.f32.gmra.mxu0 %v721
    %v1522 = vpop.f32.mrf.mxu0
    %v1523 = vadd.f32 0.0, %v1522
    %v1524 = vpop.f32.mrf.mxu0
    %1525 = vmatprep.mubr.f32.mxu0 0.0
    %1526 = vmatmul.mubr.f32.gmra.mxu0 %v724
    %v1527 = vpop.f32.mrf.mxu0
    %v1528 = vadd.f32 0.0, %v1527
    %v1529 = vpop.f32.mrf.mxu0
    %1530 = vdwg.mxu0
    %1533 = vrot.lane.b32.xlu0 %v1523, 32
    %v1534 = vpop.permute.xlu0 %1533
    %1535 = vrot.lane.b32.xlu0 %v1528, 32
    %v1536 = vpop.permute.xlu0 %1535
    %v1539 = vmul.f32 %v374, %v1534
    %v1540 = vmul.f32 %v379, %v1536
    %1543 = vrot.lane.b32.xlu0 %v1539, 96
    %v1544 = vpop.permute.xlu0 %1543
    %1545 = vrot.lane.b32.xlu0 %v1540, 96
    %v1546 = vpop.permute.xlu0 %1545
    %1549 = vmatprep.subr.mxu0 0.0
    %1550 = vmatpush1.msra.mxu0 0.0
    %1551 = vmatprep.subr.mxu0 0.0
    %1552 = vmatpush1.msra.mxu0 0.0
    %1553 = vmatprep.subr.mxu0 0.0
    %1554 = vmatpush1.msra.mxu0 0.0
    %1555 = vmatprep.subr.mxu0 0.0
    %1556 = vmatpush1.msra.mxu0 0.0
    %1557 = vmatprep.subr.mxu0 0.0
    %1558 = vmatpush1.msra.mxu0 0.0
    %1559 = vmatprep.subr.mxu0 0.0
    %1560 = vmatpush1.msra.mxu0 0.0
    %1561 = vmatprep.subr.mxu0 0.0
    %1562 = vmatpush1.msra.mxu0 0.0
    %1563 = vmatprep.subr.mxu0 0.0
    %1564 = vmatpush1.msra.mxu0 0.0
    %1565 = vmatprep.subr.mxu0 0.0
    %1566 = vmatpush1.msra.mxu0 0.0
    %1567 = vmatprep.subr.mxu0 0.0
    %1568 = vmatpush1.msra.mxu0 0.0
    %1569 = vmatprep.subr.mxu0 0.0
    %1570 = vmatpush1.msra.mxu0 0.0
    %1571 = vmatprep.subr.mxu0 0.0
    %1572 = vmatpush1.msra.mxu0 0.0
    %1573 = vmatprep.subr.mxu0 0.0
    %1574 = vmatpush1.msra.mxu0 0.0
    %1575 = vmatprep.subr.mxu0 0.0
    %1576 = vmatpush1.msra.mxu0 0.0
    %1577 = vmatprep.subr.mxu0 0.0
    %1578 = vmatpush1.msra.mxu0 %v1546
    %1579 = vmatprep.subr.mxu0 0.0
    %1580 = vmatpush1.msra.mxu0 %v1544
    %1581 = vmatprep.subr.mxu0 0.0
    %1582 = vmatpush2.msra.mxu0 0.0
    %1583 = vmatprep.subr.mxu0 0.0
    %1584 = vmatpush2.msra.mxu0 0.0
    %1585 = vmatprep.subr.mxu0 0.0
    %1586 = vmatpush2.msra.mxu0 0.0
    %1587 = vmatprep.subr.mxu0 0.0
    %1588 = vmatpush2.msra.mxu0 0.0
    %1589 = vmatprep.subr.mxu0 0.0
    %1590 = vmatpush2.msra.mxu0 0.0
    %1591 = vmatprep.subr.mxu0 0.0
    %1592 = vmatpush2.msra.mxu0 0.0
    %1593 = vmatprep.subr.mxu0 0.0
    %1594 = vmatpush2.msra.mxu0 0.0
    %1595 = vmatprep.subr.mxu0 0.0
    %1596 = vmatpush2.msra.mxu0 0.0
    %1597 = vmatprep.subr.mxu0 0.0
    %1598 = vmatpush2.msra.mxu0 0.0
    %1599 = vmatprep.subr.mxu0 0.0
    %1600 = vmatpush2.msra.mxu0 0.0
    %1601 = vmatprep.subr.mxu0 0.0
    %1602 = vmatpush2.msra.mxu0 0.0
    %1603 = vmatprep.subr.mxu0 0.0
    %1604 = vmatpush2.msra.mxu0 0.0
    %1605 = vmatprep.subr.mxu0 0.0
    %1606 = vmatpush2.msra.mxu0 0.0
    %1607 = vmatprep.subr.mxu0 0.0
    %1608 = vmatpush2.msra.mxu0 0.0
    %1609 = vmatprep.subr.mxu0 0.0
    %1610 = vmatpush2.msra.mxu0 0.0
    %1611 = vmatprep.subr.mxu0 0.0
    %1612 = vmatpush2.msra.mxu0 0.0
    %1613 = vmatprep.mubr.f32.mxu0 0.0
    %1614 = vmatmul.mubr.f32.gmra.mxu0 %v804
    %v1615 = vpop.f32.mrf.mxu0
    %v1616 = vadd.f32 0.0, %v1615
    %v1617 = vpop.f32.mrf.mxu0
    %1618 = vdwg.mxu0
    %v1619 = vlaneseq
    %v1620 = vshrl.u32 %v1619, 7
    %v1621 = vsub.s32 1, %v1620
    %v1622 = vrot.slane %v620, %v1621
    %1624 = vrot.lane.b32.xlu0 %v1622, 32
    %v1625 = vpop.permute.xlu0 %1624
    %v1627 = vadd.f32 %v1438, %v1625
    %1629 = vrot.lane.b32.xlu0 %v1616, 32
    %v1630 = vpop.permute.xlu0 %1629
    %v1632 = vadd.f32 %v1627, %v1630
    %v1633 = vmax.f32 %v1632, 0.0
    %v1634 = vand.u32 2147483647, %v1632
    %v1635 = vsub.f32 0.0, %v1634
    %v1636 = vmul.f32 %v1635, 1.442695
    %v1637 = vpow.pop %v1636
    %v1638 = vadd.f32 %v1637, 1.0
    %v1639 = vlog2.pop %v1638
    %v1640 = vmul.f32 %v1639, 0.6931472
    %v1641 = vadd.f32 %v1633, %v1640
    %v1642 = vsub.f32 %v1641, 0.6931472
    %v1643 = vmax.f32 %v1642, 0.0
    %v1644 = vand.u32 2147483647, %v1642
    %v1645 = vsub.f32 0.0, %v1644
    %v1646 = vmul.f32 %v1645, 1.442695
    %v1647 = vpow.pop %v1646
    %v1648 = vadd.f32 %v1647, 1.0
    %v1649 = vlog2.pop %v1648
    %v1650 = vmul.f32 %v1649, 0.6931472
    %v1651 = vadd.f32 %v1643, %v1650
    %v1652 = vsub.f32 %v1651, 0.6931472
    %v1653 = vlaneseq
    %v1654 = vshrl.u32 %v1653, 7
    %v1655 = vsub.s32 2, %v1654
    %v1656 = vrot.slane %v620, %v1655
    %1658 = vrot.lane.b32.xlu0 %v1652, 96
    %v1659 = vpop.permute.xlu0 %1658
    %v1660 = vsel %vm631, %v1659, 0
    %1662 = vmatprep.subr.mxu0 0.0
    %1663 = vmatpush1.msra.mxu0 0.0
    %1664 = vmatprep.subr.mxu0 0.0
    %1665 = vmatpush1.msra.mxu0 0.0
    %1666 = vmatprep.subr.mxu0 0.0
    %1667 = vmatpush1.msra.mxu0 0.0
    %1668 = vmatprep.subr.mxu0 0.0
    %1669 = vmatpush1.msra.mxu0 0.0
    %1670 = vmatprep.subr.mxu0 0.0
    %1671 = vmatpush1.msra.mxu0 0.0
    %1672 = vmatprep.subr.mxu0 0.0
    %1673 = vmatpush1.msra.mxu0 0.0
    %1674 = vmatprep.subr.mxu0 0.0
    %1675 = vmatpush1.msra.mxu0 0.0
    %1676 = vmatprep.subr.mxu0 0.0
    %1677 = vmatpush1.msra.mxu0 0.0
    %1678 = vmatprep.subr.mxu0 0.0
    %1679 = vmatpush1.msra.mxu0 0.0
    %1680 = vmatprep.subr.mxu0 0.0
    %1681 = vmatpush1.msra.mxu0 0.0
    %1682 = vmatprep.subr.mxu0 0.0
    %1683 = vmatpush1.msra.mxu0 0.0
    %1684 = vmatprep.subr.mxu0 0.0
    %1685 = vmatpush1.msra.mxu0 0.0
    %1686 = vmatprep.subr.mxu0 0.0
    %1687 = vmatpush1.msra.mxu0 %v602
    %1688 = vmatprep.subr.mxu0 0.0
    %1689 = vmatpush1.msra.mxu0 %v601
    %1690 = vmatprep.subr.mxu0 0.0
    %1691 = vmatpush1.msra.mxu0 %v600
    %1692 = vmatprep.subr.mxu0 0.0
    %1693 = vmatpush1.msra.mxu0 %v599
    %1694 = vmatprep.subr.mxu0 0.0
    %1695 = vmatpush2.msra.mxu0 0.0
    %1696 = vmatprep.subr.mxu0 0.0
    %1697 = vmatpush2.msra.mxu0 0.0
    %1698 = vmatprep.subr.mxu0 0.0
    %1699 = vmatpush2.msra.mxu0 0.0
    %1700 = vmatprep.subr.mxu0 0.0
    %1701 = vmatpush2.msra.mxu0 0.0
    %1702 = vmatprep.subr.mxu0 0.0
    %1703 = vmatpush2.msra.mxu0 0.0
    %1704 = vmatprep.subr.mxu0 0.0
    %1705 = vmatpush2.msra.mxu0 0.0
    %1706 = vmatprep.subr.mxu0 0.0
    %1707 = vmatpush2.msra.mxu0 0.0
    %1708 = vmatprep.subr.mxu0 0.0
    %1709 = vmatpush2.msra.mxu0 0.0
    %1710 = vmatprep.subr.mxu0 0.0
    %1711 = vmatpush2.msra.mxu0 0.0
    %1712 = vmatprep.subr.mxu0 0.0
    %1713 = vmatpush2.msra.mxu0 0.0
    %1714 = vmatprep.subr.mxu0 0.0
    %1715 = vmatpush2.msra.mxu0 0.0
    %1716 = vmatprep.subr.mxu0 0.0
    %1717 = vmatpush2.msra.mxu0 0.0
    %1718 = vmatprep.subr.mxu0 0.0
    %1719 = vmatpush2.msra.mxu0 0.0
    %1720 = vmatprep.subr.mxu0 0.0
    %1721 = vmatpush2.msra.mxu0 0.0
    %1722 = vmatprep.subr.mxu0 0.0
    %1723 = vmatpush2.msra.mxu0 0.0
    %1724 = vmatprep.subr.mxu0 0.0
    %1725 = vmatpush2.msra.mxu0 0.0
    %1726 = vmatprep.mubr.f32.mxu0 0.0
    %1727 = vmatmul.mubr.f32.gmra.mxu0 %v1660
    %v1728 = vpop.f32.mrf.mxu0
    %v1729 = vadd.f32 %v1656, %v1728
    %v1730 = vpop.f32.mrf.mxu0
    %1731 = vdwg.mxu0
    %v1732 = vmax.f32 %v1729, 0.0
    %v1733 = vand.u32 2147483647, %v1729
    %v1734 = vsub.f32 0.0, %v1733
    %v1735 = vmul.f32 %v1734, 1.442695
    %v1736 = vpow.pop %v1735
    %v1737 = vadd.f32 %v1736, 1.0
    %v1738 = vlog2.pop %v1737
    %v1739 = vmul.f32 %v1738, 0.6931472
    %v1740 = vadd.f32 %v1732, %v1739
    %v1741 = vsub.f32 %v1740, 0.6931472
    %v1743 = vsel %vm631, %v1741, 0
    %1745 = vmatprep.subr.mxu0 0.0
    %1746 = vmatpush1.msra.mxu0 0.0
    %1747 = vmatprep.subr.mxu0 0.0
    %1748 = vmatpush1.msra.mxu0 0.0
    %1749 = vmatprep.subr.mxu0 0.0
    %1750 = vmatpush1.msra.mxu0 0.0
    %1751 = vmatprep.subr.mxu0 0.0
    %1752 = vmatpush1.msra.mxu0 0.0
    %1753 = vmatprep.subr.mxu0 0.0
    %1754 = vmatpush1.msra.mxu0 0.0
    %1755 = vmatprep.subr.mxu0 0.0
    %1756 = vmatpush1.msra.mxu0 0.0
    %1757 = vmatprep.subr.mxu0 0.0
    %1758 = vmatpush1.msra.mxu0 0.0
    %1759 = vmatprep.subr.mxu0 0.0
    %1760 = vmatpush1.msra.mxu0 0.0
    %1761 = vmatprep.subr.mxu0 0.0
    %1762 = vmatpush1.msra.mxu0 0.0
    %1763 = vmatprep.subr.mxu0 0.0
    %1764 = vmatpush1.msra.mxu0 0.0
    %1765 = vmatprep.subr.mxu0 0.0
    %1766 = vmatpush1.msra.mxu0 0.0
    %1767 = vmatprep.subr.mxu0 0.0
    %1768 = vmatpush1.msra.mxu0 0.0
    %1769 = vmatprep.subr.mxu0 0.0
    %1770 = vmatpush1.msra.mxu0 %v606
    %1771 = vmatprep.subr.mxu0 0.0
    %1772 = vmatpush1.msra.mxu0 %v605
    %1773 = vmatprep.subr.mxu0 0.0
    %1774 = vmatpush1.msra.mxu0 %v604
    %1775 = vmatprep.subr.mxu0 0.0
    %1776 = vmatpush1.msra.mxu0 %v603
    %1777 = vmatprep.subr.mxu0 0.0
    %1778 = vmatpush2.msra.mxu0 0.0
    %1779 = vmatprep.subr.mxu0 0.0
    %1780 = vmatpush2.msra.mxu0 0.0
    %1781 = vmatprep.subr.mxu0 0.0
    %1782 = vmatpush2.msra.mxu0 0.0
    %1783 = vmatprep.subr.mxu0 0.0
    %1784 = vmatpush2.msra.mxu0 0.0
    %1785 = vmatprep.subr.mxu0 0.0
    %1786 = vmatpush2.msra.mxu0 0.0
    %1787 = vmatprep.subr.mxu0 0.0
    %1788 = vmatpush2.msra.mxu0 0.0
    %1789 = vmatprep.subr.mxu0 0.0
    %1790 = vmatpush2.msra.mxu0 0.0
    %1791 = vmatprep.subr.mxu0 0.0
    %1792 = vmatpush2.msra.mxu0 0.0
    %1793 = vmatprep.subr.mxu0 0.0
    %1794 = vmatpush2.msra.mxu0 0.0
    %1795 = vmatprep.subr.mxu0 0.0
    %1796 = vmatpush2.msra.mxu0 0.0
    %1797 = vmatprep.subr.mxu0 0.0
    %1798 = vmatpush2.msra.mxu0 0.0
    %1799 = vmatprep.subr.mxu0 0.0
    %1800 = vmatpush2.msra.mxu0 0.0
    %1801 = vmatprep.subr.mxu0 0.0
    %1802 = vmatpush2.msra.mxu0 0.0
    %1803 = vmatprep.subr.mxu0 0.0
    %1804 = vmatpush2.msra.mxu0 0.0
    %1805 = vmatprep.subr.mxu0 0.0
    %1806 = vmatpush2.msra.mxu0 0.0
    %1807 = vmatprep.subr.mxu0 0.0
    %1808 = vmatpush2.msra.mxu0 0.0
    %1809 = vmatprep.mubr.f32.mxu0 0.0
    %1810 = vmatmul.mubr.f32.gmra.mxu0 %v1743
    %v1811 = vpop.f32.mrf.mxu0
    %v1812 = vadd.f32 0.0, %v1811
    %v1813 = vpop.f32.mrf.mxu0
    %1814 = vdwg.mxu0
    %1816 = vrot.lane.b32.xlu0 %v1812, 32
    %v1817 = vpop.permute.xlu0 %1816
    %v1819 = vadd.f32 %v1642, %v1817
    %v1820 = vlaneseq
    %v1821 = vshrl.u32 %v1820, 7
    %v1822 = vsub.s32 3, %v1821
    %v1823 = vrot.slane %v620, %v1822
    %1825 = vrot.lane.b32.xlu0 %v1823, 32
    %v1826 = vpop.permute.xlu0 %1825
    %v1828 = vadd.f32 %v1819, %v1826
    %v1829 = vlaneseq
    %v1830 = vshrl.u32 %v1829, 7
    %v1831 = vsub.s32 7, %v1830
    %v1832 = vrot.slane %v620, %v1831
    %v1833 = vmul.f32 %v1832, %v1357
    %v1834 = vmax.f32 %v1828, 0.0
    %v1835 = vand.u32 2147483647, %v1828
    %v1836 = vsub.f32 0.0, %v1835
    %v1837 = vmul.f32 %v1836, 1.442695
    %v1838 = vpow.pop %v1837
    %v1839 = vadd.f32 %v1838, 1.0
    %v1840 = vlog2.pop %v1839
    %v1841 = vmul.f32 %v1840, 0.6931472
    %v1842 = vadd.f32 %v1834, %v1841
    %v1843 = vsub.f32 %v1842, 0.6931472
    %1845 = vrot.lane.b32.xlu0 %v1843, 96
    %v1846 = vpop.permute.xlu0 %1845
    %v1847 = vsel %vm631, %v1846, 0
    %1849 = vmatprep.subr.mxu0 0.0
    %1850 = vmatpush1.msra.mxu0 0.0
    %1851 = vmatprep.subr.mxu0 0.0
    %1852 = vmatpush1.msra.mxu0 0.0
    %1853 = vmatprep.subr.mxu0 0.0
    %1854 = vmatpush1.msra.mxu0 0.0
    %1855 = vmatprep.subr.mxu0 0.0
    %1856 = vmatpush1.msra.mxu0 0.0
    %1857 = vmatprep.subr.mxu0 0.0
    %1858 = vmatpush1.msra.mxu0 0.0
    %1859 = vmatprep.subr.mxu0 0.0
    %1860 = vmatpush1.msra.mxu0 0.0
    %1861 = vmatprep.subr.mxu0 0.0
    %1862 = vmatpush1.msra.mxu0 0.0
    %1863 = vmatprep.subr.mxu0 0.0
    %1864 = vmatpush1.msra.mxu0 0.0
    %1865 = vmatprep.subr.mxu0 0.0
    %1866 = vmatpush1.msra.mxu0 0.0
    %1867 = vmatprep.subr.mxu0 0.0
    %1868 = vmatpush1.msra.mxu0 0.0
    %1869 = vmatprep.subr.mxu0 0.0
    %1870 = vmatpush1.msra.mxu0 0.0
    %1871 = vmatprep.subr.mxu0 0.0
    %1872 = vmatpush1.msra.mxu0 0.0
    %1873 = vmatprep.subr.mxu0 0.0
    %1874 = vmatpush1.msra.mxu0 %v610
    %1875 = vmatprep.subr.mxu0 0.0
    %1876 = vmatpush1.msra.mxu0 %v609
    %1877 = vmatprep.subr.mxu0 0.0
    %1878 = vmatpush1.msra.mxu0 %v608
    %1879 = vmatprep.subr.mxu0 0.0
    %1880 = vmatpush1.msra.mxu0 %v607
    %1881 = vmatprep.subr.mxu0 0.0
    %1882 = vmatpush2.msra.mxu0 0.0
    %1883 = vmatprep.subr.mxu0 0.0
    %1884 = vmatpush2.msra.mxu0 0.0
    %1885 = vmatprep.subr.mxu0 0.0
    %1886 = vmatpush2.msra.mxu0 0.0
    %1887 = vmatprep.subr.mxu0 0.0
    %1888 = vmatpush2.msra.mxu0 0.0
    %1889 = vmatprep.subr.mxu0 0.0
    %1890 = vmatpush2.msra.mxu0 0.0
    %1891 = vmatprep.subr.mxu0 0.0
    %1892 = vmatpush2.msra.mxu0 0.0
    %1893 = vmatprep.subr.mxu0 0.0
    %1894 = vmatpush2.msra.mxu0 0.0
    %1895 = vmatprep.subr.mxu0 0.0
    %1896 = vmatpush2.msra.mxu0 0.0
    %1897 = vmatprep.subr.mxu0 0.0
    %1898 = vmatpush2.msra.mxu0 0.0
    %1899 = vmatprep.subr.mxu0 0.0
    %1900 = vmatpush2.msra.mxu0 0.0
    %1901 = vmatprep.subr.mxu0 0.0
    %1902 = vmatpush2.msra.mxu0 0.0
    %1903 = vmatprep.subr.mxu0 0.0
    %1904 = vmatpush2.msra.mxu0 0.0
    %1905 = vmatprep.subr.mxu0 0.0
    %1906 = vmatpush2.msra.mxu0 0.0
    %1907 = vmatprep.subr.mxu0 0.0
    %1908 = vmatpush2.msra.mxu0 0.0
    %1909 = vmatprep.subr.mxu0 0.0
    %1910 = vmatpush2.msra.mxu0 0.0
    %1911 = vmatprep.subr.mxu0 0.0
    %1912 = vmatpush2.msra.mxu0 0.0
    %1913 = vmatprep.mubr.f32.mxu0 0.0
    %1914 = vmatmul.mubr.f32.gmra.mxu0 %v1847
    %v1915 = vpop.f32.mrf.mxu0
    %v1916 = vadd.f32 0.0, %v1915
    %v1917 = vpop.f32.mrf.mxu0
    %1918 = vdwg.mxu0
    %v1919 = vadd.f32 %v1833, %v1916
    %v1920 = vlaneseq
    %v1921 = vshrl.u32 %v1920, 7
    %v1922 = vsub.s32 4, %v1921
    %v1923 = vrot.slane %v620, %v1922
    %v1924 = vadd.f32 %v1919, %v1923
    %v1925 = vmax.f32 %v1924, 0.0
    %v1926 = vand.u32 2147483647, %v1924
    %v1927 = vsub.f32 0.0, %v1926
    %v1928 = vmul.f32 %v1927, 1.442695
    %v1929 = vpow.pop %v1928
    %v1930 = vadd.f32 %v1929, 1.0
    %v1931 = vlog2.pop %v1930
    %v1932 = vmul.f32 %v1931, 0.6931472
    %v1933 = vadd.f32 %v1925, %v1932
    %v1934 = vsub.f32 %v1933, 0.6931472
    %v1935 = vlaneseq
    %v1936 = vshrl.u32 %v1935, 7
    %v1937 = vsub.s32 5, %v1936
    %v1938 = vrot.slane %v620, %v1937
    %v1940 = vsel %vm631, %v1934, 0
    %1942 = vmatprep.subr.mxu0 0.0
    %1943 = vmatpush1.msra.mxu0 0.0
    %1944 = vmatprep.subr.mxu0 0.0
    %1945 = vmatpush1.msra.mxu0 0.0
    %1946 = vmatprep.subr.mxu0 0.0
    %1947 = vmatpush1.msra.mxu0 0.0
    %1948 = vmatprep.subr.mxu0 0.0
    %1949 = vmatpush1.msra.mxu0 0.0
    %1950 = vmatprep.subr.mxu0 0.0
    %1951 = vmatpush1.msra.mxu0 0.0
    %1952 = vmatprep.subr.mxu0 0.0
    %1953 = vmatpush1.msra.mxu0 0.0
    %1954 = vmatprep.subr.mxu0 0.0
    %1955 = vmatpush1.msra.mxu0 0.0
    %1956 = vmatprep.subr.mxu0 0.0
    %1957 = vmatpush1.msra.mxu0 0.0
    %1958 = vmatprep.subr.mxu0 0.0
    %1959 = vmatpush1.msra.mxu0 0.0
    %1960 = vmatprep.subr.mxu0 0.0
    %1961 = vmatpush1.msra.mxu0 0.0
    %1962 = vmatprep.subr.mxu0 0.0
    %1963 = vmatpush1.msra.mxu0 0.0
    %1964 = vmatprep.subr.mxu0 0.0
    %1965 = vmatpush1.msra.mxu0 0.0
    %1966 = vmatprep.subr.mxu0 0.0
    %1967 = vmatpush1.msra.mxu0 %v614
    %1968 = vmatprep.subr.mxu0 0.0
    %1969 = vmatpush1.msra.mxu0 %v613
    %1970 = vmatprep.subr.mxu0 0.0
    %1971 = vmatpush1.msra.mxu0 %v612
    %1972 = vmatprep.subr.mxu0 0.0
    %1973 = vmatpush1.msra.mxu0 %v611
    %1974 = vmatprep.subr.mxu0 0.0
    %1975 = vmatpush2.msra.mxu0 0.0
    %1976 = vmatprep.subr.mxu0 0.0
    %1977 = vmatpush2.msra.mxu0 0.0
    %1978 = vmatprep.subr.mxu0 0.0
    %1979 = vmatpush2.msra.mxu0 0.0
    %1980 = vmatprep.subr.mxu0 0.0
    %1981 = vmatpush2.msra.mxu0 0.0
    %1982 = vmatprep.subr.mxu0 0.0
    %1983 = vmatpush2.msra.mxu0 0.0
    %1984 = vmatprep.subr.mxu0 0.0
    %1985 = vmatpush2.msra.mxu0 0.0
    %1986 = vmatprep.subr.mxu0 0.0
    %1987 = vmatpush2.msra.mxu0 0.0
    %1988 = vmatprep.subr.mxu0 0.0
    %1989 = vmatpush2.msra.mxu0 0.0
    %1990 = vmatprep.subr.mxu0 0.0
    %1991 = vmatpush2.msra.mxu0 0.0
    %1992 = vmatprep.subr.mxu0 0.0
    %1993 = vmatpush2.msra.mxu0 0.0
    %1994 = vmatprep.subr.mxu0 0.0
    %1995 = vmatpush2.msra.mxu0 0.0
    %1996 = vmatprep.subr.mxu0 0.0
    %1997 = vmatpush2.msra.mxu0 0.0
    %1998 = vmatprep.subr.mxu0 0.0
    %1999 = vmatpush2.msra.mxu0 0.0
    %2000 = vmatprep.subr.mxu0 0.0
    %2001 = vmatpush2.msra.mxu0 0.0
    %2002 = vmatprep.subr.mxu0 0.0
    %2003 = vmatpush2.msra.mxu0 0.0
    %2004 = vmatprep.subr.mxu0 0.0
    %2005 = vmatpush2.msra.mxu0 0.0
    %2006 = vmatprep.mubr.f32.mxu0 0.0
    %2007 = vmatmul.mubr.f32.gmra.mxu0 %v1940
    %v2008 = vpop.f32.mrf.mxu0
    %v2009 = vadd.f32 %v1938, %v2008
    %v2010 = vpop.f32.mrf.mxu0
    %2011 = vdwg.mxu0
    %v2012 = vmax.f32 %v2009, 0.0
    %v2013 = vand.u32 2147483647, %v2009
    %v2014 = vsub.f32 0.0, %v2013
    %v2015 = vmul.f32 %v2014, 1.442695
    %v2016 = vpow.pop %v2015
    %v2017 = vadd.f32 %v2016, 1.0
    %v2018 = vlog2.pop %v2017
    %v2019 = vmul.f32 %v2018, 0.6931472
    %v2020 = vadd.f32 %v2012, %v2019
    %v2021 = vsub.f32 %v2020, 0.6931472
    %v2023 = vsel %vm631, %v2021, 0
    %2025 = vmatprep.subr.mxu0 0.0
    %2026 = vmatpush1.msra.mxu0 0.0
    %2027 = vmatprep.subr.mxu0 0.0
    %2028 = vmatpush1.msra.mxu0 0.0
    %2029 = vmatprep.subr.mxu0 0.0
    %2030 = vmatpush1.msra.mxu0 0.0
    %2031 = vmatprep.subr.mxu0 0.0
    %2032 = vmatpush1.msra.mxu0 0.0
    %2033 = vmatprep.subr.mxu0 0.0
    %2034 = vmatpush1.msra.mxu0 0.0
    %2035 = vmatprep.subr.mxu0 0.0
    %2036 = vmatpush1.msra.mxu0 0.0
    %2037 = vmatprep.subr.mxu0 0.0
    %2038 = vmatpush1.msra.mxu0 0.0
    %2039 = vmatprep.subr.mxu0 0.0
    %2040 = vmatpush1.msra.mxu0 0.0
    %2041 = vmatprep.subr.mxu0 0.0
    %2042 = vmatpush1.msra.mxu0 0.0
    %2043 = vmatprep.subr.mxu0 0.0
    %2044 = vmatpush1.msra.mxu0 0.0
    %2045 = vmatprep.subr.mxu0 0.0
    %2046 = vmatpush1.msra.mxu0 0.0
    %2047 = vmatprep.subr.mxu0 0.0
    %2048 = vmatpush1.msra.mxu0 0.0
    %2049 = vmatprep.subr.mxu0 0.0
    %2050 = vmatpush1.msra.mxu0 %v618
    %2051 = vmatprep.subr.mxu0 0.0
    %2052 = vmatpush1.msra.mxu0 %v617
    %2053 = vmatprep.subr.mxu0 0.0
    %2054 = vmatpush1.msra.mxu0 %v616
    %2055 = vmatprep.subr.mxu0 0.0
    %2056 = vmatpush1.msra.mxu0 %v615
    %2057 = vmatprep.subr.mxu0 0.0
    %2058 = vmatpush2.msra.mxu0 0.0
    %2059 = vmatprep.subr.mxu0 0.0
    %2060 = vmatpush2.msra.mxu0 0.0
    %2061 = vmatprep.subr.mxu0 0.0
    %2062 = vmatpush2.msra.mxu0 0.0
    %2063 = vmatprep.subr.mxu0 0.0
    %2064 = vmatpush2.msra.mxu0 0.0
    %2065 = vmatprep.subr.mxu0 0.0
    %2066 = vmatpush2.msra.mxu0 0.0
    %2067 = vmatprep.subr.mxu0 0.0
    %2068 = vmatpush2.msra.mxu0 0.0
    %2069 = vmatprep.subr.mxu0 0.0
    %2070 = vmatpush2.msra.mxu0 0.0
    %2071 = vmatprep.subr.mxu0 0.0
    %2072 = vmatpush2.msra.mxu0 0.0
    %2073 = vmatprep.subr.mxu0 0.0
    %2074 = vmatpush2.msra.mxu0 0.0
    %2075 = vmatprep.subr.mxu0 0.0
    %2076 = vmatpush2.msra.mxu0 0.0
    %2077 = vmatprep.subr.mxu0 0.0
    %2078 = vmatpush2.msra.mxu0 0.0
    %2079 = vmatprep.subr.mxu0 0.0
    %2080 = vmatpush2.msra.mxu0 0.0
    %2081 = vmatprep.subr.mxu0 0.0
    %2082 = vmatpush2.msra.mxu0 0.0
    %2083 = vmatprep.subr.mxu0 0.0
    %2084 = vmatpush2.msra.mxu0 0.0
    %2085 = vmatprep.subr.mxu0 0.0
    %2086 = vmatpush2.msra.mxu0 0.0
    %2087 = vmatprep.subr.mxu0 0.0
    %2088 = vmatpush2.msra.mxu0 0.0
    %2089 = vmatprep.mubr.f32.mxu0 0.0
    %2090 = vmatmul.mubr.f32.gmra.mxu0 %v2023
    %v2091 = vpop.f32.mrf.mxu0
    %v2092 = vadd.f32 0.0, %v2091
    %v2093 = vpop.f32.mrf.mxu0
    %2094 = vdwg.mxu0
    %v2095 = vadd.f32 %v1924, %v2092
    %v2096 = vlaneseq
    %v2097 = vshrl.u32 %v2096, 7
    %v2098 = vsub.s32 6, %v2097
    %v2099 = vrot.slane %v620, %v2098
    %v2100 = vadd.f32 %v2095, %v2099
    %v2101 = vld [vmem:[%s15] sm:$0xff]
    %v2102 = vld [vmem:[%s15 + $0x8] sm:$0xff]
    %v2103 = vld [vmem:[%s15 + $0x10] sm:$0xff]
    %v2104 = vld [vmem:[%s15 + $0x18] sm:$0xff]
    %v2105 = vld [vmem:[%s15 + $0x20] sm:$0xff]
    %v2106 = vld [vmem:[%s15 + $0x28] sm:$0xff]
    %v2107 = vld [vmem:[%s15 + $0x30] sm:$0xff]
    %v2108 = vld [vmem:[%s15 + $0x38] sm:$0xff]
    %v2109 = vld [vmem:[%s16] sm:$0x3]
    %v2110 = vmax.f32 %v2100, 0.0
    %v2111 = vand.u32 2147483647, %v2100
    %v2112 = vsub.f32 0.0, %v2111
    %v2113 = vmul.f32 %v2112, 1.442695
    %v2114 = vpow.pop %v2113
    %v2115 = vadd.f32 %v2114, 1.0
    %v2116 = vlog2.pop %v2115
    %v2117 = vmul.f32 %v2116, 0.6931472
    %v2118 = vadd.f32 %v2110, %v2117
    %v2119 = vsub.f32 %v2118, 0.6931472
    %v2120 = vlaneseq
    %v2121 = vshrl.u32 %v2120, 7
    %v2122 = vsub.s32 0, %v2121
    %v2123 = vrot.slane %v2109, %v2122
    %v2125 = vsel %vm631, %v2119, 0
    %2127 = vmatprep.subr.mxu0 0.0
    %2128 = vmatpush1.msra.mxu0 0.0
    %2129 = vmatprep.subr.mxu0 0.0
    %2130 = vmatpush1.msra.mxu0 0.0
    %2131 = vmatprep.subr.mxu0 0.0
    %2132 = vmatpush1.msra.mxu0 0.0
    %2133 = vmatprep.subr.mxu0 0.0
    %2134 = vmatpush1.msra.mxu0 0.0
    %2135 = vmatprep.subr.mxu0 0.0
    %2136 = vmatpush1.msra.mxu0 0.0
    %2137 = vmatprep.subr.mxu0 0.0
    %2138 = vmatpush1.msra.mxu0 0.0
    %2139 = vmatprep.subr.mxu0 0.0
    %2140 = vmatpush1.msra.mxu0 0.0
    %2141 = vmatprep.subr.mxu0 0.0
    %2142 = vmatpush1.msra.mxu0 0.0
    %2143 = vmatprep.subr.mxu0 0.0
    %2144 = vmatpush1.msra.mxu0 0.0
    %2145 = vmatprep.subr.mxu0 0.0
    %2146 = vmatpush1.msra.mxu0 0.0
    %2147 = vmatprep.subr.mxu0 0.0
    %2148 = vmatpush1.msra.mxu0 0.0
    %2149 = vmatprep.subr.mxu0 0.0
    %2150 = vmatpush1.msra.mxu0 0.0
    %2151 = vmatprep.subr.mxu0 0.0
    %2152 = vmatpush1.msra.mxu0 %v2104
    %2153 = vmatprep.subr.mxu0 0.0
    %2154 = vmatpush1.msra.mxu0 %v2103
    %2155 = vmatprep.subr.mxu0 0.0
    %2156 = vmatpush1.msra.mxu0 %v2102
    %2157 = vmatprep.subr.mxu0 0.0
    %2158 = vmatpush1.msra.mxu0 %v2101
    %2159 = vmatprep.subr.mxu0 0.0
    %2160 = vmatpush2.msra.mxu0 0.0
    %2161 = vmatprep.subr.mxu0 0.0
    %2162 = vmatpush2.msra.mxu0 0.0
    %2163 = vmatprep.subr.mxu0 0.0
    %2164 = vmatpush2.msra.mxu0 0.0
    %2165 = vmatprep.subr.mxu0 0.0
    %2166 = vmatpush2.msra.mxu0 0.0
    %2167 = vmatprep.subr.mxu0 0.0
    %2168 = vmatpush2.msra.mxu0 0.0
    %2169 = vmatprep.subr.mxu0 0.0
    %2170 = vmatpush2.msra.mxu0 0.0
    %2171 = vmatprep.subr.mxu0 0.0
    %2172 = vmatpush2.msra.mxu0 0.0
    %2173 = vmatprep.subr.mxu0 0.0
    %2174 = vmatpush2.msra.mxu0 0.0
    %2175 = vmatprep.subr.mxu0 0.0
    %2176 = vmatpush2.msra.mxu0 0.0
    %2177 = vmatprep.subr.mxu0 0.0
    %2178 = vmatpush2.msra.mxu0 0.0
    %2179 = vmatprep.subr.mxu0 0.0
    %2180 = vmatpush2.msra.mxu0 0.0
    %2181 = vmatprep.subr.mxu0 0.0
    %2182 = vmatpush2.msra.mxu0 0.0
    %2183 = vmatprep.subr.mxu0 0.0
    %2184 = vmatpush2.msra.mxu0 0.0
    %2185 = vmatprep.subr.mxu0 0.0
    %2186 = vmatpush2.msra.mxu0 0.0
    %2187 = vmatprep.subr.mxu0 0.0
    %2188 = vmatpush2.msra.mxu0 0.0
    %2189 = vmatprep.subr.mxu0 0.0
    %2190 = vmatpush2.msra.mxu0 0.0
    %2191 = vmatprep.mubr.f32.mxu0 0.0
    %2192 = vmatmul.mubr.f32.gmra.mxu0 %v2125
    %v2193 = vpop.f32.mrf.mxu0
    %v2194 = vadd.f32 %v2123, %v2193
    %v2195 = vpop.f32.mrf.mxu0
    %2196 = vdwg.mxu0
    %v2197 = vmax.f32 %v2194, 0.0
    %v2198 = vand.u32 2147483647, %v2194
    %v2199 = vsub.f32 0.0, %v2198
    %v2200 = vmul.f32 %v2199, 1.442695
    %v2201 = vpow.pop %v2200
    %v2202 = vadd.f32 %v2201, 1.0
    %v2203 = vlog2.pop %v2202
    %v2204 = vmul.f32 %v2203, 0.6931472
    %v2205 = vadd.f32 %v2197, %v2204
    %v2206 = vsub.f32 %v2205, 0.6931472
    %v2208 = vsel %vm631, %v2206, 0
    %2210 = vmatprep.subr.mxu0 0.0
    %2211 = vmatpush1.msra.mxu0 0.0
    %2212 = vmatprep.subr.mxu0 0.0
    %2213 = vmatpush1.msra.mxu0 0.0
    %2214 = vmatprep.subr.mxu0 0.0
    %2215 = vmatpush1.msra.mxu0 0.0
    %2216 = vmatprep.subr.mxu0 0.0
    %2217 = vmatpush1.msra.mxu0 0.0
    %2218 = vmatprep.subr.mxu0 0.0
    %2219 = vmatpush1.msra.mxu0 0.0
    %2220 = vmatprep.subr.mxu0 0.0
    %2221 = vmatpush1.msra.mxu0 0.0
    %2222 = vmatprep.subr.mxu0 0.0
    %2223 = vmatpush1.msra.mxu0 0.0
    %2224 = vmatprep.subr.mxu0 0.0
    %2225 = vmatpush1.msra.mxu0 0.0
    %2226 = vmatprep.subr.mxu0 0.0
    %2227 = vmatpush1.msra.mxu0 0.0
    %2228 = vmatprep.subr.mxu0 0.0
    %2229 = vmatpush1.msra.mxu0 0.0
    %2230 = vmatprep.subr.mxu0 0.0
    %2231 = vmatpush1.msra.mxu0 0.0
    %2232 = vmatprep.subr.mxu0 0.0
    %2233 = vmatpush1.msra.mxu0 0.0
    %2234 = vmatprep.subr.mxu0 0.0
    %2235 = vmatpush1.msra.mxu0 %v2108
    %2236 = vmatprep.subr.mxu0 0.0
    %2237 = vmatpush1.msra.mxu0 %v2107
    %2238 = vmatprep.subr.mxu0 0.0
    %2239 = vmatpush1.msra.mxu0 %v2106
    %2240 = vmatprep.subr.mxu0 0.0
    %2241 = vmatpush1.msra.mxu0 %v2105
    %2242 = vmatprep.subr.mxu0 0.0
    %2243 = vmatpush2.msra.mxu0 0.0
    %2244 = vmatprep.subr.mxu0 0.0
    %2245 = vmatpush2.msra.mxu0 0.0
    %2246 = vmatprep.subr.mxu0 0.0
    %2247 = vmatpush2.msra.mxu0 0.0
    %2248 = vmatprep.subr.mxu0 0.0
    %2249 = vmatpush2.msra.mxu0 0.0
    %2250 = vmatprep.subr.mxu0 0.0
    %2251 = vmatpush2.msra.mxu0 0.0
    %2252 = vmatprep.subr.mxu0 0.0
    %2253 = vmatpush2.msra.mxu0 0.0
    %2254 = vmatprep.subr.mxu0 0.0
    %2255 = vmatpush2.msra.mxu0 0.0
    %2256 = vmatprep.subr.mxu0 0.0
    %2257 = vmatpush2.msra.mxu0 0.0
    %2258 = vmatprep.subr.mxu0 0.0
    %2259 = vmatpush2.msra.mxu0 0.0
    %2260 = vmatprep.subr.mxu0 0.0
    %2261 = vmatpush2.msra.mxu0 0.0
    %2262 = vmatprep.subr.mxu0 0.0
    %2263 = vmatpush2.msra.mxu0 0.0
    %2264 = vmatprep.subr.mxu0 0.0
    %2265 = vmatpush2.msra.mxu0 0.0
    %2266 = vmatprep.subr.mxu0 0.0
    %2267 = vmatpush2.msra.mxu0 0.0
    %2268 = vmatprep.subr.mxu0 0.0
    %2269 = vmatpush2.msra.mxu0 0.0
    %2270 = vmatprep.subr.mxu0 0.0
    %2271 = vmatpush2.msra.mxu0 0.0
    %2272 = vmatprep.subr.mxu0 0.0
    %2273 = vmatpush2.msra.mxu0 0.0
    %2274 = vmatprep.mubr.f32.mxu0 0.0
    %2275 = vmatmul.mubr.f32.gmra.mxu0 %v2208
    %v2276 = vpop.f32.mrf.mxu0
    %v2277 = vadd.f32 0.0, %v2276
    %v2278 = vpop.f32.mrf.mxu0
    %2279 = vdwg.mxu0
    %v2280 = vadd.f32 %v2100, %v2277
    %v2281 = vlaneseq
    %v2282 = vshrl.u32 %v2281, 7
    %v2283 = vsub.s32 1, %v2282
    %v2284 = vrot.slane %v2109, %v2283
    %v2285 = vadd.f32 %v2280, %v2284
    %v2286 = vmax.f32 %v2285, 0.0
    %v2287 = vand.u32 2147483647, %v2285
    %v2288 = vsub.f32 0.0, %v2287
    %v2289 = vmul.f32 %v2288, 1.442695
    %v2290 = vpow.pop %v2289
    %v2291 = vadd.f32 %v2290, 1.0
    %v2292 = vlog2.pop %v2291
    %v2293 = vmul.f32 %v2292, 0.6931472
    %v2294 = vadd.f32 %v2286, %v2293
    %v2295 = vsub.f32 %v2294, 0.6931472
    %v2296 = vld [vmem:[%s17] sm:$0xff]
    %v2297 = vld [vmem:[%s17 + $0x8] sm:$0xff]
    %v2298 = vld [vmem:[%s17 + $0x10] sm:$0xff]
    %v2299 = vld [vmem:[%s17 + $0x18] sm:$0xff]
    %v2301 = vsel %vm631, %v2295, 0
    %2303 = vmatprep.subr.mxu0 0.0
    %2304 = vmatpush1.msra.mxu0 0.0
    %2305 = vmatprep.subr.mxu0 0.0
    %2306 = vmatpush1.msra.mxu0 0.0
    %2307 = vmatprep.subr.mxu0 0.0
    %2308 = vmatpush1.msra.mxu0 0.0
    %2309 = vmatprep.subr.mxu0 0.0
    %2310 = vmatpush1.msra.mxu0 0.0
    %2311 = vmatprep.subr.mxu0 0.0
    %2312 = vmatpush1.msra.mxu0 0.0
    %2313 = vmatprep.subr.mxu0 0.0
    %2314 = vmatpush1.msra.mxu0 0.0
    %2315 = vmatprep.subr.mxu0 0.0
    %2316 = vmatpush1.msra.mxu0 0.0
    %2317 = vmatprep.subr.mxu0 0.0
    %2318 = vmatpush1.msra.mxu0 0.0
    %2319 = vmatprep.subr.mxu0 0.0
    %2320 = vmatpush1.msra.mxu0 0.0
    %2321 = vmatprep.subr.mxu0 0.0
    %2322 = vmatpush1.msra.mxu0 0.0
    %2323 = vmatprep.subr.mxu0 0.0
    %2324 = vmatpush1.msra.mxu0 0.0
    %2325 = vmatprep.subr.mxu0 0.0
    %2326 = vmatpush1.msra.mxu0 0.0
    %2327 = vmatprep.subr.mxu0 0.0
    %2328 = vmatpush1.msra.mxu0 %v2299
    %2329 = vmatprep.subr.mxu0 0.0
    %2330 = vmatpush1.msra.mxu0 %v2298
    %2331 = vmatprep.subr.mxu0 0.0
    %2332 = vmatpush1.msra.mxu0 %v2297
    %2333 = vmatprep.subr.mxu0 0.0
    %2334 = vmatpush1.msra.mxu0 %v2296
    %2335 = vmatprep.subr.mxu0 0.0
    %2336 = vmatpush2.msra.mxu0 0.0
    %2337 = vmatprep.subr.mxu0 0.0
    %2338 = vmatpush2.msra.mxu0 0.0
    %2339 = vmatprep.subr.mxu0 0.0
    %2340 = vmatpush2.msra.mxu0 0.0
    %2341 = vmatprep.subr.mxu0 0.0
    %2342 = vmatpush2.msra.mxu0 0.0
    %2343 = vmatprep.subr.mxu0 0.0
    %2344 = vmatpush2.msra.mxu0 0.0
    %2345 = vmatprep.subr.mxu0 0.0
    %2346 = vmatpush2.msra.mxu0 0.0
    %2347 = vmatprep.subr.mxu0 0.0
    %2348 = vmatpush2.msra.mxu0 0.0
    %2349 = vmatprep.subr.mxu0 0.0
    %2350 = vmatpush2.msra.mxu0 0.0
    %2351 = vmatprep.subr.mxu0 0.0
    %2352 = vmatpush2.msra.mxu0 0.0
    %2353 = vmatprep.subr.mxu0 0.0
    %2354 = vmatpush2.msra.mxu0 0.0
    %2355 = vmatprep.subr.mxu0 0.0
    %2356 = vmatpush2.msra.mxu0 0.0
    %2357 = vmatprep.subr.mxu0 0.0
    %2358 = vmatpush2.msra.mxu0 0.0
    %2359 = vmatprep.subr.mxu0 0.0
    %2360 = vmatpush2.msra.mxu0 0.0
    %2361 = vmatprep.subr.mxu0 0.0
    %2362 = vmatpush2.msra.mxu0 0.0
    %2363 = vmatprep.subr.mxu0 0.0
    %2364 = vmatpush2.msra.mxu0 0.0
    %2365 = vmatprep.subr.mxu0 0.0
    %2366 = vmatpush2.msra.mxu0 0.0
    %2367 = vmatprep.mubr.f32.mxu0 0.0
    %2368 = vmatmul.mubr.f32.gmra.mxu0 %v2301
    %v2369 = vpop.f32.mrf.mxu0
    %v2370 = vadd.f32 0.0, %v2369
    %v2371 = vpop.f32.mrf.mxu0
    %2372 = vdwg.mxu0
    %2374 = vrot.lane.b32.xlu0 %v2370, 24
    %v2375 = vpop.permute.xlu0 %2374
    %v2377 = vmul.f32 %v469, %v2375
    %2379 = vrot.lane.b32.xlu0 %v469, 127
    %v2380 = vpop.permute.xlu0 %2379
    %v2382 = vadd.f32 %v2377, %v2380
    %2384 = vrot.lane.b32.xlu0 %v2382, 104
    %v2385 = vpop.permute.xlu0 %2384
    %vm2387 = vcmask 7168
    %2388 = vst.msk [vmem:[%s18] sm:$0xff] %vm2387, %v2385
    // Predicated region
    $region78: #{tpu_custom_call.1} parent=1 // pred_check
      _
    $region79: #{tpu_custom_call.1} parent=1 // pred_check_branch
      %2390 = sbr.rel (0) target = $region81
    $region80: #{tpu_custom_call.1} parent=1 // pred_region
      _
    $region81: #{tpu_custom_call.1} parent=1 // pred_fallthru
      _
    // Predicated region
    $region82: #{tpu_custom_call.1} parent=1 // pred_check
      _
    $region83: #{tpu_custom_call.1} parent=1 // pred_check_branch
      %2392 = sbr.rel (0) target = $region85
    $region84: #{tpu_custom_call.1} parent=1 // pred_region
      _
    $region85: #{tpu_custom_call.1} parent=1 // pred_fallthru
      _
    %2393 = vsyncpa [#allocation4], 1

</llo_original>
